<compile_context>
chip_gen: v5e
topology: v5e:2x2
jax: 0.10.0
libtpu: 0.0.40
codegen_flags: <defaults>
</compile_context>

<pallas_src>
import jax
import jax.numpy as jnp
from jax import lax
from jax.experimental import pallas as pl
from jax.experimental.pallas import tpu as pltpu


def _embedding_bag_mlp_kernel(ids_ref,   # SMEM (B, L) int32  (scalar prefetch)
                              emb_hbm,   # HBM  (V, D) embedding table (pl.ANY)
                              w1_ref,    # VMEM (H, D)  torch layout (out, in)
                              b1_ref,    # VMEM (H, 1)
                              w2_ref,    # VMEM (H, 1)  column form of (1, H) weight
                              b2_ref,    # VMEM (1, 1)
                              out_ref,   # VMEM (1, B)  lane-dense output row
                              rows,      # VMEM scratch (L, B, D) gathered rows
                              sems):     # DMA semaphores (B,)
    B, L = ids_ref.shape
    inv_l = jnp.float32(1.0 / L)

    # --- DMA gather: copy only the B*L referenced rows out of HBM -----------
    # All copies are issued up front (overlapped); each bag accumulates its
    # L row-copies on one semaphore.  Indices come from the scalar-prefetched
    # SMEM table.  (No bounds check on idx: caller guarantees idx < V.)
    for b in range(B):
        for l in range(L):
            idx = ids_ref[b, l]
            pltpu.make_async_copy(emb_hbm.at[idx], rows.at[l, b],
                                  sems.at[b]).start()

    # Wait for all of them.  Only the descriptor shape matters for the wait,
    # so the source index is irrelevant (all rows are the same size).
    for b in range(B):
        for l in range(L):
            pltpu.make_async_copy(emb_hbm.at[0], rows.at[l, b],
                                  sems.at[b]).wait()

    # --- mean pool over the bag-length axis (leading dim -> plain vreg adds)
    pooled = jnp.sum(rows[...], axis=0) * inv_l            # (B, D)

    # --- layer 1 on the MXU, batch kept in the lane dim ----------------------
    # h_t[j, b] = sum_d w1[j, d] * pooled[b, d]   (contract last dim with last dim)
    h_t = lax.dot_general(
        w1_ref[...], pooled,
        dimension_numbers=(((1,), (1,)), ((), ())),
        preferred_element_type=jnp.float32) + b1_ref[...]  # (H, B)

    # --- layer 2 (H -> 1) on the VPU + XLU sublane reduce; lane-dense result
    y = jnp.sum(h_t * w2_ref[...], axis=0, keepdims=True) + b2_ref[...]  # (1, B)
    out_ref[...] = y.astype(out_ref.dtype)


def embedding_bag_model(ids, emb_table, w1, b1, w2, b2):
    """ids: (B, L) int32; emb_table: (V, D); w1: (H, D) torch layout;
    b1: (H,); w2: (1, H) torch layout; b2: (1,).  Returns (B, 1) float32."""
    B, L = ids.shape
    V, D = emb_table.shape
    H = w1.shape[0]

    b1_col = b1.reshape(H, 1)
    w2_col = w2.reshape(H, 1)          # (1, H) torch weight -> column for VPU path
    b2_2d = b2.reshape(1, 1)

    # Derive a tight VMEM budget from the actual resident buffers (gather
    # scratch + weights + output) with headroom; keeps VMEM free for
    # surrounding XLA fusions and is safe on v7x's smaller VMEM.
    rows_bytes = L * B * D * 4
    weights_bytes = (H * D + H + H + 1) * 4
    out_bytes = B * 4
    vmem_limit = max(8 * 1024 * 1024,
                     2 * (rows_bytes + weights_bytes + out_bytes) + (1 << 20))

    cost = pl.CostEstimate(
        flops=B * L * D + 2 * B * D * H + 2 * B * H,
        transcendentals=0,
        bytes_accessed=rows_bytes + weights_bytes + B * L * 4 + out_bytes,
    )

    grid_spec = pltpu.PrefetchScalarGridSpec(
        num_scalar_prefetch=1,
        grid=(1,),
        in_specs=[
            pl.BlockSpec(memory_space=pl.ANY),                   # table stays in HBM
            pl.BlockSpec(memory_space=pltpu.MemorySpace.VMEM),   # w1 (H, D)
            pl.BlockSpec(memory_space=pltpu.MemorySpace.VMEM),   # b1 (H, 1)
            pl.BlockSpec(memory_space=pltpu.MemorySpace.VMEM),   # w2 (H, 1)
            pl.BlockSpec(memory_space=pltpu.MemorySpace.VMEM),   # b2 (1, 1)
        ],
        out_specs=pl.BlockSpec((1, B), lambda i, ids_ref: (0, 0)),
        scratch_shapes=[
            pltpu.VMEM((L, B, D), jnp.float32),   # gathered rows (bag dim leading)
            pltpu.SemaphoreType.DMA((B,)),        # one DMA sem per bag
        ],
    )

    out_row = pl.pallas_call(
        _embedding_bag_mlp_kernel,
        out_shape=jax.ShapeDtypeStruct((1, B), jnp.float32),
        grid_spec=grid_spec,
        compiler_params=pltpu.CompilerParams(
            dimension_semantics=("arbitrary",),
            vmem_limit_bytes=int(vmem_limit),
        ),
        cost_estimate=cost,
    )(ids, emb_table, w1, b1_col, w2_col, b2_2d)

    return out_row.reshape(B, 1)


if __name__ == "__main__":
    # Shapes consistent with the module (EmbeddingBag vocab fixed at 10000).
    V = 10000          # num_embeddings
    D = 128            # embedding_dim
    H = 64             # output_dim of the intermediate Linear
    B, L = 8, 8        # batch of bags, fixed bag length (2-D EmbeddingBag input)

    key = jax.random.PRNGKey(0)
    k_emb, k_w1, k_b1, k_w2, k_b2, k_ids = jax.random.split(key, 6)

    emb_table = jax.random.normal(k_emb, (V, D), dtype=jnp.float32) * 0.02
    w1 = jax.random.normal(k_w1, (H, D), dtype=jnp.float32) * 0.05   # (out, in)
    b1 = jax.random.normal(k_b1, (H,), dtype=jnp.float32) * 0.05
    w2 = jax.random.normal(k_w2, (1, H), dtype=jnp.float32) * 0.05   # (out, in)
    b2 = jax.random.normal(k_b2, (1,), dtype=jnp.float32) * 0.05

    ids = jax.random.randint(k_ids, (B, L), 0, V, dtype=jnp.int32)

    out = embedding_bag_model(ids, emb_table, w1, b1, w2, b2)
    out = jax.block_until_ready(out)

    # pure-JAX reference (EmbeddingBag mode='mean' on fixed-length bags + 2 Linears)
    ref_embed = emb_table[ids].mean(axis=1)                 # (B, D)
    ref_h = ref_embed @ w1.T + b1                           # (B, H)
    ref = ref_h @ w2.T + b2                                 # (B, 1)

    assert out.shape == (B, 1)
    assert jnp.allclose(out, ref, atol=1e-4, rtol=1e-4), (out, ref)
    print("KERNEL_OK")
</pallas_src>

<mosaic_0001>
module attributes {stable_mosaic.version = 11 : i64} {
  func.func @_embedding_bag_mlp_kernel(%arg0: i32, %arg1: memref<8x8xi32, #tpu.memory_space<smem>>, %arg2: memref<10000x128xf32, #tpu.memory_space<any>>, %arg3: memref<64x128xf32, #tpu.memory_space<vmem>>, %arg4: memref<64x1xf32, #tpu.memory_space<vmem>>, %arg5: memref<64x1xf32, #tpu.memory_space<vmem>>, %arg6: memref<1x1xf32, #tpu.memory_space<vmem>>, %arg7: memref<1x8xf32, #tpu.memory_space<vmem>>, %arg8: memref<8x8x128xf32, #tpu.memory_space<vmem>>, %arg9: memref<8x!tpu.dma_semaphore, #tpu.memory_space<semaphore_mem>>) attributes {dimension_semantics = [#tpu.dimension_semantics<arbitrary>], iteration_bounds = array<i64: 1>, scalar_prefetch = 1 : i64, scratch_operands = 2 : i64, tpu.core_type = #tpu.core_type<tc>, window_params = [{}, {pipeline_mode = #tpu.pipeline_mode<synchronous>, transform_indices = @transform_1, window_bounds = array<i64: 64, 128>}, {pipeline_mode = #tpu.pipeline_mode<synchronous>, transform_indices = @transform_2, window_bounds = array<i64: 64, 1>}, {pipeline_mode = #tpu.pipeline_mode<synchronous>, transform_indices = @transform_3, window_bounds = array<i64: 64, 1>}, {pipeline_mode = #tpu.pipeline_mode<synchronous>, transform_indices = @transform_4, window_bounds = array<i64: 1, 1>}, {pipeline_mode = #tpu.pipeline_mode<synchronous>, transform_indices = @transform_5, window_bounds = array<i64: 1, 8>}]} {
    %c0 = arith.constant 0 : index
    %c0_0 = arith.constant 0 : index
    %0 = memref.load %arg1[%c0, %c0_0] : memref<8x8xi32, #tpu.memory_space<smem>>
    %c0_i32 = arith.constant 0 : i32
    %c0_i32_1 = arith.constant 0 : i32
    %c0_i32_2 = arith.constant 0 : i32
    %c0_i32_3 = arith.constant 0 : i32
    %1 = tpu.memref_slice %arg2[%0, %c0_i32_3] : memref<10000x128xf32, #tpu.memory_space<any>> -> memref<1x128xf32, #tpu.memory_space<any>>
    %2 = tpu.memref_squeeze %1 : memref<1x128xf32, #tpu.memory_space<any>> -> memref<128xf32, #tpu.memory_space<any>>
    %c0_i32_4 = arith.constant 0 : i32
    %3 = tpu.memref_slice %arg8[%c0_i32, %c0_i32_1, %c0_i32_4] : memref<8x8x128xf32, #tpu.memory_space<vmem>> -> memref<1x1x128xf32, #tpu.memory_space<vmem>>
    %4 = tpu.memref_squeeze %3 : memref<1x1x128xf32, #tpu.memory_space<vmem>> -> memref<128xf32, #tpu.memory_space<vmem>>
    %5 = tpu.memref_slice %arg9[%c0_i32_2] : memref<8x!tpu.dma_semaphore, #tpu.memory_space<semaphore_mem>> -> memref<1x!tpu.dma_semaphore, #tpu.memory_space<semaphore_mem>>
    %6 = tpu.memref_squeeze %5 : memref<1x!tpu.dma_semaphore, #tpu.memory_space<semaphore_mem>> -> memref<!tpu.dma_semaphore, #tpu.memory_space<semaphore_mem>>
    tpu.enqueue_dma source(%2 : memref<128xf32, #tpu.memory_space<any>>) target(%4 : memref<128xf32, #tpu.memory_space<vmem>>) target_semaphore(%6 : memref<!tpu.dma_semaphore, #tpu.memory_space<semaphore_mem>>)
    %c0_5 = arith.constant 0 : index
    %c1 = arith.constant 1 : index
    %7 = memref.load %arg1[%c0_5, %c1] : memref<8x8xi32, #tpu.memory_space<smem>>
    %c1_i32 = arith.constant 1 : i32
    %c0_i32_6 = arith.constant 0 : i32
    %c0_i32_7 = arith.constant 0 : i32
    %c0_i32_8 = arith.constant 0 : i32
    %8 = tpu.memref_slice %arg2[%7, %c0_i32_8] : memref<10000x128xf32, #tpu.memory_space<any>> -> memref<1x128xf32, #tpu.memory_space<any>>
    %9 = tpu.memref_squeeze %8 : memref<1x128xf32, #tpu.memory_space<any>> -> memref<128xf32, #tpu.memory_space<any>>
    %c0_i32_9 = arith.constant 0 : i32
    %10 = tpu.memref_slice %arg8[%c1_i32, %c0_i32_6, %c0_i32_9] : memref<8x8x128xf32, #tpu.memory_space<vmem>> -> memref<1x1x128xf32, #tpu.memory_space<vmem>>
    %11 = tpu.memref_squeeze %10 : memref<1x1x128xf32, #tpu.memory_space<vmem>> -> memref<128xf32, #tpu.memory_space<vmem>>
    %12 = tpu.memref_slice %arg9[%c0_i32_7] : memref<8x!tpu.dma_semaphore, #tpu.memory_space<semaphore_mem>> -> memref<1x!tpu.dma_semaphore, #tpu.memory_space<semaphore_mem>>
    %13 = tpu.memref_squeeze %12 : memref<1x!tpu.dma_semaphore, #tpu.memory_space<semaphore_mem>> -> memref<!tpu.dma_semaphore, #tpu.memory_space<semaphore_mem>>
    tpu.enqueue_dma source(%9 : memref<128xf32, #tpu.memory_space<any>>) target(%11 : memref<128xf32, #tpu.memory_space<vmem>>) target_semaphore(%13 : memref<!tpu.dma_semaphore, #tpu.memory_space<semaphore_mem>>)
    %c0_10 = arith.constant 0 : index
    %c2 = arith.constant 2 : index
    %14 = memref.load %arg1[%c0_10, %c2] : memref<8x8xi32, #tpu.memory_space<smem>>
    %c2_i32 = arith.constant 2 : i32
    %c0_i32_11 = arith.constant 0 : i32
    %c0_i32_12 = arith.constant 0 : i32
    %c0_i32_13 = arith.constant 0 : i32
    %15 = tpu.memref_slice %arg2[%14, %c0_i32_13] : memref<10000x128xf32, #tpu.memory_space<any>> -> memref<1x128xf32, #tpu.memory_space<any>>
    %16 = tpu.memref_squeeze %15 : memref<1x128xf32, #tpu.memory_space<any>> -> memref<128xf32, #tpu.memory_space<any>>
    %c0_i32_14 = arith.constant 0 : i32
    %17 = tpu.memref_slice %arg8[%c2_i32, %c0_i32_11, %c0_i32_14] : memref<8x8x128xf32, #tpu.memory_space<vmem>> -> memref<1x1x128xf32, #tpu.memory_space<vmem>>
    %18 = tpu.memref_squeeze %17 : memref<1x1x128xf32, #tpu.memory_space<vmem>> -> memref<128xf32, #tpu.memory_space<vmem>>
    %19 = tpu.memref_slice %arg9[%c0_i32_12] : memref<8x!tpu.dma_semaphore, #tpu.memory_space<semaphore_mem>> -> memref<1x!tpu.dma_semaphore, #tpu.memory_space<semaphore_mem>>
    %20 = tpu.memref_squeeze %19 : memref<1x!tpu.dma_semaphore, #tpu.memory_space<semaphore_mem>> -> memref<!tpu.dma_semaphore, #tpu.memory_space<semaphore_mem>>
    tpu.enqueue_dma source(%16 : memref<128xf32, #tpu.memory_space<any>>) target(%18 : memref<128xf32, #tpu.memory_space<vmem>>) target_semaphore(%20 : memref<!tpu.dma_semaphore, #tpu.memory_space<semaphore_mem>>)
    %c0_15 = arith.constant 0 : index
    %c3 = arith.constant 3 : index
    %21 = memref.load %arg1[%c0_15, %c3] : memref<8x8xi32, #tpu.memory_space<smem>>
    %c3_i32 = arith.constant 3 : i32
    %c0_i32_16 = arith.constant 0 : i32
    %c0_i32_17 = arith.constant 0 : i32
    %c0_i32_18 = arith.constant 0 : i32
    %22 = tpu.memref_slice %arg2[%21, %c0_i32_18] : memref<10000x128xf32, #tpu.memory_space<any>> -> memref<1x128xf32, #tpu.memory_space<any>>
    %23 = tpu.memref_squeeze %22 : memref<1x128xf32, #tpu.memory_space<any>> -> memref<128xf32, #tpu.memory_space<any>>
    %c0_i32_19 = arith.constant 0 : i32
    %24 = tpu.memref_slice %arg8[%c3_i32, %c0_i32_16, %c0_i32_19] : memref<8x8x128xf32, #tpu.memory_space<vmem>> -> memref<1x1x128xf32, #tpu.memory_space<vmem>>
    %25 = tpu.memref_squeeze %24 : memref<1x1x128xf32, #tpu.memory_space<vmem>> -> memref<128xf32, #tpu.memory_space<vmem>>
    %26 = tpu.memref_slice %arg9[%c0_i32_17] : memref<8x!tpu.dma_semaphore, #tpu.memory_space<semaphore_mem>> -> memref<1x!tpu.dma_semaphore, #tpu.memory_space<semaphore_mem>>
    %27 = tpu.memref_squeeze %26 : memref<1x!tpu.dma_semaphore, #tpu.memory_space<semaphore_mem>> -> memref<!tpu.dma_semaphore, #tpu.memory_space<semaphore_mem>>
    tpu.enqueue_dma source(%23 : memref<128xf32, #tpu.memory_space<any>>) target(%25 : memref<128xf32, #tpu.memory_space<vmem>>) target_semaphore(%27 : memref<!tpu.dma_semaphore, #tpu.memory_space<semaphore_mem>>)
    %c0_20 = arith.constant 0 : index
    %c4 = arith.constant 4 : index
    %28 = memref.load %arg1[%c0_20, %c4] : memref<8x8xi32, #tpu.memory_space<smem>>
    %c4_i32 = arith.constant 4 : i32
    %c0_i32_21 = arith.constant 0 : i32
    %c0_i32_22 = arith.constant 0 : i32
    %c0_i32_23 = arith.constant 0 : i32
    %29 = tpu.memref_slice %arg2[%28, %c0_i32_23] : memref<10000x128xf32, #tpu.memory_space<any>> -> memref<1x128xf32, #tpu.memory_space<any>>
    %30 = tpu.memref_squeeze %29 : memref<1x128xf32, #tpu.memory_space<any>> -> memref<128xf32, #tpu.memory_space<any>>
    %c0_i32_24 = arith.constant 0 : i32
    %31 = tpu.memref_slice %arg8[%c4_i32, %c0_i32_21, %c0_i32_24] : memref<8x8x128xf32, #tpu.memory_space<vmem>> -> memref<1x1x128xf32, #tpu.memory_space<vmem>>
    %32 = tpu.memref_squeeze %31 : memref<1x1x128xf32, #tpu.memory_space<vmem>> -> memref<128xf32, #tpu.memory_space<vmem>>
    %33 = tpu.memref_slice %arg9[%c0_i32_22] : memref<8x!tpu.dma_semaphore, #tpu.memory_space<semaphore_mem>> -> memref<1x!tpu.dma_semaphore, #tpu.memory_space<semaphore_mem>>
    %34 = tpu.memref_squeeze %33 : memref<1x!tpu.dma_semaphore, #tpu.memory_space<semaphore_mem>> -> memref<!tpu.dma_semaphore, #tpu.memory_space<semaphore_mem>>
    tpu.enqueue_dma source(%30 : memref<128xf32, #tpu.memory_space<any>>) target(%32 : memref<128xf32, #tpu.memory_space<vmem>>) target_semaphore(%34 : memref<!tpu.dma_semaphore, #tpu.memory_space<semaphore_mem>>)
    %c0_25 = arith.constant 0 : index
    %c5 = arith.constant 5 : index
    %35 = memref.load %arg1[%c0_25, %c5] : memref<8x8xi32, #tpu.memory_space<smem>>
    %c5_i32 = arith.constant 5 : i32
    %c0_i32_26 = arith.constant 0 : i32
    %c0_i32_27 = arith.constant 0 : i32
    %c0_i32_28 = arith.constant 0 : i32
    %36 = tpu.memref_slice %arg2[%35, %c0_i32_28] : memref<10000x128xf32, #tpu.memory_space<any>> -> memref<1x128xf32, #tpu.memory_space<any>>
    %37 = tpu.memref_squeeze %36 : memref<1x128xf32, #tpu.memory_space<any>> -> memref<128xf32, #tpu.memory_space<any>>
    %c0_i32_29 = arith.constant 0 : i32
    %38 = tpu.memref_slice %arg8[%c5_i32, %c0_i32_26, %c0_i32_29] : memref<8x8x128xf32, #tpu.memory_space<vmem>> -> memref<1x1x128xf32, #tpu.memory_space<vmem>>
    %39 = tpu.memref_squeeze %38 : memref<1x1x128xf32, #tpu.memory_space<vmem>> -> memref<128xf32, #tpu.memory_space<vmem>>
    %40 = tpu.memref_slice %arg9[%c0_i32_27] : memref<8x!tpu.dma_semaphore, #tpu.memory_space<semaphore_mem>> -> memref<1x!tpu.dma_semaphore, #tpu.memory_space<semaphore_mem>>
    %41 = tpu.memref_squeeze %40 : memref<1x!tpu.dma_semaphore, #tpu.memory_space<semaphore_mem>> -> memref<!tpu.dma_semaphore, #tpu.memory_space<semaphore_mem>>
    tpu.enqueue_dma source(%37 : memref<128xf32, #tpu.memory_space<any>>) target(%39 : memref<128xf32, #tpu.memory_space<vmem>>) target_semaphore(%41 : memref<!tpu.dma_semaphore, #tpu.memory_space<semaphore_mem>>)
    %c0_30 = arith.constant 0 : index
    %c6 = arith.constant 6 : index
    %42 = memref.load %arg1[%c0_30, %c6] : memref<8x8xi32, #tpu.memory_space<smem>>
    %c6_i32 = arith.constant 6 : i32
    %c0_i32_31 = arith.constant 0 : i32
    %c0_i32_32 = arith.constant 0 : i32
    %c0_i32_33 = arith.constant 0 : i32
    %43 = tpu.memref_slice %arg2[%42, %c0_i32_33] : memref<10000x128xf32, #tpu.memory_space<any>> -> memref<1x128xf32, #tpu.memory_space<any>>
    %44 = tpu.memref_squeeze %43 : memref<1x128xf32, #tpu.memory_space<any>> -> memref<128xf32, #tpu.memory_space<any>>
    %c0_i32_34 = arith.constant 0 : i32
    %45 = tpu.memref_slice %arg8[%c6_i32, %c0_i32_31, %c0_i32_34] : memref<8x8x128xf32, #tpu.memory_space<vmem>> -> memref<1x1x128xf32, #tpu.memory_space<vmem>>
    %46 = tpu.memref_squeeze %45 : memref<1x1x128xf32, #tpu.memory_space<vmem>> -> memref<128xf32, #tpu.memory_space<vmem>>
    %47 = tpu.memref_slice %arg9[%c0_i32_32] : memref<8x!tpu.dma_semaphore, #tpu.memory_space<semaphore_mem>> -> memref<1x!tpu.dma_semaphore, #tpu.memory_space<semaphore_mem>>
    %48 = tpu.memref_squeeze %47 : memref<1x!tpu.dma_semaphore, #tpu.memory_space<semaphore_mem>> -> memref<!tpu.dma_semaphore, #tpu.memory_space<semaphore_mem>>
    tpu.enqueue_dma source(%44 : memref<128xf32, #tpu.memory_space<any>>) target(%46 : memref<128xf32, #tpu.memory_space<vmem>>) target_semaphore(%48 : memref<!tpu.dma_semaphore, #tpu.memory_space<semaphore_mem>>)
    %c0_35 = arith.constant 0 : index
    %c7 = arith.constant 7 : index
    %49 = memref.load %arg1[%c0_35, %c7] : memref<8x8xi32, #tpu.memory_space<smem>>
    %c7_i32 = arith.constant 7 : i32
    %c0_i32_36 = arith.constant 0 : i32
    %c0_i32_37 = arith.constant 0 : i32
    %c0_i32_38 = arith.constant 0 : i32
    %50 = tpu.memref_slice %arg2[%49, %c0_i32_38] : memref<10000x128xf32, #tpu.memory_space<any>> -> memref<1x128xf32, #tpu.memory_space<any>>
    %51 = tpu.memref_squeeze %50 : memref<1x128xf32, #tpu.memory_space<any>> -> memref<128xf32, #tpu.memory_space<any>>
    %c0_i32_39 = arith.constant 0 : i32
    %52 = tpu.memref_slice %arg8[%c7_i32, %c0_i32_36, %c0_i32_39] : memref<8x8x128xf32, #tpu.memory_space<vmem>> -> memref<1x1x128xf32, #tpu.memory_space<vmem>>
    %53 = tpu.memref_squeeze %52 : memref<1x1x128xf32, #tpu.memory_space<vmem>> -> memref<128xf32, #tpu.memory_space<vmem>>
    %54 = tpu.memref_slice %arg9[%c0_i32_37] : memref<8x!tpu.dma_semaphore, #tpu.memory_space<semaphore_mem>> -> memref<1x!tpu.dma_semaphore, #tpu.memory_space<semaphore_mem>>
    %55 = tpu.memref_squeeze %54 : memref<1x!tpu.dma_semaphore, #tpu.memory_space<semaphore_mem>> -> memref<!tpu.dma_semaphore, #tpu.memory_space<semaphore_mem>>
    tpu.enqueue_dma source(%51 : memref<128xf32, #tpu.memory_space<any>>) target(%53 : memref<128xf32, #tpu.memory_space<vmem>>) target_semaphore(%55 : memref<!tpu.dma_semaphore, #tpu.memory_space<semaphore_mem>>)
    %c1_40 = arith.constant 1 : index
    %c0_41 = arith.constant 0 : index
    %56 = memref.load %arg1[%c1_40, %c0_41] : memref<8x8xi32, #tpu.memory_space<smem>>
    %c0_i32_42 = arith.constant 0 : i32
    %c1_i32_43 = arith.constant 1 : i32
    %c1_i32_44 = arith.constant 1 : i32
    %c0_i32_45 = arith.constant 0 : i32
    %57 = tpu.memref_slice %arg2[%56, %c0_i32_45] : memref<10000x128xf32, #tpu.memory_space<any>> -> memref<1x128xf32, #tpu.memory_space<any>>
    %58 = tpu.memref_squeeze %57 : memref<1x128xf32, #tpu.memory_space<any>> -> memref<128xf32, #tpu.memory_space<any>>
    %c0_i32_46 = arith.constant 0 : i32
    %59 = tpu.memref_slice %arg8[%c0_i32_42, %c1_i32_43, %c0_i32_46] : memref<8x8x128xf32, #tpu.memory_space<vmem>> -> memref<1x1x128xf32, #tpu.memory_space<vmem>>
    %60 = tpu.memref_squeeze %59 : memref<1x1x128xf32, #tpu.memory_space<vmem>> -> memref<128xf32, #tpu.memory_space<vmem>>
    %61 = tpu.memref_slice %arg9[%c1_i32_44] : memref<8x!tpu.dma_semaphore, #tpu.memory_space<semaphore_mem>> -> memref<1x!tpu.dma_semaphore, #tpu.memory_space<semaphore_mem>>
    %62 = tpu.memref_squeeze %61 : memref<1x!tpu.dma_semaphore, #tpu.memory_space<semaphore_mem>> -> memref<!tpu.dma_semaphore, #tpu.memory_space<semaphore_mem>>
    tpu.enqueue_dma source(%58 : memref<128xf32, #tpu.memory_space<any>>) target(%60 : memref<128xf32, #tpu.memory_space<vmem>>) target_semaphore(%62 : memref<!tpu.dma_semaphore, #tpu.memory_space<semaphore_mem>>)
    %c1_47 = arith.constant 1 : index
    %c1_48 = arith.constant 1 : index
    %63 = memref.load %arg1[%c1_47, %c1_48] : memref<8x8xi32, #tpu.memory_space<smem>>
    %c1_i32_49 = arith.constant 1 : i32
    %c1_i32_50 = arith.constant 1 : i32
    %c1_i32_51 = arith.constant 1 : i32
    %c0_i32_52 = arith.constant 0 : i32
    %64 = tpu.memref_slice %arg2[%63, %c0_i32_52] : memref<10000x128xf32, #tpu.memory_space<any>> -> memref<1x128xf32, #tpu.memory_space<any>>
    %65 = tpu.memref_squeeze %64 : memref<1x128xf32, #tpu.memory_space<any>> -> memref<128xf32, #tpu.memory_space<any>>
    %c0_i32_53 = arith.constant 0 : i32
    %66 = tpu.memref_slice %arg8[%c1_i32_49, %c1_i32_50, %c0_i32_53] : memref<8x8x128xf32, #tpu.memory_space<vmem>> -> memref<1x1x128xf32, #tpu.memory_space<vmem>>
    %67 = tpu.memref_squeeze %66 : memref<1x1x128xf32, #tpu.memory_space<vmem>> -> memref<128xf32, #tpu.memory_space<vmem>>
    %68 = tpu.memref_slice %arg9[%c1_i32_51] : memref<8x!tpu.dma_semaphore, #tpu.memory_space<semaphore_mem>> -> memref<1x!tpu.dma_semaphore, #tpu.memory_space<semaphore_mem>>
    %69 = tpu.memref_squeeze %68 : memref<1x!tpu.dma_semaphore, #tpu.memory_space<semaphore_mem>> -> memref<!tpu.dma_semaphore, #tpu.memory_space<semaphore_mem>>
    tpu.enqueue_dma source(%65 : memref<128xf32, #tpu.memory_space<any>>) target(%67 : memref<128xf32, #tpu.memory_space<vmem>>) target_semaphore(%69 : memref<!tpu.dma_semaphore, #tpu.memory_space<semaphore_mem>>)
    %c1_54 = arith.constant 1 : index
    %c2_55 = arith.constant 2 : index
    %70 = memref.load %arg1[%c1_54, %c2_55] : memref<8x8xi32, #tpu.memory_space<smem>>
    %c2_i32_56 = arith.constant 2 : i32
    %c1_i32_57 = arith.constant 1 : i32
    %c1_i32_58 = arith.constant 1 : i32
    %c0_i32_59 = arith.constant 0 : i32
    %71 = tpu.memref_slice %arg2[%70, %c0_i32_59] : memref<10000x128xf32, #tpu.memory_space<any>> -> memref<1x128xf32, #tpu.memory_space<any>>
    %72 = tpu.memref_squeeze %71 : memref<1x128xf32, #tpu.memory_space<any>> -> memref<128xf32, #tpu.memory_space<any>>
    %c0_i32_60 = arith.constant 0 : i32
    %73 = tpu.memref_slice %arg8[%c2_i32_56, %c1_i32_57, %c0_i32_60] : memref<8x8x128xf32, #tpu.memory_space<vmem>> -> memref<1x1x128xf32, #tpu.memory_space<vmem>>
    %74 = tpu.memref_squeeze %73 : memref<1x1x128xf32, #tpu.memory_space<vmem>> -> memref<128xf32, #tpu.memory_space<vmem>>
    %75 = tpu.memref_slice %arg9[%c1_i32_58] : memref<8x!tpu.dma_semaphore, #tpu.memory_space<semaphore_mem>> -> memref<1x!tpu.dma_semaphore, #tpu.memory_space<semaphore_mem>>
    %76 = tpu.memref_squeeze %75 : memref<1x!tpu.dma_semaphore, #tpu.memory_space<semaphore_mem>> -> memref<!tpu.dma_semaphore, #tpu.memory_space<semaphore_mem>>
    tpu.enqueue_dma source(%72 : memref<128xf32, #tpu.memory_space<any>>) target(%74 : memref<128xf32, #tpu.memory_space<vmem>>) target_semaphore(%76 : memref<!tpu.dma_semaphore, #tpu.memory_space<semaphore_mem>>)
    %c1_61 = arith.constant 1 : index
    %c3_62 = arith.constant 3 : index
    %77 = memref.load %arg1[%c1_61, %c3_62] : memref<8x8xi32, #tpu.memory_space<smem>>
    %c3_i32_63 = arith.constant 3 : i32
    %c1_i32_64 = arith.constant 1 : i32
    %c1_i32_65 = arith.constant 1 : i32
    %c0_i32_66 = arith.constant 0 : i32
    %78 = tpu.memref_slice %arg2[%77, %c0_i32_66] : memref<10000x128xf32, #tpu.memory_space<any>> -> memref<1x128xf32, #tpu.memory_space<any>>
    %79 = tpu.memref_squeeze %78 : memref<1x128xf32, #tpu.memory_space<any>> -> memref<128xf32, #tpu.memory_space<any>>
    %c0_i32_67 = arith.constant 0 : i32
    %80 = tpu.memref_slice %arg8[%c3_i32_63, %c1_i32_64, %c0_i32_67] : memref<8x8x128xf32, #tpu.memory_space<vmem>> -> memref<1x1x128xf32, #tpu.memory_space<vmem>>
    %81 = tpu.memref_squeeze %80 : memref<1x1x128xf32, #tpu.memory_space<vmem>> -> memref<128xf32, #tpu.memory_space<vmem>>
    %82 = tpu.memref_slice %arg9[%c1_i32_65] : memref<8x!tpu.dma_semaphore, #tpu.memory_space<semaphore_mem>> -> memref<1x!tpu.dma_semaphore, #tpu.memory_space<semaphore_mem>>
    %83 = tpu.memref_squeeze %82 : memref<1x!tpu.dma_semaphore, #tpu.memory_space<semaphore_mem>> -> memref<!tpu.dma_semaphore, #tpu.memory_space<semaphore_mem>>
    tpu.enqueue_dma source(%79 : memref<128xf32, #tpu.memory_space<any>>) target(%81 : memref<128xf32, #tpu.memory_space<vmem>>) target_semaphore(%83 : memref<!tpu.dma_semaphore, #tpu.memory_space<semaphore_mem>>)
    %c1_68 = arith.constant 1 : index
    %c4_69 = arith.constant 4 : index
    %84 = memref.load %arg1[%c1_68, %c4_69] : memref<8x8xi32, #tpu.memory_space<smem>>
    %c4_i32_70 = arith.constant 4 : i32
    %c1_i32_71 = arith.constant 1 : i32
    %c1_i32_72 = arith.constant 1 : i32
    %c0_i32_73 = arith.constant 0 : i32
    %85 = tpu.memref_slice %arg2[%84, %c0_i32_73] : memref<10000x128xf32, #tpu.memory_space<any>> -> memref<1x128xf32, #tpu.memory_space<any>>
    %86 = tpu.memref_squeeze %85 : memref<1x128xf32, #tpu.memory_space<any>> -> memref<128xf32, #tpu.memory_space<any>>
    %c0_i32_74 = arith.constant 0 : i32
    %87 = tpu.memref_slice %arg8[%c4_i32_70, %c1_i32_71, %c0_i32_74] : memref<8x8x128xf32, #tpu.memory_space<vmem>> -> memref<1x1x128xf32, #tpu.memory_space<vmem>>
    %88 = tpu.memref_squeeze %87 : memref<1x1x128xf32, #tpu.memory_space<vmem>> -> memref<128xf32, #tpu.memory_space<vmem>>
    %89 = tpu.memref_slice %arg9[%c1_i32_72] : memref<8x!tpu.dma_semaphore, #tpu.memory_space<semaphore_mem>> -> memref<1x!tpu.dma_semaphore, #tpu.memory_space<semaphore_mem>>
    %90 = tpu.memref_squeeze %89 : memref<1x!tpu.dma_semaphore, #tpu.memory_space<semaphore_mem>> -> memref<!tpu.dma_semaphore, #tpu.memory_space<semaphore_mem>>
    tpu.enqueue_dma source(%86 : memref<128xf32, #tpu.memory_space<any>>) target(%88 : memref<128xf32, #tpu.memory_space<vmem>>) target_semaphore(%90 : memref<!tpu.dma_semaphore, #tpu.memory_space<semaphore_mem>>)
    %c1_75 = arith.constant 1 : index
    %c5_76 = arith.constant 5 : index
    %91 = memref.load %arg1[%c1_75, %c5_76] : memref<8x8xi32, #tpu.memory_space<smem>>
    %c5_i32_77 = arith.constant 5 : i32
    %c1_i32_78 = arith.constant 1 : i32
    %c1_i32_79 = arith.constant 1 : i32
    %c0_i32_80 = arith.constant 0 : i32
    %92 = tpu.memref_slice %arg2[%91, %c0_i32_80] : memref<10000x128xf32, #tpu.memory_space<any>> -> memref<1x128xf32, #tpu.memory_space<any>>
    %93 = tpu.memref_squeeze %92 : memref<1x128xf32, #tpu.memory_space<any>> -> memref<128xf32, #tpu.memory_space<any>>
    %c0_i32_81 = arith.constant 0 : i32
    %94 = tpu.memref_slice %arg8[%c5_i32_77, %c1_i32_78, %c0_i32_81] : memref<8x8x128xf32, #tpu.memory_space<vmem>> -> memref<1x1x128xf32, #tpu.memory_space<vmem>>
    %95 = tpu.memref_squeeze %94 : memref<1x1x128xf32, #tpu.memory_space<vmem>> -> memref<128xf32, #tpu.memory_space<vmem>>
    %96 = tpu.memref_slice %arg9[%c1_i32_79] : memref<8x!tpu.dma_semaphore, #tpu.memory_space<semaphore_mem>> -> memref<1x!tpu.dma_semaphore, #tpu.memory_space<semaphore_mem>>
    %97 = tpu.memref_squeeze %96 : memref<1x!tpu.dma_semaphore, #tpu.memory_space<semaphore_mem>> -> memref<!tpu.dma_semaphore, #tpu.memory_space<semaphore_mem>>
    tpu.enqueue_dma source(%93 : memref<128xf32, #tpu.memory_space<any>>) target(%95 : memref<128xf32, #tpu.memory_space<vmem>>) target_semaphore(%97 : memref<!tpu.dma_semaphore, #tpu.memory_space<semaphore_mem>>)
    %c1_82 = arith.constant 1 : index
    %c6_83 = arith.constant 6 : index
    %98 = memref.load %arg1[%c1_82, %c6_83] : memref<8x8xi32, #tpu.memory_space<smem>>
    %c6_i32_84 = arith.constant 6 : i32
    %c1_i32_85 = arith.constant 1 : i32
    %c1_i32_86 = arith.constant 1 : i32
    %c0_i32_87 = arith.constant 0 : i32
    %99 = tpu.memref_slice %arg2[%98, %c0_i32_87] : memref<10000x128xf32, #tpu.memory_space<any>> -> memref<1x128xf32, #tpu.memory_space<any>>
    %100 = tpu.memref_squeeze %99 : memref<1x128xf32, #tpu.memory_space<any>> -> memref<128xf32, #tpu.memory_space<any>>
    %c0_i32_88 = arith.constant 0 : i32
    %101 = tpu.memref_slice %arg8[%c6_i32_84, %c1_i32_85, %c0_i32_88] : memref<8x8x128xf32, #tpu.memory_space<vmem>> -> memref<1x1x128xf32, #tpu.memory_space<vmem>>
    %102 = tpu.memref_squeeze %101 : memref<1x1x128xf32, #tpu.memory_space<vmem>> -> memref<128xf32, #tpu.memory_space<vmem>>
    %103 = tpu.memref_slice %arg9[%c1_i32_86] : memref<8x!tpu.dma_semaphore, #tpu.memory_space<semaphore_mem>> -> memref<1x!tpu.dma_semaphore, #tpu.memory_space<semaphore_mem>>
    %104 = tpu.memref_squeeze %103 : memref<1x!tpu.dma_semaphore, #tpu.memory_space<semaphore_mem>> -> memref<!tpu.dma_semaphore, #tpu.memory_space<semaphore_mem>>
    tpu.enqueue_dma source(%100 : memref<128xf32, #tpu.memory_space<any>>) target(%102 : memref<128xf32, #tpu.memory_space<vmem>>) target_semaphore(%104 : memref<!tpu.dma_semaphore, #tpu.memory_space<semaphore_mem>>)
    %c1_89 = arith.constant 1 : index
    %c7_90 = arith.constant 7 : index
    %105 = memref.load %arg1[%c1_89, %c7_90] : memref<8x8xi32, #tpu.memory_space<smem>>
    %c7_i32_91 = arith.constant 7 : i32
    %c1_i32_92 = arith.constant 1 : i32
    %c1_i32_93 = arith.constant 1 : i32
    %c0_i32_94 = arith.constant 0 : i32
    %106 = tpu.memref_slice %arg2[%105, %c0_i32_94] : memref<10000x128xf32, #tpu.memory_space<any>> -> memref<1x128xf32, #tpu.memory_space<any>>
    %107 = tpu.memref_squeeze %106 : memref<1x128xf32, #tpu.memory_space<any>> -> memref<128xf32, #tpu.memory_space<any>>
    %c0_i32_95 = arith.constant 0 : i32
    %108 = tpu.memref_slice %arg8[%c7_i32_91, %c1_i32_92, %c0_i32_95] : memref<8x8x128xf32, #tpu.memory_space<vmem>> -> memref<1x1x128xf32, #tpu.memory_space<vmem>>
    %109 = tpu.memref_squeeze %108 : memref<1x1x128xf32, #tpu.memory_space<vmem>> -> memref<128xf32, #tpu.memory_space<vmem>>
    %110 = tpu.memref_slice %arg9[%c1_i32_93] : memref<8x!tpu.dma_semaphore, #tpu.memory_space<semaphore_mem>> -> memref<1x!tpu.dma_semaphore, #tpu.memory_space<semaphore_mem>>
    %111 = tpu.memref_squeeze %110 : memref<1x!tpu.dma_semaphore, #tpu.memory_space<semaphore_mem>> -> memref<!tpu.dma_semaphore, #tpu.memory_space<semaphore_mem>>
    tpu.enqueue_dma source(%107 : memref<128xf32, #tpu.memory_space<any>>) target(%109 : memref<128xf32, #tpu.memory_space<vmem>>) target_semaphore(%111 : memref<!tpu.dma_semaphore, #tpu.memory_space<semaphore_mem>>)
    %c2_96 = arith.constant 2 : index
    %c0_97 = arith.constant 0 : index
    %112 = memref.load %arg1[%c2_96, %c0_97] : memref<8x8xi32, #tpu.memory_space<smem>>
    %c0_i32_98 = arith.constant 0 : i32
    %c2_i32_99 = arith.constant 2 : i32
    %c2_i32_100 = arith.constant 2 : i32
    %c0_i32_101 = arith.constant 0 : i32
    %113 = tpu.memref_slice %arg2[%112, %c0_i32_101] : memref<10000x128xf32, #tpu.memory_space<any>> -> memref<1x128xf32, #tpu.memory_space<any>>
    %114 = tpu.memref_squeeze %113 : memref<1x128xf32, #tpu.memory_space<any>> -> memref<128xf32, #tpu.memory_space<any>>
    %c0_i32_102 = arith.constant 0 : i32
    %115 = tpu.memref_slice %arg8[%c0_i32_98, %c2_i32_99, %c0_i32_102] : memref<8x8x128xf32, #tpu.memory_space<vmem>> -> memref<1x1x128xf32, #tpu.memory_space<vmem>>
    %116 = tpu.memref_squeeze %115 : memref<1x1x128xf32, #tpu.memory_space<vmem>> -> memref<128xf32, #tpu.memory_space<vmem>>
    %117 = tpu.memref_slice %arg9[%c2_i32_100] : memref<8x!tpu.dma_semaphore, #tpu.memory_space<semaphore_mem>> -> memref<1x!tpu.dma_semaphore, #tpu.memory_space<semaphore_mem>>
    %118 = tpu.memref_squeeze %117 : memref<1x!tpu.dma_semaphore, #tpu.memory_space<semaphore_mem>> -> memref<!tpu.dma_semaphore, #tpu.memory_space<semaphore_mem>>
    tpu.enqueue_dma source(%114 : memref<128xf32, #tpu.memory_space<any>>) target(%116 : memref<128xf32, #tpu.memory_space<vmem>>) target_semaphore(%118 : memref<!tpu.dma_semaphore, #tpu.memory_space<semaphore_mem>>)
    %c2_103 = arith.constant 2 : index
    %c1_104 = arith.constant 1 : index
    %119 = memref.load %arg1[%c2_103, %c1_104] : memref<8x8xi32, #tpu.memory_space<smem>>
    %c1_i32_105 = arith.constant 1 : i32
    %c2_i32_106 = arith.constant 2 : i32
    %c2_i32_107 = arith.constant 2 : i32
    %c0_i32_108 = arith.constant 0 : i32
    %120 = tpu.memref_slice %arg2[%119, %c0_i32_108] : memref<10000x128xf32, #tpu.memory_space<any>> -> memref<1x128xf32, #tpu.memory_space<any>>
    %121 = tpu.memref_squeeze %120 : memref<1x128xf32, #tpu.memory_space<any>> -> memref<128xf32, #tpu.memory_space<any>>
    %c0_i32_109 = arith.constant 0 : i32
    %122 = tpu.memref_slice %arg8[%c1_i32_105, %c2_i32_106, %c0_i32_109] : memref<8x8x128xf32, #tpu.memory_space<vmem>> -> memref<1x1x128xf32, #tpu.memory_space<vmem>>
    %123 = tpu.memref_squeeze %122 : memref<1x1x128xf32, #tpu.memory_space<vmem>> -> memref<128xf32, #tpu.memory_space<vmem>>
    %124 = tpu.memref_slice %arg9[%c2_i32_107] : memref<8x!tpu.dma_semaphore, #tpu.memory_space<semaphore_mem>> -> memref<1x!tpu.dma_semaphore, #tpu.memory_space<semaphore_mem>>
    %125 = tpu.memref_squeeze %124 : memref<1x!tpu.dma_semaphore, #tpu.memory_space<semaphore_mem>> -> memref<!tpu.dma_semaphore, #tpu.memory_space<semaphore_mem>>
    tpu.enqueue_dma source(%121 : memref<128xf32, #tpu.memory_space<any>>) target(%123 : memref<128xf32, #tpu.memory_space<vmem>>) target_semaphore(%125 : memref<!tpu.dma_semaphore, #tpu.memory_space<semaphore_mem>>)
    %c2_110 = arith.constant 2 : index
    %c2_111 = arith.constant 2 : index
    %126 = memref.load %arg1[%c2_110, %c2_111] : memref<8x8xi32, #tpu.memory_space<smem>>
    %c2_i32_112 = arith.constant 2 : i32
    %c2_i32_113 = arith.constant 2 : i32
    %c2_i32_114 = arith.constant 2 : i32
    %c0_i32_115 = arith.constant 0 : i32
    %127 = tpu.memref_slice %arg2[%126, %c0_i32_115] : memref<10000x128xf32, #tpu.memory_space<any>> -> memref<1x128xf32, #tpu.memory_space<any>>
    %128 = tpu.memref_squeeze %127 : memref<1x128xf32, #tpu.memory_space<any>> -> memref<128xf32, #tpu.memory_space<any>>
    %c0_i32_116 = arith.constant 0 : i32
    %129 = tpu.memref_slice %arg8[%c2_i32_112, %c2_i32_113, %c0_i32_116] : memref<8x8x128xf32, #tpu.memory_space<vmem>> -> memref<1x1x128xf32, #tpu.memory_space<vmem>>
    %130 = tpu.memref_squeeze %129 : memref<1x1x128xf32, #tpu.memory_space<vmem>> -> memref<128xf32, #tpu.memory_space<vmem>>
    %131 = tpu.memref_slice %arg9[%c2_i32_114] : memref<8x!tpu.dma_semaphore, #tpu.memory_space<semaphore_mem>> -> memref<1x!tpu.dma_semaphore, #tpu.memory_space<semaphore_mem>>
    %132 = tpu.memref_squeeze %131 : memref<1x!tpu.dma_semaphore, #tpu.memory_space<semaphore_mem>> -> memref<!tpu.dma_semaphore, #tpu.memory_space<semaphore_mem>>
    tpu.enqueue_dma source(%128 : memref<128xf32, #tpu.memory_space<any>>) target(%130 : memref<128xf32, #tpu.memory_space<vmem>>) target_semaphore(%132 : memref<!tpu.dma_semaphore, #tpu.memory_space<semaphore_mem>>)
    %c2_117 = arith.constant 2 : index
    %c3_118 = arith.constant 3 : index
    %133 = memref.load %arg1[%c2_117, %c3_118] : memref<8x8xi32, #tpu.memory_space<smem>>
    %c3_i32_119 = arith.constant 3 : i32
    %c2_i32_120 = arith.constant 2 : i32
    %c2_i32_121 = arith.constant 2 : i32
    %c0_i32_122 = arith.constant 0 : i32
    %134 = tpu.memref_slice %arg2[%133, %c0_i32_122] : memref<10000x128xf32, #tpu.memory_space<any>> -> memref<1x128xf32, #tpu.memory_space<any>>
    %135 = tpu.memref_squeeze %134 : memref<1x128xf32, #tpu.memory_space<any>> -> memref<128xf32, #tpu.memory_space<any>>
    %c0_i32_123 = arith.constant 0 : i32
    %136 = tpu.memref_slice %arg8[%c3_i32_119, %c2_i32_120, %c0_i32_123] : memref<8x8x128xf32, #tpu.memory_space<vmem>> -> memref<1x1x128xf32, #tpu.memory_space<vmem>>
    %137 = tpu.memref_squeeze %136 : memref<1x1x128xf32, #tpu.memory_space<vmem>> -> memref<128xf32, #tpu.memory_space<vmem>>
    %138 = tpu.memref_slice %arg9[%c2_i32_121] : memref<8x!tpu.dma_semaphore, #tpu.memory_space<semaphore_mem>> -> memref<1x!tpu.dma_semaphore, #tpu.memory_space<semaphore_mem>>
    %139 = tpu.memref_squeeze %138 : memref<1x!tpu.dma_semaphore, #tpu.memory_space<semaphore_mem>> -> memref<!tpu.dma_semaphore, #tpu.memory_space<semaphore_mem>>
    tpu.enqueue_dma source(%135 : memref<128xf32, #tpu.memory_space<any>>) target(%137 : memref<128xf32, #tpu.memory_space<vmem>>) target_semaphore(%139 : memref<!tpu.dma_semaphore, #tpu.memory_space<semaphore_mem>>)
    %c2_124 = arith.constant 2 : index
    %c4_125 = arith.constant 4 : index
    %140 = memref.load %arg1[%c2_124, %c4_125] : memref<8x8xi32, #tpu.memory_space<smem>>
    %c4_i32_126 = arith.constant 4 : i32
    %c2_i32_127 = arith.constant 2 : i32
    %c2_i32_128 = arith.constant 2 : i32
    %c0_i32_129 = arith.constant 0 : i32
    %141 = tpu.memref_slice %arg2[%140, %c0_i32_129] : memref<10000x128xf32, #tpu.memory_space<any>> -> memref<1x128xf32, #tpu.memory_space<any>>
    %142 = tpu.memref_squeeze %141 : memref<1x128xf32, #tpu.memory_space<any>> -> memref<128xf32, #tpu.memory_space<any>>
    %c0_i32_130 = arith.constant 0 : i32
    %143 = tpu.memref_slice %arg8[%c4_i32_126, %c2_i32_127, %c0_i32_130] : memref<8x8x128xf32, #tpu.memory_space<vmem>> -> memref<1x1x128xf32, #tpu.memory_space<vmem>>
    %144 = tpu.memref_squeeze %143 : memref<1x1x128xf32, #tpu.memory_space<vmem>> -> memref<128xf32, #tpu.memory_space<vmem>>
    %145 = tpu.memref_slice %arg9[%c2_i32_128] : memref<8x!tpu.dma_semaphore, #tpu.memory_space<semaphore_mem>> -> memref<1x!tpu.dma_semaphore, #tpu.memory_space<semaphore_mem>>
    %146 = tpu.memref_squeeze %145 : memref<1x!tpu.dma_semaphore, #tpu.memory_space<semaphore_mem>> -> memref<!tpu.dma_semaphore, #tpu.memory_space<semaphore_mem>>
    tpu.enqueue_dma source(%142 : memref<128xf32, #tpu.memory_space<any>>) target(%144 : memref<128xf32, #tpu.memory_space<vmem>>) target_semaphore(%146 : memref<!tpu.dma_semaphore, #tpu.memory_space<semaphore_mem>>)
    %c2_131 = arith.constant 2 : index
    %c5_132 = arith.constant 5 : index
    %147 = memref.load %arg1[%c2_131, %c5_132] : memref<8x8xi32, #tpu.memory_space<smem>>
    %c5_i32_133 = arith.constant 5 : i32
    %c2_i32_134 = arith.constant 2 : i32
    %c2_i32_135 = arith.constant 2 : i32
    %c0_i32_136 = arith.constant 0 : i32
    %148 = tpu.memref_slice %arg2[%147, %c0_i32_136] : memref<10000x128xf32, #tpu.memory_space<any>> -> memref<1x128xf32, #tpu.memory_space<any>>
    %149 = tpu.memref_squeeze %148 : memref<1x128xf32, #tpu.memory_space<any>> -> memref<128xf32, #tpu.memory_space<any>>
    %c0_i32_137 = arith.constant 0 : i32
    %150 = tpu.memref_slice %arg8[%c5_i32_133, %c2_i32_134, %c0_i32_137] : memref<8x8x128xf32, #tpu.memory_space<vmem>> -> memref<1x1x128xf32, #tpu.memory_space<vmem>>
    %151 = tpu.memref_squeeze %150 : memref<1x1x128xf32, #tpu.memory_space<vmem>> -> memref<128xf32, #tpu.memory_space<vmem>>
    %152 = tpu.memref_slice %arg9[%c2_i32_135] : memref<8x!tpu.dma_semaphore, #tpu.memory_space<semaphore_mem>> -> memref<1x!tpu.dma_semaphore, #tpu.memory_space<semaphore_mem>>
    %153 = tpu.memref_squeeze %152 : memref<1x!tpu.dma_semaphore, #tpu.memory_space<semaphore_mem>> -> memref<!tpu.dma_semaphore, #tpu.memory_space<semaphore_mem>>
    tpu.enqueue_dma source(%149 : memref<128xf32, #tpu.memory_space<any>>) target(%151 : memref<128xf32, #tpu.memory_space<vmem>>) target_semaphore(%153 : memref<!tpu.dma_semaphore, #tpu.memory_space<semaphore_mem>>)
    %c2_138 = arith.constant 2 : index
    %c6_139 = arith.constant 6 : index
    %154 = memref.load %arg1[%c2_138, %c6_139] : memref<8x8xi32, #tpu.memory_space<smem>>
    %c6_i32_140 = arith.constant 6 : i32
    %c2_i32_141 = arith.constant 2 : i32
    %c2_i32_142 = arith.constant 2 : i32
    %c0_i32_143 = arith.constant 0 : i32
    %155 = tpu.memref_slice %arg2[%154, %c0_i32_143] : memref<10000x128xf32, #tpu.memory_space<any>> -> memref<1x128xf32, #tpu.memory_space<any>>
    %156 = tpu.memref_squeeze %155 : memref<1x128xf32, #tpu.memory_space<any>> -> memref<128xf32, #tpu.memory_space<any>>
    %c0_i32_144 = arith.constant 0 : i32
    %157 = tpu.memref_slice %arg8[%c6_i32_140, %c2_i32_141, %c0_i32_144] : memref<8x8x128xf32, #tpu.memory_space<vmem>> -> memref<1x1x128xf32, #tpu.memory_space<vmem>>
    %158 = tpu.memref_squeeze %157 : memref<1x1x128xf32, #tpu.memory_space<vmem>> -> memref<128xf32, #tpu.memory_space<vmem>>
    %159 = tpu.memref_slice %arg9[%c2_i32_142] : memref<8x!tpu.dma_semaphore, #tpu.memory_space<semaphore_mem>> -> memref<1x!tpu.dma_semaphore, #tpu.memory_space<semaphore_mem>>
    %160 = tpu.memref_squeeze %159 : memref<1x!tpu.dma_semaphore, #tpu.memory_space<semaphore_mem>> -> memref<!tpu.dma_semaphore, #tpu.memory_space<semaphore_mem>>
    tpu.enqueue_dma source(%156 : memref<128xf32, #tpu.memory_space<any>>) target(%158 : memref<128xf32, #tpu.memory_space<vmem>>) target_semaphore(%160 : memref<!tpu.dma_semaphore, #tpu.memory_space<semaphore_mem>>)
    %c2_145 = arith.constant 2 : index
    %c7_146 = arith.constant 7 : index
    %161 = memref.load %arg1[%c2_145, %c7_146] : memref<8x8xi32, #tpu.memory_space<smem>>
    %c7_i32_147 = arith.constant 7 : i32
    %c2_i32_148 = arith.constant 2 : i32
    %c2_i32_149 = arith.constant 2 : i32
    %c0_i32_150 = arith.constant 0 : i32
    %162 = tpu.memref_slice %arg2[%161, %c0_i32_150] : memref<10000x128xf32, #tpu.memory_space<any>> -> memref<1x128xf32, #tpu.memory_space<any>>
    %163 = tpu.memref_squeeze %162 : memref<1x128xf32, #tpu.memory_space<any>> -> memref<128xf32, #tpu.memory_space<any>>
    %c0_i32_151 = arith.constant 0 : i32
    %164 = tpu.memref_slice %arg8[%c7_i32_147, %c2_i32_148, %c0_i32_151] : memref<8x8x128xf32, #tpu.memory_space<vmem>> -> memref<1x1x128xf32, #tpu.memory_space<vmem>>
    %165 = tpu.memref_squeeze %164 : memref<1x1x128xf32, #tpu.memory_space<vmem>> -> memref<128xf32, #tpu.memory_space<vmem>>
    %166 = tpu.memref_slice %arg9[%c2_i32_149] : memref<8x!tpu.dma_semaphore, #tpu.memory_space<semaphore_mem>> -> memref<1x!tpu.dma_semaphore, #tpu.memory_space<semaphore_mem>>
    %167 = tpu.memref_squeeze %166 : memref<1x!tpu.dma_semaphore, #tpu.memory_space<semaphore_mem>> -> memref<!tpu.dma_semaphore, #tpu.memory_space<semaphore_mem>>
    tpu.enqueue_dma source(%163 : memref<128xf32, #tpu.memory_space<any>>) target(%165 : memref<128xf32, #tpu.memory_space<vmem>>) target_semaphore(%167 : memref<!tpu.dma_semaphore, #tpu.memory_space<semaphore_mem>>)
    %c3_152 = arith.constant 3 : index
    %c0_153 = arith.constant 0 : index
    %168 = memref.load %arg1[%c3_152, %c0_153] : memref<8x8xi32, #tpu.memory_space<smem>>
    %c0_i32_154 = arith.constant 0 : i32
    %c3_i32_155 = arith.constant 3 : i32
    %c3_i32_156 = arith.constant 3 : i32
    %c0_i32_157 = arith.constant 0 : i32
    %169 = tpu.memref_slice %arg2[%168, %c0_i32_157] : memref<10000x128xf32, #tpu.memory_space<any>> -> memref<1x128xf32, #tpu.memory_space<any>>
    %170 = tpu.memref_squeeze %169 : memref<1x128xf32, #tpu.memory_space<any>> -> memref<128xf32, #tpu.memory_space<any>>
    %c0_i32_158 = arith.constant 0 : i32
    %171 = tpu.memref_slice %arg8[%c0_i32_154, %c3_i32_155, %c0_i32_158] : memref<8x8x128xf32, #tpu.memory_space<vmem>> -> memref<1x1x128xf32, #tpu.memory_space<vmem>>
    %172 = tpu.memref_squeeze %171 : memref<1x1x128xf32, #tpu.memory_space<vmem>> -> memref<128xf32, #tpu.memory_space<vmem>>
    %173 = tpu.memref_slice %arg9[%c3_i32_156] : memref<8x!tpu.dma_semaphore, #tpu.memory_space<semaphore_mem>> -> memref<1x!tpu.dma_semaphore, #tpu.memory_space<semaphore_mem>>
    %174 = tpu.memref_squeeze %173 : memref<1x!tpu.dma_semaphore, #tpu.memory_space<semaphore_mem>> -> memref<!tpu.dma_semaphore, #tpu.memory_space<semaphore_mem>>
    tpu.enqueue_dma source(%170 : memref<128xf32, #tpu.memory_space<any>>) target(%172 : memref<128xf32, #tpu.memory_space<vmem>>) target_semaphore(%174 : memref<!tpu.dma_semaphore, #tpu.memory_space<semaphore_mem>>)
    %c3_159 = arith.constant 3 : index
    %c1_160 = arith.constant 1 : index
    %175 = memref.load %arg1[%c3_159, %c1_160] : memref<8x8xi32, #tpu.memory_space<smem>>
    %c1_i32_161 = arith.constant 1 : i32
    %c3_i32_162 = arith.constant 3 : i32
    %c3_i32_163 = arith.constant 3 : i32
    %c0_i32_164 = arith.constant 0 : i32
    %176 = tpu.memref_slice %arg2[%175, %c0_i32_164] : memref<10000x128xf32, #tpu.memory_space<any>> -> memref<1x128xf32, #tpu.memory_space<any>>
    %177 = tpu.memref_squeeze %176 : memref<1x128xf32, #tpu.memory_space<any>> -> memref<128xf32, #tpu.memory_space<any>>
    %c0_i32_165 = arith.constant 0 : i32
    %178 = tpu.memref_slice %arg8[%c1_i32_161, %c3_i32_162, %c0_i32_165] : memref<8x8x128xf32, #tpu.memory_space<vmem>> -> memref<1x1x128xf32, #tpu.memory_space<vmem>>
    %179 = tpu.memref_squeeze %178 : memref<1x1x128xf32, #tpu.memory_space<vmem>> -> memref<128xf32, #tpu.memory_space<vmem>>
    %180 = tpu.memref_slice %arg9[%c3_i32_163] : memref<8x!tpu.dma_semaphore, #tpu.memory_space<semaphore_mem>> -> memref<1x!tpu.dma_semaphore, #tpu.memory_space<semaphore_mem>>
    %181 = tpu.memref_squeeze %180 : memref<1x!tpu.dma_semaphore, #tpu.memory_space<semaphore_mem>> -> memref<!tpu.dma_semaphore, #tpu.memory_space<semaphore_mem>>
    tpu.enqueue_dma source(%177 : memref<128xf32, #tpu.memory_space<any>>) target(%179 : memref<128xf32, #tpu.memory_space<vmem>>) target_semaphore(%181 : memref<!tpu.dma_semaphore, #tpu.memory_space<semaphore_mem>>)
    %c3_166 = arith.constant 3 : index
    %c2_167 = arith.constant 2 : index
    %182 = memref.load %arg1[%c3_166, %c2_167] : memref<8x8xi32, #tpu.memory_space<smem>>
    %c2_i32_168 = arith.constant 2 : i32
    %c3_i32_169 = arith.constant 3 : i32
    %c3_i32_170 = arith.constant 3 : i32
    %c0_i32_171 = arith.constant 0 : i32
    %183 = tpu.memref_slice %arg2[%182, %c0_i32_171] : memref<10000x128xf32, #tpu.memory_space<any>> -> memref<1x128xf32, #tpu.memory_space<any>>
    %184 = tpu.memref_squeeze %183 : memref<1x128xf32, #tpu.memory_space<any>> -> memref<128xf32, #tpu.memory_space<any>>
    %c0_i32_172 = arith.constant 0 : i32
    %185 = tpu.memref_slice %arg8[%c2_i32_168, %c3_i32_169, %c0_i32_172] : memref<8x8x128xf32, #tpu.memory_space<vmem>> -> memref<1x1x128xf32, #tpu.memory_space<vmem>>
    %186 = tpu.memref_squeeze %185 : memref<1x1x128xf32, #tpu.memory_space<vmem>> -> memref<128xf32, #tpu.memory_space<vmem>>
    %187 = tpu.memref_slice %arg9[%c3_i32_170] : memref<8x!tpu.dma_semaphore, #tpu.memory_space<semaphore_mem>> -> memref<1x!tpu.dma_semaphore, #tpu.memory_space<semaphore_mem>>
    %188 = tpu.memref_squeeze %187 : memref<1x!tpu.dma_semaphore, #tpu.memory_space<semaphore_mem>> -> memref<!tpu.dma_semaphore, #tpu.memory_space<semaphore_mem>>
    tpu.enqueue_dma source(%184 : memref<128xf32, #tpu.memory_space<any>>) target(%186 : memref<128xf32, #tpu.memory_space<vmem>>) target_semaphore(%188 : memref<!tpu.dma_semaphore, #tpu.memory_space<semaphore_mem>>)
    %c3_173 = arith.constant 3 : index
    %c3_174 = arith.constant 3 : index
    %189 = memref.load %arg1[%c3_173, %c3_174] : memref<8x8xi32, #tpu.memory_space<smem>>
    %c3_i32_175 = arith.constant 3 : i32
    %c3_i32_176 = arith.constant 3 : i32
    %c3_i32_177 = arith.constant 3 : i32
    %c0_i32_178 = arith.constant 0 : i32
    %190 = tpu.memref_slice %arg2[%189, %c0_i32_178] : memref<10000x128xf32, #tpu.memory_space<any>> -> memref<1x128xf32, #tpu.memory_space<any>>
    %191 = tpu.memref_squeeze %190 : memref<1x128xf32, #tpu.memory_space<any>> -> memref<128xf32, #tpu.memory_space<any>>
    %c0_i32_179 = arith.constant 0 : i32
    %192 = tpu.memref_slice %arg8[%c3_i32_175, %c3_i32_176, %c0_i32_179] : memref<8x8x128xf32, #tpu.memory_space<vmem>> -> memref<1x1x128xf32, #tpu.memory_space<vmem>>
    %193 = tpu.memref_squeeze %192 : memref<1x1x128xf32, #tpu.memory_space<vmem>> -> memref<128xf32, #tpu.memory_space<vmem>>
    %194 = tpu.memref_slice %arg9[%c3_i32_177] : memref<8x!tpu.dma_semaphore, #tpu.memory_space<semaphore_mem>> -> memref<1x!tpu.dma_semaphore, #tpu.memory_space<semaphore_mem>>
    %195 = tpu.memref_squeeze %194 : memref<1x!tpu.dma_semaphore, #tpu.memory_space<semaphore_mem>> -> memref<!tpu.dma_semaphore, #tpu.memory_space<semaphore_mem>>
    tpu.enqueue_dma source(%191 : memref<128xf32, #tpu.memory_space<any>>) target(%193 : memref<128xf32, #tpu.memory_space<vmem>>) target_semaphore(%195 : memref<!tpu.dma_semaphore, #tpu.memory_space<semaphore_mem>>)
    %c3_180 = arith.constant 3 : index
    %c4_181 = arith.constant 4 : index
    %196 = memref.load %arg1[%c3_180, %c4_181] : memref<8x8xi32, #tpu.memory_space<smem>>
    %c4_i32_182 = arith.constant 4 : i32
    %c3_i32_183 = arith.constant 3 : i32
    %c3_i32_184 = arith.constant 3 : i32
    %c0_i32_185 = arith.constant 0 : i32
    %197 = tpu.memref_slice %arg2[%196, %c0_i32_185] : memref<10000x128xf32, #tpu.memory_space<any>> -> memref<1x128xf32, #tpu.memory_space<any>>
    %198 = tpu.memref_squeeze %197 : memref<1x128xf32, #tpu.memory_space<any>> -> memref<128xf32, #tpu.memory_space<any>>
    %c0_i32_186 = arith.constant 0 : i32
    %199 = tpu.memref_slice %arg8[%c4_i32_182, %c3_i32_183, %c0_i32_186] : memref<8x8x128xf32, #tpu.memory_space<vmem>> -> memref<1x1x128xf32, #tpu.memory_space<vmem>>
    %200 = tpu.memref_squeeze %199 : memref<1x1x128xf32, #tpu.memory_space<vmem>> -> memref<128xf32, #tpu.memory_space<vmem>>
    %201 = tpu.memref_slice %arg9[%c3_i32_184] : memref<8x!tpu.dma_semaphore, #tpu.memory_space<semaphore_mem>> -> memref<1x!tpu.dma_semaphore, #tpu.memory_space<semaphore_mem>>
    %202 = tpu.memref_squeeze %201 : memref<1x!tpu.dma_semaphore, #tpu.memory_space<semaphore_mem>> -> memref<!tpu.dma_semaphore, #tpu.memory_space<semaphore_mem>>
    tpu.enqueue_dma source(%198 : memref<128xf32, #tpu.memory_space<any>>) target(%200 : memref<128xf32, #tpu.memory_space<vmem>>) target_semaphore(%202 : memref<!tpu.dma_semaphore, #tpu.memory_space<semaphore_mem>>)
    %c3_187 = arith.constant 3 : index
    %c5_188 = arith.constant 5 : index
    %203 = memref.load %arg1[%c3_187, %c5_188] : memref<8x8xi32, #tpu.memory_space<smem>>
    %c5_i32_189 = arith.constant 5 : i32
    %c3_i32_190 = arith.constant 3 : i32
    %c3_i32_191 = arith.constant 3 : i32
    %c0_i32_192 = arith.constant 0 : i32
    %204 = tpu.memref_slice %arg2[%203, %c0_i32_192] : memref<10000x128xf32, #tpu.memory_space<any>> -> memref<1x128xf32, #tpu.memory_space<any>>
    %205 = tpu.memref_squeeze %204 : memref<1x128xf32, #tpu.memory_space<any>> -> memref<128xf32, #tpu.memory_space<any>>
    %c0_i32_193 = arith.constant 0 : i32
    %206 = tpu.memref_slice %arg8[%c5_i32_189, %c3_i32_190, %c0_i32_193] : memref<8x8x128xf32, #tpu.memory_space<vmem>> -> memref<1x1x128xf32, #tpu.memory_space<vmem>>
    %207 = tpu.memref_squeeze %206 : memref<1x1x128xf32, #tpu.memory_space<vmem>> -> memref<128xf32, #tpu.memory_space<vmem>>
    %208 = tpu.memref_slice %arg9[%c3_i32_191] : memref<8x!tpu.dma_semaphore, #tpu.memory_space<semaphore_mem>> -> memref<1x!tpu.dma_semaphore, #tpu.memory_space<semaphore_mem>>
    %209 = tpu.memref_squeeze %208 : memref<1x!tpu.dma_semaphore, #tpu.memory_space<semaphore_mem>> -> memref<!tpu.dma_semaphore, #tpu.memory_space<semaphore_mem>>
    tpu.enqueue_dma source(%205 : memref<128xf32, #tpu.memory_space<any>>) target(%207 : memref<128xf32, #tpu.memory_space<vmem>>) target_semaphore(%209 : memref<!tpu.dma_semaphore, #tpu.memory_space<semaphore_mem>>)
    %c3_194 = arith.constant 3 : index
    %c6_195 = arith.constant 6 : index
    %210 = memref.load %arg1[%c3_194, %c6_195] : memref<8x8xi32, #tpu.memory_space<smem>>
    %c6_i32_196 = arith.constant 6 : i32
    %c3_i32_197 = arith.constant 3 : i32
    %c3_i32_198 = arith.constant 3 : i32
    %c0_i32_199 = arith.constant 0 : i32
    %211 = tpu.memref_slice %arg2[%210, %c0_i32_199] : memref<10000x128xf32, #tpu.memory_space<any>> -> memref<1x128xf32, #tpu.memory_space<any>>
    %212 = tpu.memref_squeeze %211 : memref<1x128xf32, #tpu.memory_space<any>> -> memref<128xf32, #tpu.memory_space<any>>
    %c0_i32_200 = arith.constant 0 : i32
    %213 = tpu.memref_slice %arg8[%c6_i32_196, %c3_i32_197, %c0_i32_200] : memref<8x8x128xf32, #tpu.memory_space<vmem>> -> memref<1x1x128xf32, #tpu.memory_space<vmem>>
    %214 = tpu.memref_squeeze %213 : memref<1x1x128xf32, #tpu.memory_space<vmem>> -> memref<128xf32, #tpu.memory_space<vmem>>
    %215 = tpu.memref_slice %arg9[%c3_i32_198] : memref<8x!tpu.dma_semaphore, #tpu.memory_space<semaphore_mem>> -> memref<1x!tpu.dma_semaphore, #tpu.memory_space<semaphore_mem>>
    %216 = tpu.memref_squeeze %215 : memref<1x!tpu.dma_semaphore, #tpu.memory_space<semaphore_mem>> -> memref<!tpu.dma_semaphore, #tpu.memory_space<semaphore_mem>>
    tpu.enqueue_dma source(%212 : memref<128xf32, #tpu.memory_space<any>>) target(%214 : memref<128xf32, #tpu.memory_space<vmem>>) target_semaphore(%216 : memref<!tpu.dma_semaphore, #tpu.memory_space<semaphore_mem>>)
    %c3_201 = arith.constant 3 : index
    %c7_202 = arith.constant 7 : index
    %217 = memref.load %arg1[%c3_201, %c7_202] : memref<8x8xi32, #tpu.memory_space<smem>>
    %c7_i32_203 = arith.constant 7 : i32
    %c3_i32_204 = arith.constant 3 : i32
    %c3_i32_205 = arith.constant 3 : i32
    %c0_i32_206 = arith.constant 0 : i32
    %218 = tpu.memref_slice %arg2[%217, %c0_i32_206] : memref<10000x128xf32, #tpu.memory_space<any>> -> memref<1x128xf32, #tpu.memory_space<any>>
    %219 = tpu.memref_squeeze %218 : memref<1x128xf32, #tpu.memory_space<any>> -> memref<128xf32, #tpu.memory_space<any>>
    %c0_i32_207 = arith.constant 0 : i32
    %220 = tpu.memref_slice %arg8[%c7_i32_203, %c3_i32_204, %c0_i32_207] : memref<8x8x128xf32, #tpu.memory_space<vmem>> -> memref<1x1x128xf32, #tpu.memory_space<vmem>>
    %221 = tpu.memref_squeeze %220 : memref<1x1x128xf32, #tpu.memory_space<vmem>> -> memref<128xf32, #tpu.memory_space<vmem>>
    %222 = tpu.memref_slice %arg9[%c3_i32_205] : memref<8x!tpu.dma_semaphore, #tpu.memory_space<semaphore_mem>> -> memref<1x!tpu.dma_semaphore, #tpu.memory_space<semaphore_mem>>
    %223 = tpu.memref_squeeze %222 : memref<1x!tpu.dma_semaphore, #tpu.memory_space<semaphore_mem>> -> memref<!tpu.dma_semaphore, #tpu.memory_space<semaphore_mem>>
    tpu.enqueue_dma source(%219 : memref<128xf32, #tpu.memory_space<any>>) target(%221 : memref<128xf32, #tpu.memory_space<vmem>>) target_semaphore(%223 : memref<!tpu.dma_semaphore, #tpu.memory_space<semaphore_mem>>)
    %c4_208 = arith.constant 4 : index
    %c0_209 = arith.constant 0 : index
    %224 = memref.load %arg1[%c4_208, %c0_209] : memref<8x8xi32, #tpu.memory_space<smem>>
    %c0_i32_210 = arith.constant 0 : i32
    %c4_i32_211 = arith.constant 4 : i32
    %c4_i32_212 = arith.constant 4 : i32
    %c0_i32_213 = arith.constant 0 : i32
    %225 = tpu.memref_slice %arg2[%224, %c0_i32_213] : memref<10000x128xf32, #tpu.memory_space<any>> -> memref<1x128xf32, #tpu.memory_space<any>>
    %226 = tpu.memref_squeeze %225 : memref<1x128xf32, #tpu.memory_space<any>> -> memref<128xf32, #tpu.memory_space<any>>
    %c0_i32_214 = arith.constant 0 : i32
    %227 = tpu.memref_slice %arg8[%c0_i32_210, %c4_i32_211, %c0_i32_214] : memref<8x8x128xf32, #tpu.memory_space<vmem>> -> memref<1x1x128xf32, #tpu.memory_space<vmem>>
    %228 = tpu.memref_squeeze %227 : memref<1x1x128xf32, #tpu.memory_space<vmem>> -> memref<128xf32, #tpu.memory_space<vmem>>
    %229 = tpu.memref_slice %arg9[%c4_i32_212] : memref<8x!tpu.dma_semaphore, #tpu.memory_space<semaphore_mem>> -> memref<1x!tpu.dma_semaphore, #tpu.memory_space<semaphore_mem>>
    %230 = tpu.memref_squeeze %229 : memref<1x!tpu.dma_semaphore, #tpu.memory_space<semaphore_mem>> -> memref<!tpu.dma_semaphore, #tpu.memory_space<semaphore_mem>>
    tpu.enqueue_dma source(%226 : memref<128xf32, #tpu.memory_space<any>>) target(%228 : memref<128xf32, #tpu.memory_space<vmem>>) target_semaphore(%230 : memref<!tpu.dma_semaphore, #tpu.memory_space<semaphore_mem>>)
    %c4_215 = arith.constant 4 : index
    %c1_216 = arith.constant 1 : index
    %231 = memref.load %arg1[%c4_215, %c1_216] : memref<8x8xi32, #tpu.memory_space<smem>>
    %c1_i32_217 = arith.constant 1 : i32
    %c4_i32_218 = arith.constant 4 : i32
    %c4_i32_219 = arith.constant 4 : i32
    %c0_i32_220 = arith.constant 0 : i32
    %232 = tpu.memref_slice %arg2[%231, %c0_i32_220] : memref<10000x128xf32, #tpu.memory_space<any>> -> memref<1x128xf32, #tpu.memory_space<any>>
    %233 = tpu.memref_squeeze %232 : memref<1x128xf32, #tpu.memory_space<any>> -> memref<128xf32, #tpu.memory_space<any>>
    %c0_i32_221 = arith.constant 0 : i32
    %234 = tpu.memref_slice %arg8[%c1_i32_217, %c4_i32_218, %c0_i32_221] : memref<8x8x128xf32, #tpu.memory_space<vmem>> -> memref<1x1x128xf32, #tpu.memory_space<vmem>>
    %235 = tpu.memref_squeeze %234 : memref<1x1x128xf32, #tpu.memory_space<vmem>> -> memref<128xf32, #tpu.memory_space<vmem>>
    %236 = tpu.memref_slice %arg9[%c4_i32_219] : memref<8x!tpu.dma_semaphore, #tpu.memory_space<semaphore_mem>> -> memref<1x!tpu.dma_semaphore, #tpu.memory_space<semaphore_mem>>
    %237 = tpu.memref_squeeze %236 : memref<1x!tpu.dma_semaphore, #tpu.memory_space<semaphore_mem>> -> memref<!tpu.dma_semaphore, #tpu.memory_space<semaphore_mem>>
    tpu.enqueue_dma source(%233 : memref<128xf32, #tpu.memory_space<any>>) target(%235 : memref<128xf32, #tpu.memory_space<vmem>>) target_semaphore(%237 : memref<!tpu.dma_semaphore, #tpu.memory_space<semaphore_mem>>)
    %c4_222 = arith.constant 4 : index
    %c2_223 = arith.constant 2 : index
    %238 = memref.load %arg1[%c4_222, %c2_223] : memref<8x8xi32, #tpu.memory_space<smem>>
    %c2_i32_224 = arith.constant 2 : i32
    %c4_i32_225 = arith.constant 4 : i32
    %c4_i32_226 = arith.constant 4 : i32
    %c0_i32_227 = arith.constant 0 : i32
    %239 = tpu.memref_slice %arg2[%238, %c0_i32_227] : memref<10000x128xf32, #tpu.memory_space<any>> -> memref<1x128xf32, #tpu.memory_space<any>>
    %240 = tpu.memref_squeeze %239 : memref<1x128xf32, #tpu.memory_space<any>> -> memref<128xf32, #tpu.memory_space<any>>
    %c0_i32_228 = arith.constant 0 : i32
    %241 = tpu.memref_slice %arg8[%c2_i32_224, %c4_i32_225, %c0_i32_228] : memref<8x8x128xf32, #tpu.memory_space<vmem>> -> memref<1x1x128xf32, #tpu.memory_space<vmem>>
    %242 = tpu.memref_squeeze %241 : memref<1x1x128xf32, #tpu.memory_space<vmem>> -> memref<128xf32, #tpu.memory_space<vmem>>
    %243 = tpu.memref_slice %arg9[%c4_i32_226] : memref<8x!tpu.dma_semaphore, #tpu.memory_space<semaphore_mem>> -> memref<1x!tpu.dma_semaphore, #tpu.memory_space<semaphore_mem>>
    %244 = tpu.memref_squeeze %243 : memref<1x!tpu.dma_semaphore, #tpu.memory_space<semaphore_mem>> -> memref<!tpu.dma_semaphore, #tpu.memory_space<semaphore_mem>>
    tpu.enqueue_dma source(%240 : memref<128xf32, #tpu.memory_space<any>>) target(%242 : memref<128xf32, #tpu.memory_space<vmem>>) target_semaphore(%244 : memref<!tpu.dma_semaphore, #tpu.memory_space<semaphore_mem>>)
    %c4_229 = arith.constant 4 : index
    %c3_230 = arith.constant 3 : index
    %245 = memref.load %arg1[%c4_229, %c3_230] : memref<8x8xi32, #tpu.memory_space<smem>>
    %c3_i32_231 = arith.constant 3 : i32
    %c4_i32_232 = arith.constant 4 : i32
    %c4_i32_233 = arith.constant 4 : i32
    %c0_i32_234 = arith.constant 0 : i32
    %246 = tpu.memref_slice %arg2[%245, %c0_i32_234] : memref<10000x128xf32, #tpu.memory_space<any>> -> memref<1x128xf32, #tpu.memory_space<any>>
    %247 = tpu.memref_squeeze %246 : memref<1x128xf32, #tpu.memory_space<any>> -> memref<128xf32, #tpu.memory_space<any>>
    %c0_i32_235 = arith.constant 0 : i32
    %248 = tpu.memref_slice %arg8[%c3_i32_231, %c4_i32_232, %c0_i32_235] : memref<8x8x128xf32, #tpu.memory_space<vmem>> -> memref<1x1x128xf32, #tpu.memory_space<vmem>>
    %249 = tpu.memref_squeeze %248 : memref<1x1x128xf32, #tpu.memory_space<vmem>> -> memref<128xf32, #tpu.memory_space<vmem>>
    %250 = tpu.memref_slice %arg9[%c4_i32_233] : memref<8x!tpu.dma_semaphore, #tpu.memory_space<semaphore_mem>> -> memref<1x!tpu.dma_semaphore, #tpu.memory_space<semaphore_mem>>
    %251 = tpu.memref_squeeze %250 : memref<1x!tpu.dma_semaphore, #tpu.memory_space<semaphore_mem>> -> memref<!tpu.dma_semaphore, #tpu.memory_space<semaphore_mem>>
    tpu.enqueue_dma source(%247 : memref<128xf32, #tpu.memory_space<any>>) target(%249 : memref<128xf32, #tpu.memory_space<vmem>>) target_semaphore(%251 : memref<!tpu.dma_semaphore, #tpu.memory_space<semaphore_mem>>)
    %c4_236 = arith.constant 4 : index
    %c4_237 = arith.constant 4 : index
    %252 = memref.load %arg1[%c4_236, %c4_237] : memref<8x8xi32, #tpu.memory_space<smem>>
    %c4_i32_238 = arith.constant 4 : i32
    %c4_i32_239 = arith.constant 4 : i32
    %c4_i32_240 = arith.constant 4 : i32
    %c0_i32_241 = arith.constant 0 : i32
    %253 = tpu.memref_slice %arg2[%252, %c0_i32_241] : memref<10000x128xf32, #tpu.memory_space<any>> -> memref<1x128xf32, #tpu.memory_space<any>>
    %254 = tpu.memref_squeeze %253 : memref<1x128xf32, #tpu.memory_space<any>> -> memref<128xf32, #tpu.memory_space<any>>
    %c0_i32_242 = arith.constant 0 : i32
    %255 = tpu.memref_slice %arg8[%c4_i32_238, %c4_i32_239, %c0_i32_242] : memref<8x8x128xf32, #tpu.memory_space<vmem>> -> memref<1x1x128xf32, #tpu.memory_space<vmem>>
    %256 = tpu.memref_squeeze %255 : memref<1x1x128xf32, #tpu.memory_space<vmem>> -> memref<128xf32, #tpu.memory_space<vmem>>
    %257 = tpu.memref_slice %arg9[%c4_i32_240] : memref<8x!tpu.dma_semaphore, #tpu.memory_space<semaphore_mem>> -> memref<1x!tpu.dma_semaphore, #tpu.memory_space<semaphore_mem>>
    %258 = tpu.memref_squeeze %257 : memref<1x!tpu.dma_semaphore, #tpu.memory_space<semaphore_mem>> -> memref<!tpu.dma_semaphore, #tpu.memory_space<semaphore_mem>>
    tpu.enqueue_dma source(%254 : memref<128xf32, #tpu.memory_space<any>>) target(%256 : memref<128xf32, #tpu.memory_space<vmem>>) target_semaphore(%258 : memref<!tpu.dma_semaphore, #tpu.memory_space<semaphore_mem>>)
    %c4_243 = arith.constant 4 : index
    %c5_244 = arith.constant 5 : index
    %259 = memref.load %arg1[%c4_243, %c5_244] : memref<8x8xi32, #tpu.memory_space<smem>>
    %c5_i32_245 = arith.constant 5 : i32
    %c4_i32_246 = arith.constant 4 : i32
    %c4_i32_247 = arith.constant 4 : i32
    %c0_i32_248 = arith.constant 0 : i32
    %260 = tpu.memref_slice %arg2[%259, %c0_i32_248] : memref<10000x128xf32, #tpu.memory_space<any>> -> memref<1x128xf32, #tpu.memory_space<any>>
    %261 = tpu.memref_squeeze %260 : memref<1x128xf32, #tpu.memory_space<any>> -> memref<128xf32, #tpu.memory_space<any>>
    %c0_i32_249 = arith.constant 0 : i32
    %262 = tpu.memref_slice %arg8[%c5_i32_245, %c4_i32_246, %c0_i32_249] : memref<8x8x128xf32, #tpu.memory_space<vmem>> -> memref<1x1x128xf32, #tpu.memory_space<vmem>>
    %263 = tpu.memref_squeeze %262 : memref<1x1x128xf32, #tpu.memory_space<vmem>> -> memref<128xf32, #tpu.memory_space<vmem>>
    %264 = tpu.memref_slice %arg9[%c4_i32_247] : memref<8x!tpu.dma_semaphore, #tpu.memory_space<semaphore_mem>> -> memref<1x!tpu.dma_semaphore, #tpu.memory_space<semaphore_mem>>
    %265 = tpu.memref_squeeze %264 : memref<1x!tpu.dma_semaphore, #tpu.memory_space<semaphore_mem>> -> memref<!tpu.dma_semaphore, #tpu.memory_space<semaphore_mem>>
    tpu.enqueue_dma source(%261 : memref<128xf32, #tpu.memory_space<any>>) target(%263 : memref<128xf32, #tpu.memory_space<vmem>>) target_semaphore(%265 : memref<!tpu.dma_semaphore, #tpu.memory_space<semaphore_mem>>)
    %c4_250 = arith.constant 4 : index
    %c6_251 = arith.constant 6 : index
    %266 = memref.load %arg1[%c4_250, %c6_251] : memref<8x8xi32, #tpu.memory_space<smem>>
    %c6_i32_252 = arith.constant 6 : i32
    %c4_i32_253 = arith.constant 4 : i32
    %c4_i32_254 = arith.constant 4 : i32
    %c0_i32_255 = arith.constant 0 : i32
    %267 = tpu.memref_slice %arg2[%266, %c0_i32_255] : memref<10000x128xf32, #tpu.memory_space<any>> -> memref<1x128xf32, #tpu.memory_space<any>>
    %268 = tpu.memref_squeeze %267 : memref<1x128xf32, #tpu.memory_space<any>> -> memref<128xf32, #tpu.memory_space<any>>
    %c0_i32_256 = arith.constant 0 : i32
    %269 = tpu.memref_slice %arg8[%c6_i32_252, %c4_i32_253, %c0_i32_256] : memref<8x8x128xf32, #tpu.memory_space<vmem>> -> memref<1x1x128xf32, #tpu.memory_space<vmem>>
    %270 = tpu.memref_squeeze %269 : memref<1x1x128xf32, #tpu.memory_space<vmem>> -> memref<128xf32, #tpu.memory_space<vmem>>
    %271 = tpu.memref_slice %arg9[%c4_i32_254] : memref<8x!tpu.dma_semaphore, #tpu.memory_space<semaphore_mem>> -> memref<1x!tpu.dma_semaphore, #tpu.memory_space<semaphore_mem>>
    %272 = tpu.memref_squeeze %271 : memref<1x!tpu.dma_semaphore, #tpu.memory_space<semaphore_mem>> -> memref<!tpu.dma_semaphore, #tpu.memory_space<semaphore_mem>>
    tpu.enqueue_dma source(%268 : memref<128xf32, #tpu.memory_space<any>>) target(%270 : memref<128xf32, #tpu.memory_space<vmem>>) target_semaphore(%272 : memref<!tpu.dma_semaphore, #tpu.memory_space<semaphore_mem>>)
    %c4_257 = arith.constant 4 : index
    %c7_258 = arith.constant 7 : index
    %273 = memref.load %arg1[%c4_257, %c7_258] : memref<8x8xi32, #tpu.memory_space<smem>>
    %c7_i32_259 = arith.constant 7 : i32
    %c4_i32_260 = arith.constant 4 : i32
    %c4_i32_261 = arith.constant 4 : i32
    %c0_i32_262 = arith.constant 0 : i32
    %274 = tpu.memref_slice %arg2[%273, %c0_i32_262] : memref<10000x128xf32, #tpu.memory_space<any>> -> memref<1x128xf32, #tpu.memory_space<any>>
    %275 = tpu.memref_squeeze %274 : memref<1x128xf32, #tpu.memory_space<any>> -> memref<128xf32, #tpu.memory_space<any>>
    %c0_i32_263 = arith.constant 0 : i32
    %276 = tpu.memref_slice %arg8[%c7_i32_259, %c4_i32_260, %c0_i32_263] : memref<8x8x128xf32, #tpu.memory_space<vmem>> -> memref<1x1x128xf32, #tpu.memory_space<vmem>>
    %277 = tpu.memref_squeeze %276 : memref<1x1x128xf32, #tpu.memory_space<vmem>> -> memref<128xf32, #tpu.memory_space<vmem>>
    %278 = tpu.memref_slice %arg9[%c4_i32_261] : memref<8x!tpu.dma_semaphore, #tpu.memory_space<semaphore_mem>> -> memref<1x!tpu.dma_semaphore, #tpu.memory_space<semaphore_mem>>
    %279 = tpu.memref_squeeze %278 : memref<1x!tpu.dma_semaphore, #tpu.memory_space<semaphore_mem>> -> memref<!tpu.dma_semaphore, #tpu.memory_space<semaphore_mem>>
    tpu.enqueue_dma source(%275 : memref<128xf32, #tpu.memory_space<any>>) target(%277 : memref<128xf32, #tpu.memory_space<vmem>>) target_semaphore(%279 : memref<!tpu.dma_semaphore, #tpu.memory_space<semaphore_mem>>)
    %c5_264 = arith.constant 5 : index
    %c0_265 = arith.constant 0 : index
    %280 = memref.load %arg1[%c5_264, %c0_265] : memref<8x8xi32, #tpu.memory_space<smem>>
    %c0_i32_266 = arith.constant 0 : i32
    %c5_i32_267 = arith.constant 5 : i32
    %c5_i32_268 = arith.constant 5 : i32
    %c0_i32_269 = arith.constant 0 : i32
    %281 = tpu.memref_slice %arg2[%280, %c0_i32_269] : memref<10000x128xf32, #tpu.memory_space<any>> -> memref<1x128xf32, #tpu.memory_space<any>>
    %282 = tpu.memref_squeeze %281 : memref<1x128xf32, #tpu.memory_space<any>> -> memref<128xf32, #tpu.memory_space<any>>
    %c0_i32_270 = arith.constant 0 : i32
    %283 = tpu.memref_slice %arg8[%c0_i32_266, %c5_i32_267, %c0_i32_270] : memref<8x8x128xf32, #tpu.memory_space<vmem>> -> memref<1x1x128xf32, #tpu.memory_space<vmem>>
    %284 = tpu.memref_squeeze %283 : memref<1x1x128xf32, #tpu.memory_space<vmem>> -> memref<128xf32, #tpu.memory_space<vmem>>
    %285 = tpu.memref_slice %arg9[%c5_i32_268] : memref<8x!tpu.dma_semaphore, #tpu.memory_space<semaphore_mem>> -> memref<1x!tpu.dma_semaphore, #tpu.memory_space<semaphore_mem>>
    %286 = tpu.memref_squeeze %285 : memref<1x!tpu.dma_semaphore, #tpu.memory_space<semaphore_mem>> -> memref<!tpu.dma_semaphore, #tpu.memory_space<semaphore_mem>>
    tpu.enqueue_dma source(%282 : memref<128xf32, #tpu.memory_space<any>>) target(%284 : memref<128xf32, #tpu.memory_space<vmem>>) target_semaphore(%286 : memref<!tpu.dma_semaphore, #tpu.memory_space<semaphore_mem>>)
    %c5_271 = arith.constant 5 : index
    %c1_272 = arith.constant 1 : index
    %287 = memref.load %arg1[%c5_271, %c1_272] : memref<8x8xi32, #tpu.memory_space<smem>>
    %c1_i32_273 = arith.constant 1 : i32
    %c5_i32_274 = arith.constant 5 : i32
    %c5_i32_275 = arith.constant 5 : i32
    %c0_i32_276 = arith.constant 0 : i32
    %288 = tpu.memref_slice %arg2[%287, %c0_i32_276] : memref<10000x128xf32, #tpu.memory_space<any>> -> memref<1x128xf32, #tpu.memory_space<any>>
    %289 = tpu.memref_squeeze %288 : memref<1x128xf32, #tpu.memory_space<any>> -> memref<128xf32, #tpu.memory_space<any>>
    %c0_i32_277 = arith.constant 0 : i32
    %290 = tpu.memref_slice %arg8[%c1_i32_273, %c5_i32_274, %c0_i32_277] : memref<8x8x128xf32, #tpu.memory_space<vmem>> -> memref<1x1x128xf32, #tpu.memory_space<vmem>>
    %291 = tpu.memref_squeeze %290 : memref<1x1x128xf32, #tpu.memory_space<vmem>> -> memref<128xf32, #tpu.memory_space<vmem>>
    %292 = tpu.memref_slice %arg9[%c5_i32_275] : memref<8x!tpu.dma_semaphore, #tpu.memory_space<semaphore_mem>> -> memref<1x!tpu.dma_semaphore, #tpu.memory_space<semaphore_mem>>
    %293 = tpu.memref_squeeze %292 : memref<1x!tpu.dma_semaphore, #tpu.memory_space<semaphore_mem>> -> memref<!tpu.dma_semaphore, #tpu.memory_space<semaphore_mem>>
    tpu.enqueue_dma source(%289 : memref<128xf32, #tpu.memory_space<any>>) target(%291 : memref<128xf32, #tpu.memory_space<vmem>>) target_semaphore(%293 : memref<!tpu.dma_semaphore, #tpu.memory_space<semaphore_mem>>)
    %c5_278 = arith.constant 5 : index
    %c2_279 = arith.constant 2 : index
    %294 = memref.load %arg1[%c5_278, %c2_279] : memref<8x8xi32, #tpu.memory_space<smem>>
    %c2_i32_280 = arith.constant 2 : i32
    %c5_i32_281 = arith.constant 5 : i32
    %c5_i32_282 = arith.constant 5 : i32
    %c0_i32_283 = arith.constant 0 : i32
    %295 = tpu.memref_slice %arg2[%294, %c0_i32_283] : memref<10000x128xf32, #tpu.memory_space<any>> -> memref<1x128xf32, #tpu.memory_space<any>>
    %296 = tpu.memref_squeeze %295 : memref<1x128xf32, #tpu.memory_space<any>> -> memref<128xf32, #tpu.memory_space<any>>
    %c0_i32_284 = arith.constant 0 : i32
    %297 = tpu.memref_slice %arg8[%c2_i32_280, %c5_i32_281, %c0_i32_284] : memref<8x8x128xf32, #tpu.memory_space<vmem>> -> memref<1x1x128xf32, #tpu.memory_space<vmem>>
    %298 = tpu.memref_squeeze %297 : memref<1x1x128xf32, #tpu.memory_space<vmem>> -> memref<128xf32, #tpu.memory_space<vmem>>
    %299 = tpu.memref_slice %arg9[%c5_i32_282] : memref<8x!tpu.dma_semaphore, #tpu.memory_space<semaphore_mem>> -> memref<1x!tpu.dma_semaphore, #tpu.memory_space<semaphore_mem>>
    %300 = tpu.memref_squeeze %299 : memref<1x!tpu.dma_semaphore, #tpu.memory_space<semaphore_mem>> -> memref<!tpu.dma_semaphore, #tpu.memory_space<semaphore_mem>>
    tpu.enqueue_dma source(%296 : memref<128xf32, #tpu.memory_space<any>>) target(%298 : memref<128xf32, #tpu.memory_space<vmem>>) target_semaphore(%300 : memref<!tpu.dma_semaphore, #tpu.memory_space<semaphore_mem>>)
    %c5_285 = arith.constant 5 : index
    %c3_286 = arith.constant 3 : index
    %301 = memref.load %arg1[%c5_285, %c3_286] : memref<8x8xi32, #tpu.memory_space<smem>>
    %c3_i32_287 = arith.constant 3 : i32
    %c5_i32_288 = arith.constant 5 : i32
    %c5_i32_289 = arith.constant 5 : i32
    %c0_i32_290 = arith.constant 0 : i32
    %302 = tpu.memref_slice %arg2[%301, %c0_i32_290] : memref<10000x128xf32, #tpu.memory_space<any>> -> memref<1x128xf32, #tpu.memory_space<any>>
    %303 = tpu.memref_squeeze %302 : memref<1x128xf32, #tpu.memory_space<any>> -> memref<128xf32, #tpu.memory_space<any>>
    %c0_i32_291 = arith.constant 0 : i32
    %304 = tpu.memref_slice %arg8[%c3_i32_287, %c5_i32_288, %c0_i32_291] : memref<8x8x128xf32, #tpu.memory_space<vmem>> -> memref<1x1x128xf32, #tpu.memory_space<vmem>>
    %305 = tpu.memref_squeeze %304 : memref<1x1x128xf32, #tpu.memory_space<vmem>> -> memref<128xf32, #tpu.memory_space<vmem>>
    %306 = tpu.memref_slice %arg9[%c5_i32_289] : memref<8x!tpu.dma_semaphore, #tpu.memory_space<semaphore_mem>> -> memref<1x!tpu.dma_semaphore, #tpu.memory_space<semaphore_mem>>
    %307 = tpu.memref_squeeze %306 : memref<1x!tpu.dma_semaphore, #tpu.memory_space<semaphore_mem>> -> memref<!tpu.dma_semaphore, #tpu.memory_space<semaphore_mem>>
    tpu.enqueue_dma source(%303 : memref<128xf32, #tpu.memory_space<any>>) target(%305 : memref<128xf32, #tpu.memory_space<vmem>>) target_semaphore(%307 : memref<!tpu.dma_semaphore, #tpu.memory_space<semaphore_mem>>)
    %c5_292 = arith.constant 5 : index
    %c4_293 = arith.constant 4 : index
    %308 = memref.load %arg1[%c5_292, %c4_293] : memref<8x8xi32, #tpu.memory_space<smem>>
    %c4_i32_294 = arith.constant 4 : i32
    %c5_i32_295 = arith.constant 5 : i32
    %c5_i32_296 = arith.constant 5 : i32
    %c0_i32_297 = arith.constant 0 : i32
    %309 = tpu.memref_slice %arg2[%308, %c0_i32_297] : memref<10000x128xf32, #tpu.memory_space<any>> -> memref<1x128xf32, #tpu.memory_space<any>>
    %310 = tpu.memref_squeeze %309 : memref<1x128xf32, #tpu.memory_space<any>> -> memref<128xf32, #tpu.memory_space<any>>
    %c0_i32_298 = arith.constant 0 : i32
    %311 = tpu.memref_slice %arg8[%c4_i32_294, %c5_i32_295, %c0_i32_298] : memref<8x8x128xf32, #tpu.memory_space<vmem>> -> memref<1x1x128xf32, #tpu.memory_space<vmem>>
    %312 = tpu.memref_squeeze %311 : memref<1x1x128xf32, #tpu.memory_space<vmem>> -> memref<128xf32, #tpu.memory_space<vmem>>
    %313 = tpu.memref_slice %arg9[%c5_i32_296] : memref<8x!tpu.dma_semaphore, #tpu.memory_space<semaphore_mem>> -> memref<1x!tpu.dma_semaphore, #tpu.memory_space<semaphore_mem>>
    %314 = tpu.memref_squeeze %313 : memref<1x!tpu.dma_semaphore, #tpu.memory_space<semaphore_mem>> -> memref<!tpu.dma_semaphore, #tpu.memory_space<semaphore_mem>>
    tpu.enqueue_dma source(%310 : memref<128xf32, #tpu.memory_space<any>>) target(%312 : memref<128xf32, #tpu.memory_space<vmem>>) target_semaphore(%314 : memref<!tpu.dma_semaphore, #tpu.memory_space<semaphore_mem>>)
    %c5_299 = arith.constant 5 : index
    %c5_300 = arith.constant 5 : index
    %315 = memref.load %arg1[%c5_299, %c5_300] : memref<8x8xi32, #tpu.memory_space<smem>>
    %c5_i32_301 = arith.constant 5 : i32
    %c5_i32_302 = arith.constant 5 : i32
    %c5_i32_303 = arith.constant 5 : i32
    %c0_i32_304 = arith.constant 0 : i32
    %316 = tpu.memref_slice %arg2[%315, %c0_i32_304] : memref<10000x128xf32, #tpu.memory_space<any>> -> memref<1x128xf32, #tpu.memory_space<any>>
    %317 = tpu.memref_squeeze %316 : memref<1x128xf32, #tpu.memory_space<any>> -> memref<128xf32, #tpu.memory_space<any>>
    %c0_i32_305 = arith.constant 0 : i32
    %318 = tpu.memref_slice %arg8[%c5_i32_301, %c5_i32_302, %c0_i32_305] : memref<8x8x128xf32, #tpu.memory_space<vmem>> -> memref<1x1x128xf32, #tpu.memory_space<vmem>>
    %319 = tpu.memref_squeeze %318 : memref<1x1x128xf32, #tpu.memory_space<vmem>> -> memref<128xf32, #tpu.memory_space<vmem>>
    %320 = tpu.memref_slice %arg9[%c5_i32_303] : memref<8x!tpu.dma_semaphore, #tpu.memory_space<semaphore_mem>> -> memref<1x!tpu.dma_semaphore, #tpu.memory_space<semaphore_mem>>
    %321 = tpu.memref_squeeze %320 : memref<1x!tpu.dma_semaphore, #tpu.memory_space<semaphore_mem>> -> memref<!tpu.dma_semaphore, #tpu.memory_space<semaphore_mem>>
    tpu.enqueue_dma source(%317 : memref<128xf32, #tpu.memory_space<any>>) target(%319 : memref<128xf32, #tpu.memory_space<vmem>>) target_semaphore(%321 : memref<!tpu.dma_semaphore, #tpu.memory_space<semaphore_mem>>)
    %c5_306 = arith.constant 5 : index
    %c6_307 = arith.constant 6 : index
    %322 = memref.load %arg1[%c5_306, %c6_307] : memref<8x8xi32, #tpu.memory_space<smem>>
    %c6_i32_308 = arith.constant 6 : i32
    %c5_i32_309 = arith.constant 5 : i32
    %c5_i32_310 = arith.constant 5 : i32
    %c0_i32_311 = arith.constant 0 : i32
    %323 = tpu.memref_slice %arg2[%322, %c0_i32_311] : memref<10000x128xf32, #tpu.memory_space<any>> -> memref<1x128xf32, #tpu.memory_space<any>>
    %324 = tpu.memref_squeeze %323 : memref<1x128xf32, #tpu.memory_space<any>> -> memref<128xf32, #tpu.memory_space<any>>
    %c0_i32_312 = arith.constant 0 : i32
    %325 = tpu.memref_slice %arg8[%c6_i32_308, %c5_i32_309, %c0_i32_312] : memref<8x8x128xf32, #tpu.memory_space<vmem>> -> memref<1x1x128xf32, #tpu.memory_space<vmem>>
    %326 = tpu.memref_squeeze %325 : memref<1x1x128xf32, #tpu.memory_space<vmem>> -> memref<128xf32, #tpu.memory_space<vmem>>
    %327 = tpu.memref_slice %arg9[%c5_i32_310] : memref<8x!tpu.dma_semaphore, #tpu.memory_space<semaphore_mem>> -> memref<1x!tpu.dma_semaphore, #tpu.memory_space<semaphore_mem>>
    %328 = tpu.memref_squeeze %327 : memref<1x!tpu.dma_semaphore, #tpu.memory_space<semaphore_mem>> -> memref<!tpu.dma_semaphore, #tpu.memory_space<semaphore_mem>>
    tpu.enqueue_dma source(%324 : memref<128xf32, #tpu.memory_space<any>>) target(%326 : memref<128xf32, #tpu.memory_space<vmem>>) target_semaphore(%328 : memref<!tpu.dma_semaphore, #tpu.memory_space<semaphore_mem>>)
    %c5_313 = arith.constant 5 : index
    %c7_314 = arith.constant 7 : index
    %329 = memref.load %arg1[%c5_313, %c7_314] : memref<8x8xi32, #tpu.memory_space<smem>>
    %c7_i32_315 = arith.constant 7 : i32
    %c5_i32_316 = arith.constant 5 : i32
    %c5_i32_317 = arith.constant 5 : i32
    %c0_i32_318 = arith.constant 0 : i32
    %330 = tpu.memref_slice %arg2[%329, %c0_i32_318] : memref<10000x128xf32, #tpu.memory_space<any>> -> memref<1x128xf32, #tpu.memory_space<any>>
    %331 = tpu.memref_squeeze %330 : memref<1x128xf32, #tpu.memory_space<any>> -> memref<128xf32, #tpu.memory_space<any>>
    %c0_i32_319 = arith.constant 0 : i32
    %332 = tpu.memref_slice %arg8[%c7_i32_315, %c5_i32_316, %c0_i32_319] : memref<8x8x128xf32, #tpu.memory_space<vmem>> -> memref<1x1x128xf32, #tpu.memory_space<vmem>>
    %333 = tpu.memref_squeeze %332 : memref<1x1x128xf32, #tpu.memory_space<vmem>> -> memref<128xf32, #tpu.memory_space<vmem>>
    %334 = tpu.memref_slice %arg9[%c5_i32_317] : memref<8x!tpu.dma_semaphore, #tpu.memory_space<semaphore_mem>> -> memref<1x!tpu.dma_semaphore, #tpu.memory_space<semaphore_mem>>
    %335 = tpu.memref_squeeze %334 : memref<1x!tpu.dma_semaphore, #tpu.memory_space<semaphore_mem>> -> memref<!tpu.dma_semaphore, #tpu.memory_space<semaphore_mem>>
    tpu.enqueue_dma source(%331 : memref<128xf32, #tpu.memory_space<any>>) target(%333 : memref<128xf32, #tpu.memory_space<vmem>>) target_semaphore(%335 : memref<!tpu.dma_semaphore, #tpu.memory_space<semaphore_mem>>)
    %c6_320 = arith.constant 6 : index
    %c0_321 = arith.constant 0 : index
    %336 = memref.load %arg1[%c6_320, %c0_321] : memref<8x8xi32, #tpu.memory_space<smem>>
    %c0_i32_322 = arith.constant 0 : i32
    %c6_i32_323 = arith.constant 6 : i32
    %c6_i32_324 = arith.constant 6 : i32
    %c0_i32_325 = arith.constant 0 : i32
    %337 = tpu.memref_slice %arg2[%336, %c0_i32_325] : memref<10000x128xf32, #tpu.memory_space<any>> -> memref<1x128xf32, #tpu.memory_space<any>>
    %338 = tpu.memref_squeeze %337 : memref<1x128xf32, #tpu.memory_space<any>> -> memref<128xf32, #tpu.memory_space<any>>
    %c0_i32_326 = arith.constant 0 : i32
    %339 = tpu.memref_slice %arg8[%c0_i32_322, %c6_i32_323, %c0_i32_326] : memref<8x8x128xf32, #tpu.memory_space<vmem>> -> memref<1x1x128xf32, #tpu.memory_space<vmem>>
    %340 = tpu.memref_squeeze %339 : memref<1x1x128xf32, #tpu.memory_space<vmem>> -> memref<128xf32, #tpu.memory_space<vmem>>
    %341 = tpu.memref_slice %arg9[%c6_i32_324] : memref<8x!tpu.dma_semaphore, #tpu.memory_space<semaphore_mem>> -> memref<1x!tpu.dma_semaphore, #tpu.memory_space<semaphore_mem>>
    %342 = tpu.memref_squeeze %341 : memref<1x!tpu.dma_semaphore, #tpu.memory_space<semaphore_mem>> -> memref<!tpu.dma_semaphore, #tpu.memory_space<semaphore_mem>>
    tpu.enqueue_dma source(%338 : memref<128xf32, #tpu.memory_space<any>>) target(%340 : memref<128xf32, #tpu.memory_space<vmem>>) target_semaphore(%342 : memref<!tpu.dma_semaphore, #tpu.memory_space<semaphore_mem>>)
    %c6_327 = arith.constant 6 : index
    %c1_328 = arith.constant 1 : index
    %343 = memref.load %arg1[%c6_327, %c1_328] : memref<8x8xi32, #tpu.memory_space<smem>>
    %c1_i32_329 = arith.constant 1 : i32
    %c6_i32_330 = arith.constant 6 : i32
    %c6_i32_331 = arith.constant 6 : i32
    %c0_i32_332 = arith.constant 0 : i32
    %344 = tpu.memref_slice %arg2[%343, %c0_i32_332] : memref<10000x128xf32, #tpu.memory_space<any>> -> memref<1x128xf32, #tpu.memory_space<any>>
    %345 = tpu.memref_squeeze %344 : memref<1x128xf32, #tpu.memory_space<any>> -> memref<128xf32, #tpu.memory_space<any>>
    %c0_i32_333 = arith.constant 0 : i32
    %346 = tpu.memref_slice %arg8[%c1_i32_329, %c6_i32_330, %c0_i32_333] : memref<8x8x128xf32, #tpu.memory_space<vmem>> -> memref<1x1x128xf32, #tpu.memory_space<vmem>>
    %347 = tpu.memref_squeeze %346 : memref<1x1x128xf32, #tpu.memory_space<vmem>> -> memref<128xf32, #tpu.memory_space<vmem>>
    %348 = tpu.memref_slice %arg9[%c6_i32_331] : memref<8x!tpu.dma_semaphore, #tpu.memory_space<semaphore_mem>> -> memref<1x!tpu.dma_semaphore, #tpu.memory_space<semaphore_mem>>
    %349 = tpu.memref_squeeze %348 : memref<1x!tpu.dma_semaphore, #tpu.memory_space<semaphore_mem>> -> memref<!tpu.dma_semaphore, #tpu.memory_space<semaphore_mem>>
    tpu.enqueue_dma source(%345 : memref<128xf32, #tpu.memory_space<any>>) target(%347 : memref<128xf32, #tpu.memory_space<vmem>>) target_semaphore(%349 : memref<!tpu.dma_semaphore, #tpu.memory_space<semaphore_mem>>)
    %c6_334 = arith.constant 6 : index
    %c2_335 = arith.constant 2 : index
    %350 = memref.load %arg1[%c6_334, %c2_335] : memref<8x8xi32, #tpu.memory_space<smem>>
    %c2_i32_336 = arith.constant 2 : i32
    %c6_i32_337 = arith.constant 6 : i32
    %c6_i32_338 = arith.constant 6 : i32
    %c0_i32_339 = arith.constant 0 : i32
    %351 = tpu.memref_slice %arg2[%350, %c0_i32_339] : memref<10000x128xf32, #tpu.memory_space<any>> -> memref<1x128xf32, #tpu.memory_space<any>>
    %352 = tpu.memref_squeeze %351 : memref<1x128xf32, #tpu.memory_space<any>> -> memref<128xf32, #tpu.memory_space<any>>
    %c0_i32_340 = arith.constant 0 : i32
    %353 = tpu.memref_slice %arg8[%c2_i32_336, %c6_i32_337, %c0_i32_340] : memref<8x8x128xf32, #tpu.memory_space<vmem>> -> memref<1x1x128xf32, #tpu.memory_space<vmem>>
    %354 = tpu.memref_squeeze %353 : memref<1x1x128xf32, #tpu.memory_space<vmem>> -> memref<128xf32, #tpu.memory_space<vmem>>
    %355 = tpu.memref_slice %arg9[%c6_i32_338] : memref<8x!tpu.dma_semaphore, #tpu.memory_space<semaphore_mem>> -> memref<1x!tpu.dma_semaphore, #tpu.memory_space<semaphore_mem>>
    %356 = tpu.memref_squeeze %355 : memref<1x!tpu.dma_semaphore, #tpu.memory_space<semaphore_mem>> -> memref<!tpu.dma_semaphore, #tpu.memory_space<semaphore_mem>>
    tpu.enqueue_dma source(%352 : memref<128xf32, #tpu.memory_space<any>>) target(%354 : memref<128xf32, #tpu.memory_space<vmem>>) target_semaphore(%356 : memref<!tpu.dma_semaphore, #tpu.memory_space<semaphore_mem>>)
    %c6_341 = arith.constant 6 : index
    %c3_342 = arith.constant 3 : index
    %357 = memref.load %arg1[%c6_341, %c3_342] : memref<8x8xi32, #tpu.memory_space<smem>>
    %c3_i32_343 = arith.constant 3 : i32
    %c6_i32_344 = arith.constant 6 : i32
    %c6_i32_345 = arith.constant 6 : i32
    %c0_i32_346 = arith.constant 0 : i32
    %358 = tpu.memref_slice %arg2[%357, %c0_i32_346] : memref<10000x128xf32, #tpu.memory_space<any>> -> memref<1x128xf32, #tpu.memory_space<any>>
    %359 = tpu.memref_squeeze %358 : memref<1x128xf32, #tpu.memory_space<any>> -> memref<128xf32, #tpu.memory_space<any>>
    %c0_i32_347 = arith.constant 0 : i32
    %360 = tpu.memref_slice %arg8[%c3_i32_343, %c6_i32_344, %c0_i32_347] : memref<8x8x128xf32, #tpu.memory_space<vmem>> -> memref<1x1x128xf32, #tpu.memory_space<vmem>>
    %361 = tpu.memref_squeeze %360 : memref<1x1x128xf32, #tpu.memory_space<vmem>> -> memref<128xf32, #tpu.memory_space<vmem>>
    %362 = tpu.memref_slice %arg9[%c6_i32_345] : memref<8x!tpu.dma_semaphore, #tpu.memory_space<semaphore_mem>> -> memref<1x!tpu.dma_semaphore, #tpu.memory_space<semaphore_mem>>
    %363 = tpu.memref_squeeze %362 : memref<1x!tpu.dma_semaphore, #tpu.memory_space<semaphore_mem>> -> memref<!tpu.dma_semaphore, #tpu.memory_space<semaphore_mem>>
    tpu.enqueue_dma source(%359 : memref<128xf32, #tpu.memory_space<any>>) target(%361 : memref<128xf32, #tpu.memory_space<vmem>>) target_semaphore(%363 : memref<!tpu.dma_semaphore, #tpu.memory_space<semaphore_mem>>)
    %c6_348 = arith.constant 6 : index
    %c4_349 = arith.constant 4 : index
    %364 = memref.load %arg1[%c6_348, %c4_349] : memref<8x8xi32, #tpu.memory_space<smem>>
    %c4_i32_350 = arith.constant 4 : i32
    %c6_i32_351 = arith.constant 6 : i32
    %c6_i32_352 = arith.constant 6 : i32
    %c0_i32_353 = arith.constant 0 : i32
    %365 = tpu.memref_slice %arg2[%364, %c0_i32_353] : memref<10000x128xf32, #tpu.memory_space<any>> -> memref<1x128xf32, #tpu.memory_space<any>>
    %366 = tpu.memref_squeeze %365 : memref<1x128xf32, #tpu.memory_space<any>> -> memref<128xf32, #tpu.memory_space<any>>
    %c0_i32_354 = arith.constant 0 : i32
    %367 = tpu.memref_slice %arg8[%c4_i32_350, %c6_i32_351, %c0_i32_354] : memref<8x8x128xf32, #tpu.memory_space<vmem>> -> memref<1x1x128xf32, #tpu.memory_space<vmem>>
    %368 = tpu.memref_squeeze %367 : memref<1x1x128xf32, #tpu.memory_space<vmem>> -> memref<128xf32, #tpu.memory_space<vmem>>
    %369 = tpu.memref_slice %arg9[%c6_i32_352] : memref<8x!tpu.dma_semaphore, #tpu.memory_space<semaphore_mem>> -> memref<1x!tpu.dma_semaphore, #tpu.memory_space<semaphore_mem>>
    %370 = tpu.memref_squeeze %369 : memref<1x!tpu.dma_semaphore, #tpu.memory_space<semaphore_mem>> -> memref<!tpu.dma_semaphore, #tpu.memory_space<semaphore_mem>>
    tpu.enqueue_dma source(%366 : memref<128xf32, #tpu.memory_space<any>>) target(%368 : memref<128xf32, #tpu.memory_space<vmem>>) target_semaphore(%370 : memref<!tpu.dma_semaphore, #tpu.memory_space<semaphore_mem>>)
    %c6_355 = arith.constant 6 : index
    %c5_356 = arith.constant 5 : index
    %371 = memref.load %arg1[%c6_355, %c5_356] : memref<8x8xi32, #tpu.memory_space<smem>>
    %c5_i32_357 = arith.constant 5 : i32
    %c6_i32_358 = arith.constant 6 : i32
    %c6_i32_359 = arith.constant 6 : i32
    %c0_i32_360 = arith.constant 0 : i32
    %372 = tpu.memref_slice %arg2[%371, %c0_i32_360] : memref<10000x128xf32, #tpu.memory_space<any>> -> memref<1x128xf32, #tpu.memory_space<any>>
    %373 = tpu.memref_squeeze %372 : memref<1x128xf32, #tpu.memory_space<any>> -> memref<128xf32, #tpu.memory_space<any>>
    %c0_i32_361 = arith.constant 0 : i32
    %374 = tpu.memref_slice %arg8[%c5_i32_357, %c6_i32_358, %c0_i32_361] : memref<8x8x128xf32, #tpu.memory_space<vmem>> -> memref<1x1x128xf32, #tpu.memory_space<vmem>>
    %375 = tpu.memref_squeeze %374 : memref<1x1x128xf32, #tpu.memory_space<vmem>> -> memref<128xf32, #tpu.memory_space<vmem>>
    %376 = tpu.memref_slice %arg9[%c6_i32_359] : memref<8x!tpu.dma_semaphore, #tpu.memory_space<semaphore_mem>> -> memref<1x!tpu.dma_semaphore, #tpu.memory_space<semaphore_mem>>
    %377 = tpu.memref_squeeze %376 : memref<1x!tpu.dma_semaphore, #tpu.memory_space<semaphore_mem>> -> memref<!tpu.dma_semaphore, #tpu.memory_space<semaphore_mem>>
    tpu.enqueue_dma source(%373 : memref<128xf32, #tpu.memory_space<any>>) target(%375 : memref<128xf32, #tpu.memory_space<vmem>>) target_semaphore(%377 : memref<!tpu.dma_semaphore, #tpu.memory_space<semaphore_mem>>)
    %c6_362 = arith.constant 6 : index
    %c6_363 = arith.constant 6 : index
    %378 = memref.load %arg1[%c6_362, %c6_363] : memref<8x8xi32, #tpu.memory_space<smem>>
    %c6_i32_364 = arith.constant 6 : i32
    %c6_i32_365 = arith.constant 6 : i32
    %c6_i32_366 = arith.constant 6 : i32
    %c0_i32_367 = arith.constant 0 : i32
    %379 = tpu.memref_slice %arg2[%378, %c0_i32_367] : memref<10000x128xf32, #tpu.memory_space<any>> -> memref<1x128xf32, #tpu.memory_space<any>>
    %380 = tpu.memref_squeeze %379 : memref<1x128xf32, #tpu.memory_space<any>> -> memref<128xf32, #tpu.memory_space<any>>
    %c0_i32_368 = arith.constant 0 : i32
    %381 = tpu.memref_slice %arg8[%c6_i32_364, %c6_i32_365, %c0_i32_368] : memref<8x8x128xf32, #tpu.memory_space<vmem>> -> memref<1x1x128xf32, #tpu.memory_space<vmem>>
    %382 = tpu.memref_squeeze %381 : memref<1x1x128xf32, #tpu.memory_space<vmem>> -> memref<128xf32, #tpu.memory_space<vmem>>
    %383 = tpu.memref_slice %arg9[%c6_i32_366] : memref<8x!tpu.dma_semaphore, #tpu.memory_space<semaphore_mem>> -> memref<1x!tpu.dma_semaphore, #tpu.memory_space<semaphore_mem>>
    %384 = tpu.memref_squeeze %383 : memref<1x!tpu.dma_semaphore, #tpu.memory_space<semaphore_mem>> -> memref<!tpu.dma_semaphore, #tpu.memory_space<semaphore_mem>>
    tpu.enqueue_dma source(%380 : memref<128xf32, #tpu.memory_space<any>>) target(%382 : memref<128xf32, #tpu.memory_space<vmem>>) target_semaphore(%384 : memref<!tpu.dma_semaphore, #tpu.memory_space<semaphore_mem>>)
    %c6_369 = arith.constant 6 : index
    %c7_370 = arith.constant 7 : index
    %385 = memref.load %arg1[%c6_369, %c7_370] : memref<8x8xi32, #tpu.memory_space<smem>>
    %c7_i32_371 = arith.constant 7 : i32
    %c6_i32_372 = arith.constant 6 : i32
    %c6_i32_373 = arith.constant 6 : i32
    %c0_i32_374 = arith.constant 0 : i32
    %386 = tpu.memref_slice %arg2[%385, %c0_i32_374] : memref<10000x128xf32, #tpu.memory_space<any>> -> memref<1x128xf32, #tpu.memory_space<any>>
    %387 = tpu.memref_squeeze %386 : memref<1x128xf32, #tpu.memory_space<any>> -> memref<128xf32, #tpu.memory_space<any>>
    %c0_i32_375 = arith.constant 0 : i32
    %388 = tpu.memref_slice %arg8[%c7_i32_371, %c6_i32_372, %c0_i32_375] : memref<8x8x128xf32, #tpu.memory_space<vmem>> -> memref<1x1x128xf32, #tpu.memory_space<vmem>>
    %389 = tpu.memref_squeeze %388 : memref<1x1x128xf32, #tpu.memory_space<vmem>> -> memref<128xf32, #tpu.memory_space<vmem>>
    %390 = tpu.memref_slice %arg9[%c6_i32_373] : memref<8x!tpu.dma_semaphore, #tpu.memory_space<semaphore_mem>> -> memref<1x!tpu.dma_semaphore, #tpu.memory_space<semaphore_mem>>
    %391 = tpu.memref_squeeze %390 : memref<1x!tpu.dma_semaphore, #tpu.memory_space<semaphore_mem>> -> memref<!tpu.dma_semaphore, #tpu.memory_space<semaphore_mem>>
    tpu.enqueue_dma source(%387 : memref<128xf32, #tpu.memory_space<any>>) target(%389 : memref<128xf32, #tpu.memory_space<vmem>>) target_semaphore(%391 : memref<!tpu.dma_semaphore, #tpu.memory_space<semaphore_mem>>)
    %c7_376 = arith.constant 7 : index
    %c0_377 = arith.constant 0 : index
    %392 = memref.load %arg1[%c7_376, %c0_377] : memref<8x8xi32, #tpu.memory_space<smem>>
    %c0_i32_378 = arith.constant 0 : i32
    %c7_i32_379 = arith.constant 7 : i32
    %c7_i32_380 = arith.constant 7 : i32
    %c0_i32_381 = arith.constant 0 : i32
    %393 = tpu.memref_slice %arg2[%392, %c0_i32_381] : memref<10000x128xf32, #tpu.memory_space<any>> -> memref<1x128xf32, #tpu.memory_space<any>>
    %394 = tpu.memref_squeeze %393 : memref<1x128xf32, #tpu.memory_space<any>> -> memref<128xf32, #tpu.memory_space<any>>
    %c0_i32_382 = arith.constant 0 : i32
    %395 = tpu.memref_slice %arg8[%c0_i32_378, %c7_i32_379, %c0_i32_382] : memref<8x8x128xf32, #tpu.memory_space<vmem>> -> memref<1x1x128xf32, #tpu.memory_space<vmem>>
    %396 = tpu.memref_squeeze %395 : memref<1x1x128xf32, #tpu.memory_space<vmem>> -> memref<128xf32, #tpu.memory_space<vmem>>
    %397 = tpu.memref_slice %arg9[%c7_i32_380] : memref<8x!tpu.dma_semaphore, #tpu.memory_space<semaphore_mem>> -> memref<1x!tpu.dma_semaphore, #tpu.memory_space<semaphore_mem>>
    %398 = tpu.memref_squeeze %397 : memref<1x!tpu.dma_semaphore, #tpu.memory_space<semaphore_mem>> -> memref<!tpu.dma_semaphore, #tpu.memory_space<semaphore_mem>>
    tpu.enqueue_dma source(%394 : memref<128xf32, #tpu.memory_space<any>>) target(%396 : memref<128xf32, #tpu.memory_space<vmem>>) target_semaphore(%398 : memref<!tpu.dma_semaphore, #tpu.memory_space<semaphore_mem>>)
    %c7_383 = arith.constant 7 : index
    %c1_384 = arith.constant 1 : index
    %399 = memref.load %arg1[%c7_383, %c1_384] : memref<8x8xi32, #tpu.memory_space<smem>>
    %c1_i32_385 = arith.constant 1 : i32
    %c7_i32_386 = arith.constant 7 : i32
    %c7_i32_387 = arith.constant 7 : i32
    %c0_i32_388 = arith.constant 0 : i32
    %400 = tpu.memref_slice %arg2[%399, %c0_i32_388] : memref<10000x128xf32, #tpu.memory_space<any>> -> memref<1x128xf32, #tpu.memory_space<any>>
    %401 = tpu.memref_squeeze %400 : memref<1x128xf32, #tpu.memory_space<any>> -> memref<128xf32, #tpu.memory_space<any>>
    %c0_i32_389 = arith.constant 0 : i32
    %402 = tpu.memref_slice %arg8[%c1_i32_385, %c7_i32_386, %c0_i32_389] : memref<8x8x128xf32, #tpu.memory_space<vmem>> -> memref<1x1x128xf32, #tpu.memory_space<vmem>>
    %403 = tpu.memref_squeeze %402 : memref<1x1x128xf32, #tpu.memory_space<vmem>> -> memref<128xf32, #tpu.memory_space<vmem>>
    %404 = tpu.memref_slice %arg9[%c7_i32_387] : memref<8x!tpu.dma_semaphore, #tpu.memory_space<semaphore_mem>> -> memref<1x!tpu.dma_semaphore, #tpu.memory_space<semaphore_mem>>
    %405 = tpu.memref_squeeze %404 : memref<1x!tpu.dma_semaphore, #tpu.memory_space<semaphore_mem>> -> memref<!tpu.dma_semaphore, #tpu.memory_space<semaphore_mem>>
    tpu.enqueue_dma source(%401 : memref<128xf32, #tpu.memory_space<any>>) target(%403 : memref<128xf32, #tpu.memory_space<vmem>>) target_semaphore(%405 : memref<!tpu.dma_semaphore, #tpu.memory_space<semaphore_mem>>)
    %c7_390 = arith.constant 7 : index
    %c2_391 = arith.constant 2 : index
    %406 = memref.load %arg1[%c7_390, %c2_391] : memref<8x8xi32, #tpu.memory_space<smem>>
    %c2_i32_392 = arith.constant 2 : i32
    %c7_i32_393 = arith.constant 7 : i32
    %c7_i32_394 = arith.constant 7 : i32
    %c0_i32_395 = arith.constant 0 : i32
    %407 = tpu.memref_slice %arg2[%406, %c0_i32_395] : memref<10000x128xf32, #tpu.memory_space<any>> -> memref<1x128xf32, #tpu.memory_space<any>>
    %408 = tpu.memref_squeeze %407 : memref<1x128xf32, #tpu.memory_space<any>> -> memref<128xf32, #tpu.memory_space<any>>
    %c0_i32_396 = arith.constant 0 : i32
    %409 = tpu.memref_slice %arg8[%c2_i32_392, %c7_i32_393, %c0_i32_396] : memref<8x8x128xf32, #tpu.memory_space<vmem>> -> memref<1x1x128xf32, #tpu.memory_space<vmem>>
    %410 = tpu.memref_squeeze %409 : memref<1x1x128xf32, #tpu.memory_space<vmem>> -> memref<128xf32, #tpu.memory_space<vmem>>
    %411 = tpu.memref_slice %arg9[%c7_i32_394] : memref<8x!tpu.dma_semaphore, #tpu.memory_space<semaphore_mem>> -> memref<1x!tpu.dma_semaphore, #tpu.memory_space<semaphore_mem>>
    %412 = tpu.memref_squeeze %411 : memref<1x!tpu.dma_semaphore, #tpu.memory_space<semaphore_mem>> -> memref<!tpu.dma_semaphore, #tpu.memory_space<semaphore_mem>>
    tpu.enqueue_dma source(%408 : memref<128xf32, #tpu.memory_space<any>>) target(%410 : memref<128xf32, #tpu.memory_space<vmem>>) target_semaphore(%412 : memref<!tpu.dma_semaphore, #tpu.memory_space<semaphore_mem>>)
    %c7_397 = arith.constant 7 : index
    %c3_398 = arith.constant 3 : index
    %413 = memref.load %arg1[%c7_397, %c3_398] : memref<8x8xi32, #tpu.memory_space<smem>>
    %c3_i32_399 = arith.constant 3 : i32
    %c7_i32_400 = arith.constant 7 : i32
    %c7_i32_401 = arith.constant 7 : i32
    %c0_i32_402 = arith.constant 0 : i32
    %414 = tpu.memref_slice %arg2[%413, %c0_i32_402] : memref<10000x128xf32, #tpu.memory_space<any>> -> memref<1x128xf32, #tpu.memory_space<any>>
    %415 = tpu.memref_squeeze %414 : memref<1x128xf32, #tpu.memory_space<any>> -> memref<128xf32, #tpu.memory_space<any>>
    %c0_i32_403 = arith.constant 0 : i32
    %416 = tpu.memref_slice %arg8[%c3_i32_399, %c7_i32_400, %c0_i32_403] : memref<8x8x128xf32, #tpu.memory_space<vmem>> -> memref<1x1x128xf32, #tpu.memory_space<vmem>>
    %417 = tpu.memref_squeeze %416 : memref<1x1x128xf32, #tpu.memory_space<vmem>> -> memref<128xf32, #tpu.memory_space<vmem>>
    %418 = tpu.memref_slice %arg9[%c7_i32_401] : memref<8x!tpu.dma_semaphore, #tpu.memory_space<semaphore_mem>> -> memref<1x!tpu.dma_semaphore, #tpu.memory_space<semaphore_mem>>
    %419 = tpu.memref_squeeze %418 : memref<1x!tpu.dma_semaphore, #tpu.memory_space<semaphore_mem>> -> memref<!tpu.dma_semaphore, #tpu.memory_space<semaphore_mem>>
    tpu.enqueue_dma source(%415 : memref<128xf32, #tpu.memory_space<any>>) target(%417 : memref<128xf32, #tpu.memory_space<vmem>>) target_semaphore(%419 : memref<!tpu.dma_semaphore, #tpu.memory_space<semaphore_mem>>)
    %c7_404 = arith.constant 7 : index
    %c4_405 = arith.constant 4 : index
    %420 = memref.load %arg1[%c7_404, %c4_405] : memref<8x8xi32, #tpu.memory_space<smem>>
    %c4_i32_406 = arith.constant 4 : i32
    %c7_i32_407 = arith.constant 7 : i32
    %c7_i32_408 = arith.constant 7 : i32
    %c0_i32_409 = arith.constant 0 : i32
    %421 = tpu.memref_slice %arg2[%420, %c0_i32_409] : memref<10000x128xf32, #tpu.memory_space<any>> -> memref<1x128xf32, #tpu.memory_space<any>>
    %422 = tpu.memref_squeeze %421 : memref<1x128xf32, #tpu.memory_space<any>> -> memref<128xf32, #tpu.memory_space<any>>
    %c0_i32_410 = arith.constant 0 : i32
    %423 = tpu.memref_slice %arg8[%c4_i32_406, %c7_i32_407, %c0_i32_410] : memref<8x8x128xf32, #tpu.memory_space<vmem>> -> memref<1x1x128xf32, #tpu.memory_space<vmem>>
    %424 = tpu.memref_squeeze %423 : memref<1x1x128xf32, #tpu.memory_space<vmem>> -> memref<128xf32, #tpu.memory_space<vmem>>
    %425 = tpu.memref_slice %arg9[%c7_i32_408] : memref<8x!tpu.dma_semaphore, #tpu.memory_space<semaphore_mem>> -> memref<1x!tpu.dma_semaphore, #tpu.memory_space<semaphore_mem>>
    %426 = tpu.memref_squeeze %425 : memref<1x!tpu.dma_semaphore, #tpu.memory_space<semaphore_mem>> -> memref<!tpu.dma_semaphore, #tpu.memory_space<semaphore_mem>>
    tpu.enqueue_dma source(%422 : memref<128xf32, #tpu.memory_space<any>>) target(%424 : memref<128xf32, #tpu.memory_space<vmem>>) target_semaphore(%426 : memref<!tpu.dma_semaphore, #tpu.memory_space<semaphore_mem>>)
    %c7_411 = arith.constant 7 : index
    %c5_412 = arith.constant 5 : index
    %427 = memref.load %arg1[%c7_411, %c5_412] : memref<8x8xi32, #tpu.memory_space<smem>>
    %c5_i32_413 = arith.constant 5 : i32
    %c7_i32_414 = arith.constant 7 : i32
    %c7_i32_415 = arith.constant 7 : i32
    %c0_i32_416 = arith.constant 0 : i32
    %428 = tpu.memref_slice %arg2[%427, %c0_i32_416] : memref<10000x128xf32, #tpu.memory_space<any>> -> memref<1x128xf32, #tpu.memory_space<any>>
    %429 = tpu.memref_squeeze %428 : memref<1x128xf32, #tpu.memory_space<any>> -> memref<128xf32, #tpu.memory_space<any>>
    %c0_i32_417 = arith.constant 0 : i32
    %430 = tpu.memref_slice %arg8[%c5_i32_413, %c7_i32_414, %c0_i32_417] : memref<8x8x128xf32, #tpu.memory_space<vmem>> -> memref<1x1x128xf32, #tpu.memory_space<vmem>>
    %431 = tpu.memref_squeeze %430 : memref<1x1x128xf32, #tpu.memory_space<vmem>> -> memref<128xf32, #tpu.memory_space<vmem>>
    %432 = tpu.memref_slice %arg9[%c7_i32_415] : memref<8x!tpu.dma_semaphore, #tpu.memory_space<semaphore_mem>> -> memref<1x!tpu.dma_semaphore, #tpu.memory_space<semaphore_mem>>
    %433 = tpu.memref_squeeze %432 : memref<1x!tpu.dma_semaphore, #tpu.memory_space<semaphore_mem>> -> memref<!tpu.dma_semaphore, #tpu.memory_space<semaphore_mem>>
    tpu.enqueue_dma source(%429 : memref<128xf32, #tpu.memory_space<any>>) target(%431 : memref<128xf32, #tpu.memory_space<vmem>>) target_semaphore(%433 : memref<!tpu.dma_semaphore, #tpu.memory_space<semaphore_mem>>)
    %c7_418 = arith.constant 7 : index
    %c6_419 = arith.constant 6 : index
    %434 = memref.load %arg1[%c7_418, %c6_419] : memref<8x8xi32, #tpu.memory_space<smem>>
    %c6_i32_420 = arith.constant 6 : i32
    %c7_i32_421 = arith.constant 7 : i32
    %c7_i32_422 = arith.constant 7 : i32
    %c0_i32_423 = arith.constant 0 : i32
    %435 = tpu.memref_slice %arg2[%434, %c0_i32_423] : memref<10000x128xf32, #tpu.memory_space<any>> -> memref<1x128xf32, #tpu.memory_space<any>>
    %436 = tpu.memref_squeeze %435 : memref<1x128xf32, #tpu.memory_space<any>> -> memref<128xf32, #tpu.memory_space<any>>
    %c0_i32_424 = arith.constant 0 : i32
    %437 = tpu.memref_slice %arg8[%c6_i32_420, %c7_i32_421, %c0_i32_424] : memref<8x8x128xf32, #tpu.memory_space<vmem>> -> memref<1x1x128xf32, #tpu.memory_space<vmem>>
    %438 = tpu.memref_squeeze %437 : memref<1x1x128xf32, #tpu.memory_space<vmem>> -> memref<128xf32, #tpu.memory_space<vmem>>
    %439 = tpu.memref_slice %arg9[%c7_i32_422] : memref<8x!tpu.dma_semaphore, #tpu.memory_space<semaphore_mem>> -> memref<1x!tpu.dma_semaphore, #tpu.memory_space<semaphore_mem>>
    %440 = tpu.memref_squeeze %439 : memref<1x!tpu.dma_semaphore, #tpu.memory_space<semaphore_mem>> -> memref<!tpu.dma_semaphore, #tpu.memory_space<semaphore_mem>>
    tpu.enqueue_dma source(%436 : memref<128xf32, #tpu.memory_space<any>>) target(%438 : memref<128xf32, #tpu.memory_space<vmem>>) target_semaphore(%440 : memref<!tpu.dma_semaphore, #tpu.memory_space<semaphore_mem>>)
    %c7_425 = arith.constant 7 : index
    %c7_426 = arith.constant 7 : index
    %441 = memref.load %arg1[%c7_425, %c7_426] : memref<8x8xi32, #tpu.memory_space<smem>>
    %c7_i32_427 = arith.constant 7 : i32
    %c7_i32_428 = arith.constant 7 : i32
    %c7_i32_429 = arith.constant 7 : i32
    %c0_i32_430 = arith.constant 0 : i32
    %442 = tpu.memref_slice %arg2[%441, %c0_i32_430] : memref<10000x128xf32, #tpu.memory_space<any>> -> memref<1x128xf32, #tpu.memory_space<any>>
    %443 = tpu.memref_squeeze %442 : memref<1x128xf32, #tpu.memory_space<any>> -> memref<128xf32, #tpu.memory_space<any>>
    %c0_i32_431 = arith.constant 0 : i32
    %444 = tpu.memref_slice %arg8[%c7_i32_427, %c7_i32_428, %c0_i32_431] : memref<8x8x128xf32, #tpu.memory_space<vmem>> -> memref<1x1x128xf32, #tpu.memory_space<vmem>>
    %445 = tpu.memref_squeeze %444 : memref<1x1x128xf32, #tpu.memory_space<vmem>> -> memref<128xf32, #tpu.memory_space<vmem>>
    %446 = tpu.memref_slice %arg9[%c7_i32_429] : memref<8x!tpu.dma_semaphore, #tpu.memory_space<semaphore_mem>> -> memref<1x!tpu.dma_semaphore, #tpu.memory_space<semaphore_mem>>
    %447 = tpu.memref_squeeze %446 : memref<1x!tpu.dma_semaphore, #tpu.memory_space<semaphore_mem>> -> memref<!tpu.dma_semaphore, #tpu.memory_space<semaphore_mem>>
    tpu.enqueue_dma source(%443 : memref<128xf32, #tpu.memory_space<any>>) target(%445 : memref<128xf32, #tpu.memory_space<vmem>>) target_semaphore(%447 : memref<!tpu.dma_semaphore, #tpu.memory_space<semaphore_mem>>)
    %c0_i32_432 = arith.constant 0 : i32
    %c0_i32_433 = arith.constant 0 : i32
    %c0_i32_434 = arith.constant 0 : i32
    %c0_i32_435 = arith.constant 0 : i32
    %c0_i32_436 = arith.constant 0 : i32
    %448 = tpu.memref_slice %arg2[%c0_i32_432, %c0_i32_436] : memref<10000x128xf32, #tpu.memory_space<any>> -> memref<1x128xf32, #tpu.memory_space<any>>
    %449 = tpu.memref_squeeze %448 : memref<1x128xf32, #tpu.memory_space<any>> -> memref<128xf32, #tpu.memory_space<any>>
    %c0_i32_437 = arith.constant 0 : i32
    %450 = tpu.memref_slice %arg8[%c0_i32_433, %c0_i32_434, %c0_i32_437] : memref<8x8x128xf32, #tpu.memory_space<vmem>> -> memref<1x1x128xf32, #tpu.memory_space<vmem>>
    %451 = tpu.memref_squeeze %450 : memref<1x1x128xf32, #tpu.memory_space<vmem>> -> memref<128xf32, #tpu.memory_space<vmem>>
    %452 = tpu.memref_slice %arg9[%c0_i32_435] : memref<8x!tpu.dma_semaphore, #tpu.memory_space<semaphore_mem>> -> memref<1x!tpu.dma_semaphore, #tpu.memory_space<semaphore_mem>>
    %453 = tpu.memref_squeeze %452 : memref<1x!tpu.dma_semaphore, #tpu.memory_space<semaphore_mem>> -> memref<!tpu.dma_semaphore, #tpu.memory_space<semaphore_mem>>
    tpu.wait_dma2 semaphore(%453 : memref<!tpu.dma_semaphore, #tpu.memory_space<semaphore_mem>>) src(%449 : memref<128xf32, #tpu.memory_space<any>>) dst(%451 : memref<128xf32, #tpu.memory_space<vmem>>)
    %c0_i32_438 = arith.constant 0 : i32
    %c1_i32_439 = arith.constant 1 : i32
    %c0_i32_440 = arith.constant 0 : i32
    %c0_i32_441 = arith.constant 0 : i32
    %c0_i32_442 = arith.constant 0 : i32
    %454 = tpu.memref_slice %arg2[%c0_i32_438, %c0_i32_442] : memref<10000x128xf32, #tpu.memory_space<any>> -> memref<1x128xf32, #tpu.memory_space<any>>
    %455 = tpu.memref_squeeze %454 : memref<1x128xf32, #tpu.memory_space<any>> -> memref<128xf32, #tpu.memory_space<any>>
    %c0_i32_443 = arith.constant 0 : i32
    %456 = tpu.memref_slice %arg8[%c1_i32_439, %c0_i32_440, %c0_i32_443] : memref<8x8x128xf32, #tpu.memory_space<vmem>> -> memref<1x1x128xf32, #tpu.memory_space<vmem>>
    %457 = tpu.memref_squeeze %456 : memref<1x1x128xf32, #tpu.memory_space<vmem>> -> memref<128xf32, #tpu.memory_space<vmem>>
    %458 = tpu.memref_slice %arg9[%c0_i32_441] : memref<8x!tpu.dma_semaphore, #tpu.memory_space<semaphore_mem>> -> memref<1x!tpu.dma_semaphore, #tpu.memory_space<semaphore_mem>>
    %459 = tpu.memref_squeeze %458 : memref<1x!tpu.dma_semaphore, #tpu.memory_space<semaphore_mem>> -> memref<!tpu.dma_semaphore, #tpu.memory_space<semaphore_mem>>
    tpu.wait_dma2 semaphore(%459 : memref<!tpu.dma_semaphore, #tpu.memory_space<semaphore_mem>>) src(%455 : memref<128xf32, #tpu.memory_space<any>>) dst(%457 : memref<128xf32, #tpu.memory_space<vmem>>)
    %c0_i32_444 = arith.constant 0 : i32
    %c2_i32_445 = arith.constant 2 : i32
    %c0_i32_446 = arith.constant 0 : i32
    %c0_i32_447 = arith.constant 0 : i32
    %c0_i32_448 = arith.constant 0 : i32
    %460 = tpu.memref_slice %arg2[%c0_i32_444, %c0_i32_448] : memref<10000x128xf32, #tpu.memory_space<any>> -> memref<1x128xf32, #tpu.memory_space<any>>
    %461 = tpu.memref_squeeze %460 : memref<1x128xf32, #tpu.memory_space<any>> -> memref<128xf32, #tpu.memory_space<any>>
    %c0_i32_449 = arith.constant 0 : i32
    %462 = tpu.memref_slice %arg8[%c2_i32_445, %c0_i32_446, %c0_i32_449] : memref<8x8x128xf32, #tpu.memory_space<vmem>> -> memref<1x1x128xf32, #tpu.memory_space<vmem>>
    %463 = tpu.memref_squeeze %462 : memref<1x1x128xf32, #tpu.memory_space<vmem>> -> memref<128xf32, #tpu.memory_space<vmem>>
    %464 = tpu.memref_slice %arg9[%c0_i32_447] : memref<8x!tpu.dma_semaphore, #tpu.memory_space<semaphore_mem>> -> memref<1x!tpu.dma_semaphore, #tpu.memory_space<semaphore_mem>>
    %465 = tpu.memref_squeeze %464 : memref<1x!tpu.dma_semaphore, #tpu.memory_space<semaphore_mem>> -> memref<!tpu.dma_semaphore, #tpu.memory_space<semaphore_mem>>
    tpu.wait_dma2 semaphore(%465 : memref<!tpu.dma_semaphore, #tpu.memory_space<semaphore_mem>>) src(%461 : memref<128xf32, #tpu.memory_space<any>>) dst(%463 : memref<128xf32, #tpu.memory_space<vmem>>)
    %c0_i32_450 = arith.constant 0 : i32
    %c3_i32_451 = arith.constant 3 : i32
    %c0_i32_452 = arith.constant 0 : i32
    %c0_i32_453 = arith.constant 0 : i32
    %c0_i32_454 = arith.constant 0 : i32
    %466 = tpu.memref_slice %arg2[%c0_i32_450, %c0_i32_454] : memref<10000x128xf32, #tpu.memory_space<any>> -> memref<1x128xf32, #tpu.memory_space<any>>
    %467 = tpu.memref_squeeze %466 : memref<1x128xf32, #tpu.memory_space<any>> -> memref<128xf32, #tpu.memory_space<any>>
    %c0_i32_455 = arith.constant 0 : i32
    %468 = tpu.memref_slice %arg8[%c3_i32_451, %c0_i32_452, %c0_i32_455] : memref<8x8x128xf32, #tpu.memory_space<vmem>> -> memref<1x1x128xf32, #tpu.memory_space<vmem>>
    %469 = tpu.memref_squeeze %468 : memref<1x1x128xf32, #tpu.memory_space<vmem>> -> memref<128xf32, #tpu.memory_space<vmem>>
    %470 = tpu.memref_slice %arg9[%c0_i32_453] : memref<8x!tpu.dma_semaphore, #tpu.memory_space<semaphore_mem>> -> memref<1x!tpu.dma_semaphore, #tpu.memory_space<semaphore_mem>>
    %471 = tpu.memref_squeeze %470 : memref<1x!tpu.dma_semaphore, #tpu.memory_space<semaphore_mem>> -> memref<!tpu.dma_semaphore, #tpu.memory_space<semaphore_mem>>
    tpu.wait_dma2 semaphore(%471 : memref<!tpu.dma_semaphore, #tpu.memory_space<semaphore_mem>>) src(%467 : memref<128xf32, #tpu.memory_space<any>>) dst(%469 : memref<128xf32, #tpu.memory_space<vmem>>)
    %c0_i32_456 = arith.constant 0 : i32
    %c4_i32_457 = arith.constant 4 : i32
    %c0_i32_458 = arith.constant 0 : i32
    %c0_i32_459 = arith.constant 0 : i32
    %c0_i32_460 = arith.constant 0 : i32
    %472 = tpu.memref_slice %arg2[%c0_i32_456, %c0_i32_460] : memref<10000x128xf32, #tpu.memory_space<any>> -> memref<1x128xf32, #tpu.memory_space<any>>
    %473 = tpu.memref_squeeze %472 : memref<1x128xf32, #tpu.memory_space<any>> -> memref<128xf32, #tpu.memory_space<any>>
    %c0_i32_461 = arith.constant 0 : i32
    %474 = tpu.memref_slice %arg8[%c4_i32_457, %c0_i32_458, %c0_i32_461] : memref<8x8x128xf32, #tpu.memory_space<vmem>> -> memref<1x1x128xf32, #tpu.memory_space<vmem>>
    %475 = tpu.memref_squeeze %474 : memref<1x1x128xf32, #tpu.memory_space<vmem>> -> memref<128xf32, #tpu.memory_space<vmem>>
    %476 = tpu.memref_slice %arg9[%c0_i32_459] : memref<8x!tpu.dma_semaphore, #tpu.memory_space<semaphore_mem>> -> memref<1x!tpu.dma_semaphore, #tpu.memory_space<semaphore_mem>>
    %477 = tpu.memref_squeeze %476 : memref<1x!tpu.dma_semaphore, #tpu.memory_space<semaphore_mem>> -> memref<!tpu.dma_semaphore, #tpu.memory_space<semaphore_mem>>
    tpu.wait_dma2 semaphore(%477 : memref<!tpu.dma_semaphore, #tpu.memory_space<semaphore_mem>>) src(%473 : memref<128xf32, #tpu.memory_space<any>>) dst(%475 : memref<128xf32, #tpu.memory_space<vmem>>)
    %c0_i32_462 = arith.constant 0 : i32
    %c5_i32_463 = arith.constant 5 : i32
    %c0_i32_464 = arith.constant 0 : i32
    %c0_i32_465 = arith.constant 0 : i32
    %c0_i32_466 = arith.constant 0 : i32
    %478 = tpu.memref_slice %arg2[%c0_i32_462, %c0_i32_466] : memref<10000x128xf32, #tpu.memory_space<any>> -> memref<1x128xf32, #tpu.memory_space<any>>
    %479 = tpu.memref_squeeze %478 : memref<1x128xf32, #tpu.memory_space<any>> -> memref<128xf32, #tpu.memory_space<any>>
    %c0_i32_467 = arith.constant 0 : i32
    %480 = tpu.memref_slice %arg8[%c5_i32_463, %c0_i32_464, %c0_i32_467] : memref<8x8x128xf32, #tpu.memory_space<vmem>> -> memref<1x1x128xf32, #tpu.memory_space<vmem>>
    %481 = tpu.memref_squeeze %480 : memref<1x1x128xf32, #tpu.memory_space<vmem>> -> memref<128xf32, #tpu.memory_space<vmem>>
    %482 = tpu.memref_slice %arg9[%c0_i32_465] : memref<8x!tpu.dma_semaphore, #tpu.memory_space<semaphore_mem>> -> memref<1x!tpu.dma_semaphore, #tpu.memory_space<semaphore_mem>>
    %483 = tpu.memref_squeeze %482 : memref<1x!tpu.dma_semaphore, #tpu.memory_space<semaphore_mem>> -> memref<!tpu.dma_semaphore, #tpu.memory_space<semaphore_mem>>
    tpu.wait_dma2 semaphore(%483 : memref<!tpu.dma_semaphore, #tpu.memory_space<semaphore_mem>>) src(%479 : memref<128xf32, #tpu.memory_space<any>>) dst(%481 : memref<128xf32, #tpu.memory_space<vmem>>)
    %c0_i32_468 = arith.constant 0 : i32
    %c6_i32_469 = arith.constant 6 : i32
    %c0_i32_470 = arith.constant 0 : i32
    %c0_i32_471 = arith.constant 0 : i32
    %c0_i32_472 = arith.constant 0 : i32
    %484 = tpu.memref_slice %arg2[%c0_i32_468, %c0_i32_472] : memref<10000x128xf32, #tpu.memory_space<any>> -> memref<1x128xf32, #tpu.memory_space<any>>
    %485 = tpu.memref_squeeze %484 : memref<1x128xf32, #tpu.memory_space<any>> -> memref<128xf32, #tpu.memory_space<any>>
    %c0_i32_473 = arith.constant 0 : i32
    %486 = tpu.memref_slice %arg8[%c6_i32_469, %c0_i32_470, %c0_i32_473] : memref<8x8x128xf32, #tpu.memory_space<vmem>> -> memref<1x1x128xf32, #tpu.memory_space<vmem>>
    %487 = tpu.memref_squeeze %486 : memref<1x1x128xf32, #tpu.memory_space<vmem>> -> memref<128xf32, #tpu.memory_space<vmem>>
    %488 = tpu.memref_slice %arg9[%c0_i32_471] : memref<8x!tpu.dma_semaphore, #tpu.memory_space<semaphore_mem>> -> memref<1x!tpu.dma_semaphore, #tpu.memory_space<semaphore_mem>>
    %489 = tpu.memref_squeeze %488 : memref<1x!tpu.dma_semaphore, #tpu.memory_space<semaphore_mem>> -> memref<!tpu.dma_semaphore, #tpu.memory_space<semaphore_mem>>
    tpu.wait_dma2 semaphore(%489 : memref<!tpu.dma_semaphore, #tpu.memory_space<semaphore_mem>>) src(%485 : memref<128xf32, #tpu.memory_space<any>>) dst(%487 : memref<128xf32, #tpu.memory_space<vmem>>)
    %c0_i32_474 = arith.constant 0 : i32
    %c7_i32_475 = arith.constant 7 : i32
    %c0_i32_476 = arith.constant 0 : i32
    %c0_i32_477 = arith.constant 0 : i32
    %c0_i32_478 = arith.constant 0 : i32
    %490 = tpu.memref_slice %arg2[%c0_i32_474, %c0_i32_478] : memref<10000x128xf32, #tpu.memory_space<any>> -> memref<1x128xf32, #tpu.memory_space<any>>
    %491 = tpu.memref_squeeze %490 : memref<1x128xf32, #tpu.memory_space<any>> -> memref<128xf32, #tpu.memory_space<any>>
    %c0_i32_479 = arith.constant 0 : i32
    %492 = tpu.memref_slice %arg8[%c7_i32_475, %c0_i32_476, %c0_i32_479] : memref<8x8x128xf32, #tpu.memory_space<vmem>> -> memref<1x1x128xf32, #tpu.memory_space<vmem>>
    %493 = tpu.memref_squeeze %492 : memref<1x1x128xf32, #tpu.memory_space<vmem>> -> memref<128xf32, #tpu.memory_space<vmem>>
    %494 = tpu.memref_slice %arg9[%c0_i32_477] : memref<8x!tpu.dma_semaphore, #tpu.memory_space<semaphore_mem>> -> memref<1x!tpu.dma_semaphore, #tpu.memory_space<semaphore_mem>>
    %495 = tpu.memref_squeeze %494 : memref<1x!tpu.dma_semaphore, #tpu.memory_space<semaphore_mem>> -> memref<!tpu.dma_semaphore, #tpu.memory_space<semaphore_mem>>
    tpu.wait_dma2 semaphore(%495 : memref<!tpu.dma_semaphore, #tpu.memory_space<semaphore_mem>>) src(%491 : memref<128xf32, #tpu.memory_space<any>>) dst(%493 : memref<128xf32, #tpu.memory_space<vmem>>)
    %c0_i32_480 = arith.constant 0 : i32
    %c0_i32_481 = arith.constant 0 : i32
    %c1_i32_482 = arith.constant 1 : i32
    %c1_i32_483 = arith.constant 1 : i32
    %c0_i32_484 = arith.constant 0 : i32
    %496 = tpu.memref_slice %arg2[%c0_i32_480, %c0_i32_484] : memref<10000x128xf32, #tpu.memory_space<any>> -> memref<1x128xf32, #tpu.memory_space<any>>
    %497 = tpu.memref_squeeze %496 : memref<1x128xf32, #tpu.memory_space<any>> -> memref<128xf32, #tpu.memory_space<any>>
    %c0_i32_485 = arith.constant 0 : i32
    %498 = tpu.memref_slice %arg8[%c0_i32_481, %c1_i32_482, %c0_i32_485] : memref<8x8x128xf32, #tpu.memory_space<vmem>> -> memref<1x1x128xf32, #tpu.memory_space<vmem>>
    %499 = tpu.memref_squeeze %498 : memref<1x1x128xf32, #tpu.memory_space<vmem>> -> memref<128xf32, #tpu.memory_space<vmem>>
    %500 = tpu.memref_slice %arg9[%c1_i32_483] : memref<8x!tpu.dma_semaphore, #tpu.memory_space<semaphore_mem>> -> memref<1x!tpu.dma_semaphore, #tpu.memory_space<semaphore_mem>>
    %501 = tpu.memref_squeeze %500 : memref<1x!tpu.dma_semaphore, #tpu.memory_space<semaphore_mem>> -> memref<!tpu.dma_semaphore, #tpu.memory_space<semaphore_mem>>
    tpu.wait_dma2 semaphore(%501 : memref<!tpu.dma_semaphore, #tpu.memory_space<semaphore_mem>>) src(%497 : memref<128xf32, #tpu.memory_space<any>>) dst(%499 : memref<128xf32, #tpu.memory_space<vmem>>)
    %c0_i32_486 = arith.constant 0 : i32
    %c1_i32_487 = arith.constant 1 : i32
    %c1_i32_488 = arith.constant 1 : i32
    %c1_i32_489 = arith.constant 1 : i32
    %c0_i32_490 = arith.constant 0 : i32
    %502 = tpu.memref_slice %arg2[%c0_i32_486, %c0_i32_490] : memref<10000x128xf32, #tpu.memory_space<any>> -> memref<1x128xf32, #tpu.memory_space<any>>
    %503 = tpu.memref_squeeze %502 : memref<1x128xf32, #tpu.memory_space<any>> -> memref<128xf32, #tpu.memory_space<any>>
    %c0_i32_491 = arith.constant 0 : i32
    %504 = tpu.memref_slice %arg8[%c1_i32_487, %c1_i32_488, %c0_i32_491] : memref<8x8x128xf32, #tpu.memory_space<vmem>> -> memref<1x1x128xf32, #tpu.memory_space<vmem>>
    %505 = tpu.memref_squeeze %504 : memref<1x1x128xf32, #tpu.memory_space<vmem>> -> memref<128xf32, #tpu.memory_space<vmem>>
    %506 = tpu.memref_slice %arg9[%c1_i32_489] : memref<8x!tpu.dma_semaphore, #tpu.memory_space<semaphore_mem>> -> memref<1x!tpu.dma_semaphore, #tpu.memory_space<semaphore_mem>>
    %507 = tpu.memref_squeeze %506 : memref<1x!tpu.dma_semaphore, #tpu.memory_space<semaphore_mem>> -> memref<!tpu.dma_semaphore, #tpu.memory_space<semaphore_mem>>
    tpu.wait_dma2 semaphore(%507 : memref<!tpu.dma_semaphore, #tpu.memory_space<semaphore_mem>>) src(%503 : memref<128xf32, #tpu.memory_space<any>>) dst(%505 : memref<128xf32, #tpu.memory_space<vmem>>)
    %c0_i32_492 = arith.constant 0 : i32
    %c2_i32_493 = arith.constant 2 : i32
    %c1_i32_494 = arith.constant 1 : i32
    %c1_i32_495 = arith.constant 1 : i32
    %c0_i32_496 = arith.constant 0 : i32
    %508 = tpu.memref_slice %arg2[%c0_i32_492, %c0_i32_496] : memref<10000x128xf32, #tpu.memory_space<any>> -> memref<1x128xf32, #tpu.memory_space<any>>
    %509 = tpu.memref_squeeze %508 : memref<1x128xf32, #tpu.memory_space<any>> -> memref<128xf32, #tpu.memory_space<any>>
    %c0_i32_497 = arith.constant 0 : i32
    %510 = tpu.memref_slice %arg8[%c2_i32_493, %c1_i32_494, %c0_i32_497] : memref<8x8x128xf32, #tpu.memory_space<vmem>> -> memref<1x1x128xf32, #tpu.memory_space<vmem>>
    %511 = tpu.memref_squeeze %510 : memref<1x1x128xf32, #tpu.memory_space<vmem>> -> memref<128xf32, #tpu.memory_space<vmem>>
    %512 = tpu.memref_slice %arg9[%c1_i32_495] : memref<8x!tpu.dma_semaphore, #tpu.memory_space<semaphore_mem>> -> memref<1x!tpu.dma_semaphore, #tpu.memory_space<semaphore_mem>>
    %513 = tpu.memref_squeeze %512 : memref<1x!tpu.dma_semaphore, #tpu.memory_space<semaphore_mem>> -> memref<!tpu.dma_semaphore, #tpu.memory_space<semaphore_mem>>
    tpu.wait_dma2 semaphore(%513 : memref<!tpu.dma_semaphore, #tpu.memory_space<semaphore_mem>>) src(%509 : memref<128xf32, #tpu.memory_space<any>>) dst(%511 : memref<128xf32, #tpu.memory_space<vmem>>)
    %c0_i32_498 = arith.constant 0 : i32
    %c3_i32_499 = arith.constant 3 : i32
    %c1_i32_500 = arith.constant 1 : i32
    %c1_i32_501 = arith.constant 1 : i32
    %c0_i32_502 = arith.constant 0 : i32
    %514 = tpu.memref_slice %arg2[%c0_i32_498, %c0_i32_502] : memref<10000x128xf32, #tpu.memory_space<any>> -> memref<1x128xf32, #tpu.memory_space<any>>
    %515 = tpu.memref_squeeze %514 : memref<1x128xf32, #tpu.memory_space<any>> -> memref<128xf32, #tpu.memory_space<any>>
    %c0_i32_503 = arith.constant 0 : i32
    %516 = tpu.memref_slice %arg8[%c3_i32_499, %c1_i32_500, %c0_i32_503] : memref<8x8x128xf32, #tpu.memory_space<vmem>> -> memref<1x1x128xf32, #tpu.memory_space<vmem>>
    %517 = tpu.memref_squeeze %516 : memref<1x1x128xf32, #tpu.memory_space<vmem>> -> memref<128xf32, #tpu.memory_space<vmem>>
    %518 = tpu.memref_slice %arg9[%c1_i32_501] : memref<8x!tpu.dma_semaphore, #tpu.memory_space<semaphore_mem>> -> memref<1x!tpu.dma_semaphore, #tpu.memory_space<semaphore_mem>>
    %519 = tpu.memref_squeeze %518 : memref<1x!tpu.dma_semaphore, #tpu.memory_space<semaphore_mem>> -> memref<!tpu.dma_semaphore, #tpu.memory_space<semaphore_mem>>
    tpu.wait_dma2 semaphore(%519 : memref<!tpu.dma_semaphore, #tpu.memory_space<semaphore_mem>>) src(%515 : memref<128xf32, #tpu.memory_space<any>>) dst(%517 : memref<128xf32, #tpu.memory_space<vmem>>)
    %c0_i32_504 = arith.constant 0 : i32
    %c4_i32_505 = arith.constant 4 : i32
    %c1_i32_506 = arith.constant 1 : i32
    %c1_i32_507 = arith.constant 1 : i32
    %c0_i32_508 = arith.constant 0 : i32
    %520 = tpu.memref_slice %arg2[%c0_i32_504, %c0_i32_508] : memref<10000x128xf32, #tpu.memory_space<any>> -> memref<1x128xf32, #tpu.memory_space<any>>
    %521 = tpu.memref_squeeze %520 : memref<1x128xf32, #tpu.memory_space<any>> -> memref<128xf32, #tpu.memory_space<any>>
    %c0_i32_509 = arith.constant 0 : i32
    %522 = tpu.memref_slice %arg8[%c4_i32_505, %c1_i32_506, %c0_i32_509] : memref<8x8x128xf32, #tpu.memory_space<vmem>> -> memref<1x1x128xf32, #tpu.memory_space<vmem>>
    %523 = tpu.memref_squeeze %522 : memref<1x1x128xf32, #tpu.memory_space<vmem>> -> memref<128xf32, #tpu.memory_space<vmem>>
    %524 = tpu.memref_slice %arg9[%c1_i32_507] : memref<8x!tpu.dma_semaphore, #tpu.memory_space<semaphore_mem>> -> memref<1x!tpu.dma_semaphore, #tpu.memory_space<semaphore_mem>>
    %525 = tpu.memref_squeeze %524 : memref<1x!tpu.dma_semaphore, #tpu.memory_space<semaphore_mem>> -> memref<!tpu.dma_semaphore, #tpu.memory_space<semaphore_mem>>
    tpu.wait_dma2 semaphore(%525 : memref<!tpu.dma_semaphore, #tpu.memory_space<semaphore_mem>>) src(%521 : memref<128xf32, #tpu.memory_space<any>>) dst(%523 : memref<128xf32, #tpu.memory_space<vmem>>)
    %c0_i32_510 = arith.constant 0 : i32
    %c5_i32_511 = arith.constant 5 : i32
    %c1_i32_512 = arith.constant 1 : i32
    %c1_i32_513 = arith.constant 1 : i32
    %c0_i32_514 = arith.constant 0 : i32
    %526 = tpu.memref_slice %arg2[%c0_i32_510, %c0_i32_514] : memref<10000x128xf32, #tpu.memory_space<any>> -> memref<1x128xf32, #tpu.memory_space<any>>
    %527 = tpu.memref_squeeze %526 : memref<1x128xf32, #tpu.memory_space<any>> -> memref<128xf32, #tpu.memory_space<any>>
    %c0_i32_515 = arith.constant 0 : i32
    %528 = tpu.memref_slice %arg8[%c5_i32_511, %c1_i32_512, %c0_i32_515] : memref<8x8x128xf32, #tpu.memory_space<vmem>> -> memref<1x1x128xf32, #tpu.memory_space<vmem>>
    %529 = tpu.memref_squeeze %528 : memref<1x1x128xf32, #tpu.memory_space<vmem>> -> memref<128xf32, #tpu.memory_space<vmem>>
    %530 = tpu.memref_slice %arg9[%c1_i32_513] : memref<8x!tpu.dma_semaphore, #tpu.memory_space<semaphore_mem>> -> memref<1x!tpu.dma_semaphore, #tpu.memory_space<semaphore_mem>>
    %531 = tpu.memref_squeeze %530 : memref<1x!tpu.dma_semaphore, #tpu.memory_space<semaphore_mem>> -> memref<!tpu.dma_semaphore, #tpu.memory_space<semaphore_mem>>
    tpu.wait_dma2 semaphore(%531 : memref<!tpu.dma_semaphore, #tpu.memory_space<semaphore_mem>>) src(%527 : memref<128xf32, #tpu.memory_space<any>>) dst(%529 : memref<128xf32, #tpu.memory_space<vmem>>)
    %c0_i32_516 = arith.constant 0 : i32
    %c6_i32_517 = arith.constant 6 : i32
    %c1_i32_518 = arith.constant 1 : i32
    %c1_i32_519 = arith.constant 1 : i32
    %c0_i32_520 = arith.constant 0 : i32
    %532 = tpu.memref_slice %arg2[%c0_i32_516, %c0_i32_520] : memref<10000x128xf32, #tpu.memory_space<any>> -> memref<1x128xf32, #tpu.memory_space<any>>
    %533 = tpu.memref_squeeze %532 : memref<1x128xf32, #tpu.memory_space<any>> -> memref<128xf32, #tpu.memory_space<any>>
    %c0_i32_521 = arith.constant 0 : i32
    %534 = tpu.memref_slice %arg8[%c6_i32_517, %c1_i32_518, %c0_i32_521] : memref<8x8x128xf32, #tpu.memory_space<vmem>> -> memref<1x1x128xf32, #tpu.memory_space<vmem>>
    %535 = tpu.memref_squeeze %534 : memref<1x1x128xf32, #tpu.memory_space<vmem>> -> memref<128xf32, #tpu.memory_space<vmem>>
    %536 = tpu.memref_slice %arg9[%c1_i32_519] : memref<8x!tpu.dma_semaphore, #tpu.memory_space<semaphore_mem>> -> memref<1x!tpu.dma_semaphore, #tpu.memory_space<semaphore_mem>>
    %537 = tpu.memref_squeeze %536 : memref<1x!tpu.dma_semaphore, #tpu.memory_space<semaphore_mem>> -> memref<!tpu.dma_semaphore, #tpu.memory_space<semaphore_mem>>
    tpu.wait_dma2 semaphore(%537 : memref<!tpu.dma_semaphore, #tpu.memory_space<semaphore_mem>>) src(%533 : memref<128xf32, #tpu.memory_space<any>>) dst(%535 : memref<128xf32, #tpu.memory_space<vmem>>)
    %c0_i32_522 = arith.constant 0 : i32
    %c7_i32_523 = arith.constant 7 : i32
    %c1_i32_524 = arith.constant 1 : i32
    %c1_i32_525 = arith.constant 1 : i32
    %c0_i32_526 = arith.constant 0 : i32
    %538 = tpu.memref_slice %arg2[%c0_i32_522, %c0_i32_526] : memref<10000x128xf32, #tpu.memory_space<any>> -> memref<1x128xf32, #tpu.memory_space<any>>
    %539 = tpu.memref_squeeze %538 : memref<1x128xf32, #tpu.memory_space<any>> -> memref<128xf32, #tpu.memory_space<any>>
    %c0_i32_527 = arith.constant 0 : i32
    %540 = tpu.memref_slice %arg8[%c7_i32_523, %c1_i32_524, %c0_i32_527] : memref<8x8x128xf32, #tpu.memory_space<vmem>> -> memref<1x1x128xf32, #tpu.memory_space<vmem>>
    %541 = tpu.memref_squeeze %540 : memref<1x1x128xf32, #tpu.memory_space<vmem>> -> memref<128xf32, #tpu.memory_space<vmem>>
    %542 = tpu.memref_slice %arg9[%c1_i32_525] : memref<8x!tpu.dma_semaphore, #tpu.memory_space<semaphore_mem>> -> memref<1x!tpu.dma_semaphore, #tpu.memory_space<semaphore_mem>>
    %543 = tpu.memref_squeeze %542 : memref<1x!tpu.dma_semaphore, #tpu.memory_space<semaphore_mem>> -> memref<!tpu.dma_semaphore, #tpu.memory_space<semaphore_mem>>
    tpu.wait_dma2 semaphore(%543 : memref<!tpu.dma_semaphore, #tpu.memory_space<semaphore_mem>>) src(%539 : memref<128xf32, #tpu.memory_space<any>>) dst(%541 : memref<128xf32, #tpu.memory_space<vmem>>)
    %c0_i32_528 = arith.constant 0 : i32
    %c0_i32_529 = arith.constant 0 : i32
    %c2_i32_530 = arith.constant 2 : i32
    %c2_i32_531 = arith.constant 2 : i32
    %c0_i32_532 = arith.constant 0 : i32
    %544 = tpu.memref_slice %arg2[%c0_i32_528, %c0_i32_532] : memref<10000x128xf32, #tpu.memory_space<any>> -> memref<1x128xf32, #tpu.memory_space<any>>
    %545 = tpu.memref_squeeze %544 : memref<1x128xf32, #tpu.memory_space<any>> -> memref<128xf32, #tpu.memory_space<any>>
    %c0_i32_533 = arith.constant 0 : i32
    %546 = tpu.memref_slice %arg8[%c0_i32_529, %c2_i32_530, %c0_i32_533] : memref<8x8x128xf32, #tpu.memory_space<vmem>> -> memref<1x1x128xf32, #tpu.memory_space<vmem>>
    %547 = tpu.memref_squeeze %546 : memref<1x1x128xf32, #tpu.memory_space<vmem>> -> memref<128xf32, #tpu.memory_space<vmem>>
    %548 = tpu.memref_slice %arg9[%c2_i32_531] : memref<8x!tpu.dma_semaphore, #tpu.memory_space<semaphore_mem>> -> memref<1x!tpu.dma_semaphore, #tpu.memory_space<semaphore_mem>>
    %549 = tpu.memref_squeeze %548 : memref<1x!tpu.dma_semaphore, #tpu.memory_space<semaphore_mem>> -> memref<!tpu.dma_semaphore, #tpu.memory_space<semaphore_mem>>
    tpu.wait_dma2 semaphore(%549 : memref<!tpu.dma_semaphore, #tpu.memory_space<semaphore_mem>>) src(%545 : memref<128xf32, #tpu.memory_space<any>>) dst(%547 : memref<128xf32, #tpu.memory_space<vmem>>)
    %c0_i32_534 = arith.constant 0 : i32
    %c1_i32_535 = arith.constant 1 : i32
    %c2_i32_536 = arith.constant 2 : i32
    %c2_i32_537 = arith.constant 2 : i32
    %c0_i32_538 = arith.constant 0 : i32
    %550 = tpu.memref_slice %arg2[%c0_i32_534, %c0_i32_538] : memref<10000x128xf32, #tpu.memory_space<any>> -> memref<1x128xf32, #tpu.memory_space<any>>
    %551 = tpu.memref_squeeze %550 : memref<1x128xf32, #tpu.memory_space<any>> -> memref<128xf32, #tpu.memory_space<any>>
    %c0_i32_539 = arith.constant 0 : i32
    %552 = tpu.memref_slice %arg8[%c1_i32_535, %c2_i32_536, %c0_i32_539] : memref<8x8x128xf32, #tpu.memory_space<vmem>> -> memref<1x1x128xf32, #tpu.memory_space<vmem>>
    %553 = tpu.memref_squeeze %552 : memref<1x1x128xf32, #tpu.memory_space<vmem>> -> memref<128xf32, #tpu.memory_space<vmem>>
    %554 = tpu.memref_slice %arg9[%c2_i32_537] : memref<8x!tpu.dma_semaphore, #tpu.memory_space<semaphore_mem>> -> memref<1x!tpu.dma_semaphore, #tpu.memory_space<semaphore_mem>>
    %555 = tpu.memref_squeeze %554 : memref<1x!tpu.dma_semaphore, #tpu.memory_space<semaphore_mem>> -> memref<!tpu.dma_semaphore, #tpu.memory_space<semaphore_mem>>
    tpu.wait_dma2 semaphore(%555 : memref<!tpu.dma_semaphore, #tpu.memory_space<semaphore_mem>>) src(%551 : memref<128xf32, #tpu.memory_space<any>>) dst(%553 : memref<128xf32, #tpu.memory_space<vmem>>)
    %c0_i32_540 = arith.constant 0 : i32
    %c2_i32_541 = arith.constant 2 : i32
    %c2_i32_542 = arith.constant 2 : i32
    %c2_i32_543 = arith.constant 2 : i32
    %c0_i32_544 = arith.constant 0 : i32
    %556 = tpu.memref_slice %arg2[%c0_i32_540, %c0_i32_544] : memref<10000x128xf32, #tpu.memory_space<any>> -> memref<1x128xf32, #tpu.memory_space<any>>
    %557 = tpu.memref_squeeze %556 : memref<1x128xf32, #tpu.memory_space<any>> -> memref<128xf32, #tpu.memory_space<any>>
    %c0_i32_545 = arith.constant 0 : i32
    %558 = tpu.memref_slice %arg8[%c2_i32_541, %c2_i32_542, %c0_i32_545] : memref<8x8x128xf32, #tpu.memory_space<vmem>> -> memref<1x1x128xf32, #tpu.memory_space<vmem>>
    %559 = tpu.memref_squeeze %558 : memref<1x1x128xf32, #tpu.memory_space<vmem>> -> memref<128xf32, #tpu.memory_space<vmem>>
    %560 = tpu.memref_slice %arg9[%c2_i32_543] : memref<8x!tpu.dma_semaphore, #tpu.memory_space<semaphore_mem>> -> memref<1x!tpu.dma_semaphore, #tpu.memory_space<semaphore_mem>>
    %561 = tpu.memref_squeeze %560 : memref<1x!tpu.dma_semaphore, #tpu.memory_space<semaphore_mem>> -> memref<!tpu.dma_semaphore, #tpu.memory_space<semaphore_mem>>
    tpu.wait_dma2 semaphore(%561 : memref<!tpu.dma_semaphore, #tpu.memory_space<semaphore_mem>>) src(%557 : memref<128xf32, #tpu.memory_space<any>>) dst(%559 : memref<128xf32, #tpu.memory_space<vmem>>)
    %c0_i32_546 = arith.constant 0 : i32
    %c3_i32_547 = arith.constant 3 : i32
    %c2_i32_548 = arith.constant 2 : i32
    %c2_i32_549 = arith.constant 2 : i32
    %c0_i32_550 = arith.constant 0 : i32
    %562 = tpu.memref_slice %arg2[%c0_i32_546, %c0_i32_550] : memref<10000x128xf32, #tpu.memory_space<any>> -> memref<1x128xf32, #tpu.memory_space<any>>
    %563 = tpu.memref_squeeze %562 : memref<1x128xf32, #tpu.memory_space<any>> -> memref<128xf32, #tpu.memory_space<any>>
    %c0_i32_551 = arith.constant 0 : i32
    %564 = tpu.memref_slice %arg8[%c3_i32_547, %c2_i32_548, %c0_i32_551] : memref<8x8x128xf32, #tpu.memory_space<vmem>> -> memref<1x1x128xf32, #tpu.memory_space<vmem>>
    %565 = tpu.memref_squeeze %564 : memref<1x1x128xf32, #tpu.memory_space<vmem>> -> memref<128xf32, #tpu.memory_space<vmem>>
    %566 = tpu.memref_slice %arg9[%c2_i32_549] : memref<8x!tpu.dma_semaphore, #tpu.memory_space<semaphore_mem>> -> memref<1x!tpu.dma_semaphore, #tpu.memory_space<semaphore_mem>>
    %567 = tpu.memref_squeeze %566 : memref<1x!tpu.dma_semaphore, #tpu.memory_space<semaphore_mem>> -> memref<!tpu.dma_semaphore, #tpu.memory_space<semaphore_mem>>
    tpu.wait_dma2 semaphore(%567 : memref<!tpu.dma_semaphore, #tpu.memory_space<semaphore_mem>>) src(%563 : memref<128xf32, #tpu.memory_space<any>>) dst(%565 : memref<128xf32, #tpu.memory_space<vmem>>)
    %c0_i32_552 = arith.constant 0 : i32
    %c4_i32_553 = arith.constant 4 : i32
    %c2_i32_554 = arith.constant 2 : i32
    %c2_i32_555 = arith.constant 2 : i32
    %c0_i32_556 = arith.constant 0 : i32
    %568 = tpu.memref_slice %arg2[%c0_i32_552, %c0_i32_556] : memref<10000x128xf32, #tpu.memory_space<any>> -> memref<1x128xf32, #tpu.memory_space<any>>
    %569 = tpu.memref_squeeze %568 : memref<1x128xf32, #tpu.memory_space<any>> -> memref<128xf32, #tpu.memory_space<any>>
    %c0_i32_557 = arith.constant 0 : i32
    %570 = tpu.memref_slice %arg8[%c4_i32_553, %c2_i32_554, %c0_i32_557] : memref<8x8x128xf32, #tpu.memory_space<vmem>> -> memref<1x1x128xf32, #tpu.memory_space<vmem>>
    %571 = tpu.memref_squeeze %570 : memref<1x1x128xf32, #tpu.memory_space<vmem>> -> memref<128xf32, #tpu.memory_space<vmem>>
    %572 = tpu.memref_slice %arg9[%c2_i32_555] : memref<8x!tpu.dma_semaphore, #tpu.memory_space<semaphore_mem>> -> memref<1x!tpu.dma_semaphore, #tpu.memory_space<semaphore_mem>>
    %573 = tpu.memref_squeeze %572 : memref<1x!tpu.dma_semaphore, #tpu.memory_space<semaphore_mem>> -> memref<!tpu.dma_semaphore, #tpu.memory_space<semaphore_mem>>
    tpu.wait_dma2 semaphore(%573 : memref<!tpu.dma_semaphore, #tpu.memory_space<semaphore_mem>>) src(%569 : memref<128xf32, #tpu.memory_space<any>>) dst(%571 : memref<128xf32, #tpu.memory_space<vmem>>)
    %c0_i32_558 = arith.constant 0 : i32
    %c5_i32_559 = arith.constant 5 : i32
    %c2_i32_560 = arith.constant 2 : i32
    %c2_i32_561 = arith.constant 2 : i32
    %c0_i32_562 = arith.constant 0 : i32
    %574 = tpu.memref_slice %arg2[%c0_i32_558, %c0_i32_562] : memref<10000x128xf32, #tpu.memory_space<any>> -> memref<1x128xf32, #tpu.memory_space<any>>
    %575 = tpu.memref_squeeze %574 : memref<1x128xf32, #tpu.memory_space<any>> -> memref<128xf32, #tpu.memory_space<any>>
    %c0_i32_563 = arith.constant 0 : i32
    %576 = tpu.memref_slice %arg8[%c5_i32_559, %c2_i32_560, %c0_i32_563] : memref<8x8x128xf32, #tpu.memory_space<vmem>> -> memref<1x1x128xf32, #tpu.memory_space<vmem>>
    %577 = tpu.memref_squeeze %576 : memref<1x1x128xf32, #tpu.memory_space<vmem>> -> memref<128xf32, #tpu.memory_space<vmem>>
    %578 = tpu.memref_slice %arg9[%c2_i32_561] : memref<8x!tpu.dma_semaphore, #tpu.memory_space<semaphore_mem>> -> memref<1x!tpu.dma_semaphore, #tpu.memory_space<semaphore_mem>>
    %579 = tpu.memref_squeeze %578 : memref<1x!tpu.dma_semaphore, #tpu.memory_space<semaphore_mem>> -> memref<!tpu.dma_semaphore, #tpu.memory_space<semaphore_mem>>
    tpu.wait_dma2 semaphore(%579 : memref<!tpu.dma_semaphore, #tpu.memory_space<semaphore_mem>>) src(%575 : memref<128xf32, #tpu.memory_space<any>>) dst(%577 : memref<128xf32, #tpu.memory_space<vmem>>)
    %c0_i32_564 = arith.constant 0 : i32
    %c6_i32_565 = arith.constant 6 : i32
    %c2_i32_566 = arith.constant 2 : i32
    %c2_i32_567 = arith.constant 2 : i32
    %c0_i32_568 = arith.constant 0 : i32
    %580 = tpu.memref_slice %arg2[%c0_i32_564, %c0_i32_568] : memref<10000x128xf32, #tpu.memory_space<any>> -> memref<1x128xf32, #tpu.memory_space<any>>
    %581 = tpu.memref_squeeze %580 : memref<1x128xf32, #tpu.memory_space<any>> -> memref<128xf32, #tpu.memory_space<any>>
    %c0_i32_569 = arith.constant 0 : i32
    %582 = tpu.memref_slice %arg8[%c6_i32_565, %c2_i32_566, %c0_i32_569] : memref<8x8x128xf32, #tpu.memory_space<vmem>> -> memref<1x1x128xf32, #tpu.memory_space<vmem>>
    %583 = tpu.memref_squeeze %582 : memref<1x1x128xf32, #tpu.memory_space<vmem>> -> memref<128xf32, #tpu.memory_space<vmem>>
    %584 = tpu.memref_slice %arg9[%c2_i32_567] : memref<8x!tpu.dma_semaphore, #tpu.memory_space<semaphore_mem>> -> memref<1x!tpu.dma_semaphore, #tpu.memory_space<semaphore_mem>>
    %585 = tpu.memref_squeeze %584 : memref<1x!tpu.dma_semaphore, #tpu.memory_space<semaphore_mem>> -> memref<!tpu.dma_semaphore, #tpu.memory_space<semaphore_mem>>
    tpu.wait_dma2 semaphore(%585 : memref<!tpu.dma_semaphore, #tpu.memory_space<semaphore_mem>>) src(%581 : memref<128xf32, #tpu.memory_space<any>>) dst(%583 : memref<128xf32, #tpu.memory_space<vmem>>)
    %c0_i32_570 = arith.constant 0 : i32
    %c7_i32_571 = arith.constant 7 : i32
    %c2_i32_572 = arith.constant 2 : i32
    %c2_i32_573 = arith.constant 2 : i32
    %c0_i32_574 = arith.constant 0 : i32
    %586 = tpu.memref_slice %arg2[%c0_i32_570, %c0_i32_574] : memref<10000x128xf32, #tpu.memory_space<any>> -> memref<1x128xf32, #tpu.memory_space<any>>
    %587 = tpu.memref_squeeze %586 : memref<1x128xf32, #tpu.memory_space<any>> -> memref<128xf32, #tpu.memory_space<any>>
    %c0_i32_575 = arith.constant 0 : i32
    %588 = tpu.memref_slice %arg8[%c7_i32_571, %c2_i32_572, %c0_i32_575] : memref<8x8x128xf32, #tpu.memory_space<vmem>> -> memref<1x1x128xf32, #tpu.memory_space<vmem>>
    %589 = tpu.memref_squeeze %588 : memref<1x1x128xf32, #tpu.memory_space<vmem>> -> memref<128xf32, #tpu.memory_space<vmem>>
    %590 = tpu.memref_slice %arg9[%c2_i32_573] : memref<8x!tpu.dma_semaphore, #tpu.memory_space<semaphore_mem>> -> memref<1x!tpu.dma_semaphore, #tpu.memory_space<semaphore_mem>>
    %591 = tpu.memref_squeeze %590 : memref<1x!tpu.dma_semaphore, #tpu.memory_space<semaphore_mem>> -> memref<!tpu.dma_semaphore, #tpu.memory_space<semaphore_mem>>
    tpu.wait_dma2 semaphore(%591 : memref<!tpu.dma_semaphore, #tpu.memory_space<semaphore_mem>>) src(%587 : memref<128xf32, #tpu.memory_space<any>>) dst(%589 : memref<128xf32, #tpu.memory_space<vmem>>)
    %c0_i32_576 = arith.constant 0 : i32
    %c0_i32_577 = arith.constant 0 : i32
    %c3_i32_578 = arith.constant 3 : i32
    %c3_i32_579 = arith.constant 3 : i32
    %c0_i32_580 = arith.constant 0 : i32
    %592 = tpu.memref_slice %arg2[%c0_i32_576, %c0_i32_580] : memref<10000x128xf32, #tpu.memory_space<any>> -> memref<1x128xf32, #tpu.memory_space<any>>
    %593 = tpu.memref_squeeze %592 : memref<1x128xf32, #tpu.memory_space<any>> -> memref<128xf32, #tpu.memory_space<any>>
    %c0_i32_581 = arith.constant 0 : i32
    %594 = tpu.memref_slice %arg8[%c0_i32_577, %c3_i32_578, %c0_i32_581] : memref<8x8x128xf32, #tpu.memory_space<vmem>> -> memref<1x1x128xf32, #tpu.memory_space<vmem>>
    %595 = tpu.memref_squeeze %594 : memref<1x1x128xf32, #tpu.memory_space<vmem>> -> memref<128xf32, #tpu.memory_space<vmem>>
    %596 = tpu.memref_slice %arg9[%c3_i32_579] : memref<8x!tpu.dma_semaphore, #tpu.memory_space<semaphore_mem>> -> memref<1x!tpu.dma_semaphore, #tpu.memory_space<semaphore_mem>>
    %597 = tpu.memref_squeeze %596 : memref<1x!tpu.dma_semaphore, #tpu.memory_space<semaphore_mem>> -> memref<!tpu.dma_semaphore, #tpu.memory_space<semaphore_mem>>
    tpu.wait_dma2 semaphore(%597 : memref<!tpu.dma_semaphore, #tpu.memory_space<semaphore_mem>>) src(%593 : memref<128xf32, #tpu.memory_space<any>>) dst(%595 : memref<128xf32, #tpu.memory_space<vmem>>)
    %c0_i32_582 = arith.constant 0 : i32
    %c1_i32_583 = arith.constant 1 : i32
    %c3_i32_584 = arith.constant 3 : i32
    %c3_i32_585 = arith.constant 3 : i32
    %c0_i32_586 = arith.constant 0 : i32
    %598 = tpu.memref_slice %arg2[%c0_i32_582, %c0_i32_586] : memref<10000x128xf32, #tpu.memory_space<any>> -> memref<1x128xf32, #tpu.memory_space<any>>
    %599 = tpu.memref_squeeze %598 : memref<1x128xf32, #tpu.memory_space<any>> -> memref<128xf32, #tpu.memory_space<any>>
    %c0_i32_587 = arith.constant 0 : i32
    %600 = tpu.memref_slice %arg8[%c1_i32_583, %c3_i32_584, %c0_i32_587] : memref<8x8x128xf32, #tpu.memory_space<vmem>> -> memref<1x1x128xf32, #tpu.memory_space<vmem>>
    %601 = tpu.memref_squeeze %600 : memref<1x1x128xf32, #tpu.memory_space<vmem>> -> memref<128xf32, #tpu.memory_space<vmem>>
    %602 = tpu.memref_slice %arg9[%c3_i32_585] : memref<8x!tpu.dma_semaphore, #tpu.memory_space<semaphore_mem>> -> memref<1x!tpu.dma_semaphore, #tpu.memory_space<semaphore_mem>>
    %603 = tpu.memref_squeeze %602 : memref<1x!tpu.dma_semaphore, #tpu.memory_space<semaphore_mem>> -> memref<!tpu.dma_semaphore, #tpu.memory_space<semaphore_mem>>
    tpu.wait_dma2 semaphore(%603 : memref<!tpu.dma_semaphore, #tpu.memory_space<semaphore_mem>>) src(%599 : memref<128xf32, #tpu.memory_space<any>>) dst(%601 : memref<128xf32, #tpu.memory_space<vmem>>)
    %c0_i32_588 = arith.constant 0 : i32
    %c2_i32_589 = arith.constant 2 : i32
    %c3_i32_590 = arith.constant 3 : i32
    %c3_i32_591 = arith.constant 3 : i32
    %c0_i32_592 = arith.constant 0 : i32
    %604 = tpu.memref_slice %arg2[%c0_i32_588, %c0_i32_592] : memref<10000x128xf32, #tpu.memory_space<any>> -> memref<1x128xf32, #tpu.memory_space<any>>
    %605 = tpu.memref_squeeze %604 : memref<1x128xf32, #tpu.memory_space<any>> -> memref<128xf32, #tpu.memory_space<any>>
    %c0_i32_593 = arith.constant 0 : i32
    %606 = tpu.memref_slice %arg8[%c2_i32_589, %c3_i32_590, %c0_i32_593] : memref<8x8x128xf32, #tpu.memory_space<vmem>> -> memref<1x1x128xf32, #tpu.memory_space<vmem>>
    %607 = tpu.memref_squeeze %606 : memref<1x1x128xf32, #tpu.memory_space<vmem>> -> memref<128xf32, #tpu.memory_space<vmem>>
    %608 = tpu.memref_slice %arg9[%c3_i32_591] : memref<8x!tpu.dma_semaphore, #tpu.memory_space<semaphore_mem>> -> memref<1x!tpu.dma_semaphore, #tpu.memory_space<semaphore_mem>>
    %609 = tpu.memref_squeeze %608 : memref<1x!tpu.dma_semaphore, #tpu.memory_space<semaphore_mem>> -> memref<!tpu.dma_semaphore, #tpu.memory_space<semaphore_mem>>
    tpu.wait_dma2 semaphore(%609 : memref<!tpu.dma_semaphore, #tpu.memory_space<semaphore_mem>>) src(%605 : memref<128xf32, #tpu.memory_space<any>>) dst(%607 : memref<128xf32, #tpu.memory_space<vmem>>)
    %c0_i32_594 = arith.constant 0 : i32
    %c3_i32_595 = arith.constant 3 : i32
    %c3_i32_596 = arith.constant 3 : i32
    %c3_i32_597 = arith.constant 3 : i32
    %c0_i32_598 = arith.constant 0 : i32
    %610 = tpu.memref_slice %arg2[%c0_i32_594, %c0_i32_598] : memref<10000x128xf32, #tpu.memory_space<any>> -> memref<1x128xf32, #tpu.memory_space<any>>
    %611 = tpu.memref_squeeze %610 : memref<1x128xf32, #tpu.memory_space<any>> -> memref<128xf32, #tpu.memory_space<any>>
    %c0_i32_599 = arith.constant 0 : i32
    %612 = tpu.memref_slice %arg8[%c3_i32_595, %c3_i32_596, %c0_i32_599] : memref<8x8x128xf32, #tpu.memory_space<vmem>> -> memref<1x1x128xf32, #tpu.memory_space<vmem>>
    %613 = tpu.memref_squeeze %612 : memref<1x1x128xf32, #tpu.memory_space<vmem>> -> memref<128xf32, #tpu.memory_space<vmem>>
    %614 = tpu.memref_slice %arg9[%c3_i32_597] : memref<8x!tpu.dma_semaphore, #tpu.memory_space<semaphore_mem>> -> memref<1x!tpu.dma_semaphore, #tpu.memory_space<semaphore_mem>>
    %615 = tpu.memref_squeeze %614 : memref<1x!tpu.dma_semaphore, #tpu.memory_space<semaphore_mem>> -> memref<!tpu.dma_semaphore, #tpu.memory_space<semaphore_mem>>
    tpu.wait_dma2 semaphore(%615 : memref<!tpu.dma_semaphore, #tpu.memory_space<semaphore_mem>>) src(%611 : memref<128xf32, #tpu.memory_space<any>>) dst(%613 : memref<128xf32, #tpu.memory_space<vmem>>)
    %c0_i32_600 = arith.constant 0 : i32
    %c4_i32_601 = arith.constant 4 : i32
    %c3_i32_602 = arith.constant 3 : i32
    %c3_i32_603 = arith.constant 3 : i32
    %c0_i32_604 = arith.constant 0 : i32
    %616 = tpu.memref_slice %arg2[%c0_i32_600, %c0_i32_604] : memref<10000x128xf32, #tpu.memory_space<any>> -> memref<1x128xf32, #tpu.memory_space<any>>
    %617 = tpu.memref_squeeze %616 : memref<1x128xf32, #tpu.memory_space<any>> -> memref<128xf32, #tpu.memory_space<any>>
    %c0_i32_605 = arith.constant 0 : i32
    %618 = tpu.memref_slice %arg8[%c4_i32_601, %c3_i32_602, %c0_i32_605] : memref<8x8x128xf32, #tpu.memory_space<vmem>> -> memref<1x1x128xf32, #tpu.memory_space<vmem>>
    %619 = tpu.memref_squeeze %618 : memref<1x1x128xf32, #tpu.memory_space<vmem>> -> memref<128xf32, #tpu.memory_space<vmem>>
    %620 = tpu.memref_slice %arg9[%c3_i32_603] : memref<8x!tpu.dma_semaphore, #tpu.memory_space<semaphore_mem>> -> memref<1x!tpu.dma_semaphore, #tpu.memory_space<semaphore_mem>>
    %621 = tpu.memref_squeeze %620 : memref<1x!tpu.dma_semaphore, #tpu.memory_space<semaphore_mem>> -> memref<!tpu.dma_semaphore, #tpu.memory_space<semaphore_mem>>
    tpu.wait_dma2 semaphore(%621 : memref<!tpu.dma_semaphore, #tpu.memory_space<semaphore_mem>>) src(%617 : memref<128xf32, #tpu.memory_space<any>>) dst(%619 : memref<128xf32, #tpu.memory_space<vmem>>)
    %c0_i32_606 = arith.constant 0 : i32
    %c5_i32_607 = arith.constant 5 : i32
    %c3_i32_608 = arith.constant 3 : i32
    %c3_i32_609 = arith.constant 3 : i32
    %c0_i32_610 = arith.constant 0 : i32
    %622 = tpu.memref_slice %arg2[%c0_i32_606, %c0_i32_610] : memref<10000x128xf32, #tpu.memory_space<any>> -> memref<1x128xf32, #tpu.memory_space<any>>
    %623 = tpu.memref_squeeze %622 : memref<1x128xf32, #tpu.memory_space<any>> -> memref<128xf32, #tpu.memory_space<any>>
    %c0_i32_611 = arith.constant 0 : i32
    %624 = tpu.memref_slice %arg8[%c5_i32_607, %c3_i32_608, %c0_i32_611] : memref<8x8x128xf32, #tpu.memory_space<vmem>> -> memref<1x1x128xf32, #tpu.memory_space<vmem>>
    %625 = tpu.memref_squeeze %624 : memref<1x1x128xf32, #tpu.memory_space<vmem>> -> memref<128xf32, #tpu.memory_space<vmem>>
    %626 = tpu.memref_slice %arg9[%c3_i32_609] : memref<8x!tpu.dma_semaphore, #tpu.memory_space<semaphore_mem>> -> memref<1x!tpu.dma_semaphore, #tpu.memory_space<semaphore_mem>>
    %627 = tpu.memref_squeeze %626 : memref<1x!tpu.dma_semaphore, #tpu.memory_space<semaphore_mem>> -> memref<!tpu.dma_semaphore, #tpu.memory_space<semaphore_mem>>
    tpu.wait_dma2 semaphore(%627 : memref<!tpu.dma_semaphore, #tpu.memory_space<semaphore_mem>>) src(%623 : memref<128xf32, #tpu.memory_space<any>>) dst(%625 : memref<128xf32, #tpu.memory_space<vmem>>)
    %c0_i32_612 = arith.constant 0 : i32
    %c6_i32_613 = arith.constant 6 : i32
    %c3_i32_614 = arith.constant 3 : i32
    %c3_i32_615 = arith.constant 3 : i32
    %c0_i32_616 = arith.constant 0 : i32
    %628 = tpu.memref_slice %arg2[%c0_i32_612, %c0_i32_616] : memref<10000x128xf32, #tpu.memory_space<any>> -> memref<1x128xf32, #tpu.memory_space<any>>
    %629 = tpu.memref_squeeze %628 : memref<1x128xf32, #tpu.memory_space<any>> -> memref<128xf32, #tpu.memory_space<any>>
    %c0_i32_617 = arith.constant 0 : i32
    %630 = tpu.memref_slice %arg8[%c6_i32_613, %c3_i32_614, %c0_i32_617] : memref<8x8x128xf32, #tpu.memory_space<vmem>> -> memref<1x1x128xf32, #tpu.memory_space<vmem>>
    %631 = tpu.memref_squeeze %630 : memref<1x1x128xf32, #tpu.memory_space<vmem>> -> memref<128xf32, #tpu.memory_space<vmem>>
    %632 = tpu.memref_slice %arg9[%c3_i32_615] : memref<8x!tpu.dma_semaphore, #tpu.memory_space<semaphore_mem>> -> memref<1x!tpu.dma_semaphore, #tpu.memory_space<semaphore_mem>>
    %633 = tpu.memref_squeeze %632 : memref<1x!tpu.dma_semaphore, #tpu.memory_space<semaphore_mem>> -> memref<!tpu.dma_semaphore, #tpu.memory_space<semaphore_mem>>
    tpu.wait_dma2 semaphore(%633 : memref<!tpu.dma_semaphore, #tpu.memory_space<semaphore_mem>>) src(%629 : memref<128xf32, #tpu.memory_space<any>>) dst(%631 : memref<128xf32, #tpu.memory_space<vmem>>)
    %c0_i32_618 = arith.constant 0 : i32
    %c7_i32_619 = arith.constant 7 : i32
    %c3_i32_620 = arith.constant 3 : i32
    %c3_i32_621 = arith.constant 3 : i32
    %c0_i32_622 = arith.constant 0 : i32
    %634 = tpu.memref_slice %arg2[%c0_i32_618, %c0_i32_622] : memref<10000x128xf32, #tpu.memory_space<any>> -> memref<1x128xf32, #tpu.memory_space<any>>
    %635 = tpu.memref_squeeze %634 : memref<1x128xf32, #tpu.memory_space<any>> -> memref<128xf32, #tpu.memory_space<any>>
    %c0_i32_623 = arith.constant 0 : i32
    %636 = tpu.memref_slice %arg8[%c7_i32_619, %c3_i32_620, %c0_i32_623] : memref<8x8x128xf32, #tpu.memory_space<vmem>> -> memref<1x1x128xf32, #tpu.memory_space<vmem>>
    %637 = tpu.memref_squeeze %636 : memref<1x1x128xf32, #tpu.memory_space<vmem>> -> memref<128xf32, #tpu.memory_space<vmem>>
    %638 = tpu.memref_slice %arg9[%c3_i32_621] : memref<8x!tpu.dma_semaphore, #tpu.memory_space<semaphore_mem>> -> memref<1x!tpu.dma_semaphore, #tpu.memory_space<semaphore_mem>>
    %639 = tpu.memref_squeeze %638 : memref<1x!tpu.dma_semaphore, #tpu.memory_space<semaphore_mem>> -> memref<!tpu.dma_semaphore, #tpu.memory_space<semaphore_mem>>
    tpu.wait_dma2 semaphore(%639 : memref<!tpu.dma_semaphore, #tpu.memory_space<semaphore_mem>>) src(%635 : memref<128xf32, #tpu.memory_space<any>>) dst(%637 : memref<128xf32, #tpu.memory_space<vmem>>)
    %c0_i32_624 = arith.constant 0 : i32
    %c0_i32_625 = arith.constant 0 : i32
    %c4_i32_626 = arith.constant 4 : i32
    %c4_i32_627 = arith.constant 4 : i32
    %c0_i32_628 = arith.constant 0 : i32
    %640 = tpu.memref_slice %arg2[%c0_i32_624, %c0_i32_628] : memref<10000x128xf32, #tpu.memory_space<any>> -> memref<1x128xf32, #tpu.memory_space<any>>
    %641 = tpu.memref_squeeze %640 : memref<1x128xf32, #tpu.memory_space<any>> -> memref<128xf32, #tpu.memory_space<any>>
    %c0_i32_629 = arith.constant 0 : i32
    %642 = tpu.memref_slice %arg8[%c0_i32_625, %c4_i32_626, %c0_i32_629] : memref<8x8x128xf32, #tpu.memory_space<vmem>> -> memref<1x1x128xf32, #tpu.memory_space<vmem>>
    %643 = tpu.memref_squeeze %642 : memref<1x1x128xf32, #tpu.memory_space<vmem>> -> memref<128xf32, #tpu.memory_space<vmem>>
    %644 = tpu.memref_slice %arg9[%c4_i32_627] : memref<8x!tpu.dma_semaphore, #tpu.memory_space<semaphore_mem>> -> memref<1x!tpu.dma_semaphore, #tpu.memory_space<semaphore_mem>>
    %645 = tpu.memref_squeeze %644 : memref<1x!tpu.dma_semaphore, #tpu.memory_space<semaphore_mem>> -> memref<!tpu.dma_semaphore, #tpu.memory_space<semaphore_mem>>
    tpu.wait_dma2 semaphore(%645 : memref<!tpu.dma_semaphore, #tpu.memory_space<semaphore_mem>>) src(%641 : memref<128xf32, #tpu.memory_space<any>>) dst(%643 : memref<128xf32, #tpu.memory_space<vmem>>)
    %c0_i32_630 = arith.constant 0 : i32
    %c1_i32_631 = arith.constant 1 : i32
    %c4_i32_632 = arith.constant 4 : i32
    %c4_i32_633 = arith.constant 4 : i32
    %c0_i32_634 = arith.constant 0 : i32
    %646 = tpu.memref_slice %arg2[%c0_i32_630, %c0_i32_634] : memref<10000x128xf32, #tpu.memory_space<any>> -> memref<1x128xf32, #tpu.memory_space<any>>
    %647 = tpu.memref_squeeze %646 : memref<1x128xf32, #tpu.memory_space<any>> -> memref<128xf32, #tpu.memory_space<any>>
    %c0_i32_635 = arith.constant 0 : i32
    %648 = tpu.memref_slice %arg8[%c1_i32_631, %c4_i32_632, %c0_i32_635] : memref<8x8x128xf32, #tpu.memory_space<vmem>> -> memref<1x1x128xf32, #tpu.memory_space<vmem>>
    %649 = tpu.memref_squeeze %648 : memref<1x1x128xf32, #tpu.memory_space<vmem>> -> memref<128xf32, #tpu.memory_space<vmem>>
    %650 = tpu.memref_slice %arg9[%c4_i32_633] : memref<8x!tpu.dma_semaphore, #tpu.memory_space<semaphore_mem>> -> memref<1x!tpu.dma_semaphore, #tpu.memory_space<semaphore_mem>>
    %651 = tpu.memref_squeeze %650 : memref<1x!tpu.dma_semaphore, #tpu.memory_space<semaphore_mem>> -> memref<!tpu.dma_semaphore, #tpu.memory_space<semaphore_mem>>
    tpu.wait_dma2 semaphore(%651 : memref<!tpu.dma_semaphore, #tpu.memory_space<semaphore_mem>>) src(%647 : memref<128xf32, #tpu.memory_space<any>>) dst(%649 : memref<128xf32, #tpu.memory_space<vmem>>)
    %c0_i32_636 = arith.constant 0 : i32
    %c2_i32_637 = arith.constant 2 : i32
    %c4_i32_638 = arith.constant 4 : i32
    %c4_i32_639 = arith.constant 4 : i32
    %c0_i32_640 = arith.constant 0 : i32
    %652 = tpu.memref_slice %arg2[%c0_i32_636, %c0_i32_640] : memref<10000x128xf32, #tpu.memory_space<any>> -> memref<1x128xf32, #tpu.memory_space<any>>
    %653 = tpu.memref_squeeze %652 : memref<1x128xf32, #tpu.memory_space<any>> -> memref<128xf32, #tpu.memory_space<any>>
    %c0_i32_641 = arith.constant 0 : i32
    %654 = tpu.memref_slice %arg8[%c2_i32_637, %c4_i32_638, %c0_i32_641] : memref<8x8x128xf32, #tpu.memory_space<vmem>> -> memref<1x1x128xf32, #tpu.memory_space<vmem>>
    %655 = tpu.memref_squeeze %654 : memref<1x1x128xf32, #tpu.memory_space<vmem>> -> memref<128xf32, #tpu.memory_space<vmem>>
    %656 = tpu.memref_slice %arg9[%c4_i32_639] : memref<8x!tpu.dma_semaphore, #tpu.memory_space<semaphore_mem>> -> memref<1x!tpu.dma_semaphore, #tpu.memory_space<semaphore_mem>>
    %657 = tpu.memref_squeeze %656 : memref<1x!tpu.dma_semaphore, #tpu.memory_space<semaphore_mem>> -> memref<!tpu.dma_semaphore, #tpu.memory_space<semaphore_mem>>
    tpu.wait_dma2 semaphore(%657 : memref<!tpu.dma_semaphore, #tpu.memory_space<semaphore_mem>>) src(%653 : memref<128xf32, #tpu.memory_space<any>>) dst(%655 : memref<128xf32, #tpu.memory_space<vmem>>)
    %c0_i32_642 = arith.constant 0 : i32
    %c3_i32_643 = arith.constant 3 : i32
    %c4_i32_644 = arith.constant 4 : i32
    %c4_i32_645 = arith.constant 4 : i32
    %c0_i32_646 = arith.constant 0 : i32
    %658 = tpu.memref_slice %arg2[%c0_i32_642, %c0_i32_646] : memref<10000x128xf32, #tpu.memory_space<any>> -> memref<1x128xf32, #tpu.memory_space<any>>
    %659 = tpu.memref_squeeze %658 : memref<1x128xf32, #tpu.memory_space<any>> -> memref<128xf32, #tpu.memory_space<any>>
    %c0_i32_647 = arith.constant 0 : i32
    %660 = tpu.memref_slice %arg8[%c3_i32_643, %c4_i32_644, %c0_i32_647] : memref<8x8x128xf32, #tpu.memory_space<vmem>> -> memref<1x1x128xf32, #tpu.memory_space<vmem>>
    %661 = tpu.memref_squeeze %660 : memref<1x1x128xf32, #tpu.memory_space<vmem>> -> memref<128xf32, #tpu.memory_space<vmem>>
    %662 = tpu.memref_slice %arg9[%c4_i32_645] : memref<8x!tpu.dma_semaphore, #tpu.memory_space<semaphore_mem>> -> memref<1x!tpu.dma_semaphore, #tpu.memory_space<semaphore_mem>>
    %663 = tpu.memref_squeeze %662 : memref<1x!tpu.dma_semaphore, #tpu.memory_space<semaphore_mem>> -> memref<!tpu.dma_semaphore, #tpu.memory_space<semaphore_mem>>
    tpu.wait_dma2 semaphore(%663 : memref<!tpu.dma_semaphore, #tpu.memory_space<semaphore_mem>>) src(%659 : memref<128xf32, #tpu.memory_space<any>>) dst(%661 : memref<128xf32, #tpu.memory_space<vmem>>)
    %c0_i32_648 = arith.constant 0 : i32
    %c4_i32_649 = arith.constant 4 : i32
    %c4_i32_650 = arith.constant 4 : i32
    %c4_i32_651 = arith.constant 4 : i32
    %c0_i32_652 = arith.constant 0 : i32
    %664 = tpu.memref_slice %arg2[%c0_i32_648, %c0_i32_652] : memref<10000x128xf32, #tpu.memory_space<any>> -> memref<1x128xf32, #tpu.memory_space<any>>
    %665 = tpu.memref_squeeze %664 : memref<1x128xf32, #tpu.memory_space<any>> -> memref<128xf32, #tpu.memory_space<any>>
    %c0_i32_653 = arith.constant 0 : i32
    %666 = tpu.memref_slice %arg8[%c4_i32_649, %c4_i32_650, %c0_i32_653] : memref<8x8x128xf32, #tpu.memory_space<vmem>> -> memref<1x1x128xf32, #tpu.memory_space<vmem>>
    %667 = tpu.memref_squeeze %666 : memref<1x1x128xf32, #tpu.memory_space<vmem>> -> memref<128xf32, #tpu.memory_space<vmem>>
    %668 = tpu.memref_slice %arg9[%c4_i32_651] : memref<8x!tpu.dma_semaphore, #tpu.memory_space<semaphore_mem>> -> memref<1x!tpu.dma_semaphore, #tpu.memory_space<semaphore_mem>>
    %669 = tpu.memref_squeeze %668 : memref<1x!tpu.dma_semaphore, #tpu.memory_space<semaphore_mem>> -> memref<!tpu.dma_semaphore, #tpu.memory_space<semaphore_mem>>
    tpu.wait_dma2 semaphore(%669 : memref<!tpu.dma_semaphore, #tpu.memory_space<semaphore_mem>>) src(%665 : memref<128xf32, #tpu.memory_space<any>>) dst(%667 : memref<128xf32, #tpu.memory_space<vmem>>)
    %c0_i32_654 = arith.constant 0 : i32
    %c5_i32_655 = arith.constant 5 : i32
    %c4_i32_656 = arith.constant 4 : i32
    %c4_i32_657 = arith.constant 4 : i32
    %c0_i32_658 = arith.constant 0 : i32
    %670 = tpu.memref_slice %arg2[%c0_i32_654, %c0_i32_658] : memref<10000x128xf32, #tpu.memory_space<any>> -> memref<1x128xf32, #tpu.memory_space<any>>
    %671 = tpu.memref_squeeze %670 : memref<1x128xf32, #tpu.memory_space<any>> -> memref<128xf32, #tpu.memory_space<any>>
    %c0_i32_659 = arith.constant 0 : i32
    %672 = tpu.memref_slice %arg8[%c5_i32_655, %c4_i32_656, %c0_i32_659] : memref<8x8x128xf32, #tpu.memory_space<vmem>> -> memref<1x1x128xf32, #tpu.memory_space<vmem>>
    %673 = tpu.memref_squeeze %672 : memref<1x1x128xf32, #tpu.memory_space<vmem>> -> memref<128xf32, #tpu.memory_space<vmem>>
    %674 = tpu.memref_slice %arg9[%c4_i32_657] : memref<8x!tpu.dma_semaphore, #tpu.memory_space<semaphore_mem>> -> memref<1x!tpu.dma_semaphore, #tpu.memory_space<semaphore_mem>>
    %675 = tpu.memref_squeeze %674 : memref<1x!tpu.dma_semaphore, #tpu.memory_space<semaphore_mem>> -> memref<!tpu.dma_semaphore, #tpu.memory_space<semaphore_mem>>
    tpu.wait_dma2 semaphore(%675 : memref<!tpu.dma_semaphore, #tpu.memory_space<semaphore_mem>>) src(%671 : memref<128xf32, #tpu.memory_space<any>>) dst(%673 : memref<128xf32, #tpu.memory_space<vmem>>)
    %c0_i32_660 = arith.constant 0 : i32
    %c6_i32_661 = arith.constant 6 : i32
    %c4_i32_662 = arith.constant 4 : i32
    %c4_i32_663 = arith.constant 4 : i32
    %c0_i32_664 = arith.constant 0 : i32
    %676 = tpu.memref_slice %arg2[%c0_i32_660, %c0_i32_664] : memref<10000x128xf32, #tpu.memory_space<any>> -> memref<1x128xf32, #tpu.memory_space<any>>
    %677 = tpu.memref_squeeze %676 : memref<1x128xf32, #tpu.memory_space<any>> -> memref<128xf32, #tpu.memory_space<any>>
    %c0_i32_665 = arith.constant 0 : i32
    %678 = tpu.memref_slice %arg8[%c6_i32_661, %c4_i32_662, %c0_i32_665] : memref<8x8x128xf32, #tpu.memory_space<vmem>> -> memref<1x1x128xf32, #tpu.memory_space<vmem>>
    %679 = tpu.memref_squeeze %678 : memref<1x1x128xf32, #tpu.memory_space<vmem>> -> memref<128xf32, #tpu.memory_space<vmem>>
    %680 = tpu.memref_slice %arg9[%c4_i32_663] : memref<8x!tpu.dma_semaphore, #tpu.memory_space<semaphore_mem>> -> memref<1x!tpu.dma_semaphore, #tpu.memory_space<semaphore_mem>>
    %681 = tpu.memref_squeeze %680 : memref<1x!tpu.dma_semaphore, #tpu.memory_space<semaphore_mem>> -> memref<!tpu.dma_semaphore, #tpu.memory_space<semaphore_mem>>
    tpu.wait_dma2 semaphore(%681 : memref<!tpu.dma_semaphore, #tpu.memory_space<semaphore_mem>>) src(%677 : memref<128xf32, #tpu.memory_space<any>>) dst(%679 : memref<128xf32, #tpu.memory_space<vmem>>)
    %c0_i32_666 = arith.constant 0 : i32
    %c7_i32_667 = arith.constant 7 : i32
    %c4_i32_668 = arith.constant 4 : i32
    %c4_i32_669 = arith.constant 4 : i32
    %c0_i32_670 = arith.constant 0 : i32
    %682 = tpu.memref_slice %arg2[%c0_i32_666, %c0_i32_670] : memref<10000x128xf32, #tpu.memory_space<any>> -> memref<1x128xf32, #tpu.memory_space<any>>
    %683 = tpu.memref_squeeze %682 : memref<1x128xf32, #tpu.memory_space<any>> -> memref<128xf32, #tpu.memory_space<any>>
    %c0_i32_671 = arith.constant 0 : i32
    %684 = tpu.memref_slice %arg8[%c7_i32_667, %c4_i32_668, %c0_i32_671] : memref<8x8x128xf32, #tpu.memory_space<vmem>> -> memref<1x1x128xf32, #tpu.memory_space<vmem>>
    %685 = tpu.memref_squeeze %684 : memref<1x1x128xf32, #tpu.memory_space<vmem>> -> memref<128xf32, #tpu.memory_space<vmem>>
    %686 = tpu.memref_slice %arg9[%c4_i32_669] : memref<8x!tpu.dma_semaphore, #tpu.memory_space<semaphore_mem>> -> memref<1x!tpu.dma_semaphore, #tpu.memory_space<semaphore_mem>>
    %687 = tpu.memref_squeeze %686 : memref<1x!tpu.dma_semaphore, #tpu.memory_space<semaphore_mem>> -> memref<!tpu.dma_semaphore, #tpu.memory_space<semaphore_mem>>
    tpu.wait_dma2 semaphore(%687 : memref<!tpu.dma_semaphore, #tpu.memory_space<semaphore_mem>>) src(%683 : memref<128xf32, #tpu.memory_space<any>>) dst(%685 : memref<128xf32, #tpu.memory_space<vmem>>)
    %c0_i32_672 = arith.constant 0 : i32
    %c0_i32_673 = arith.constant 0 : i32
    %c5_i32_674 = arith.constant 5 : i32
    %c5_i32_675 = arith.constant 5 : i32
    %c0_i32_676 = arith.constant 0 : i32
    %688 = tpu.memref_slice %arg2[%c0_i32_672, %c0_i32_676] : memref<10000x128xf32, #tpu.memory_space<any>> -> memref<1x128xf32, #tpu.memory_space<any>>
    %689 = tpu.memref_squeeze %688 : memref<1x128xf32, #tpu.memory_space<any>> -> memref<128xf32, #tpu.memory_space<any>>
    %c0_i32_677 = arith.constant 0 : i32
    %690 = tpu.memref_slice %arg8[%c0_i32_673, %c5_i32_674, %c0_i32_677] : memref<8x8x128xf32, #tpu.memory_space<vmem>> -> memref<1x1x128xf32, #tpu.memory_space<vmem>>
    %691 = tpu.memref_squeeze %690 : memref<1x1x128xf32, #tpu.memory_space<vmem>> -> memref<128xf32, #tpu.memory_space<vmem>>
    %692 = tpu.memref_slice %arg9[%c5_i32_675] : memref<8x!tpu.dma_semaphore, #tpu.memory_space<semaphore_mem>> -> memref<1x!tpu.dma_semaphore, #tpu.memory_space<semaphore_mem>>
    %693 = tpu.memref_squeeze %692 : memref<1x!tpu.dma_semaphore, #tpu.memory_space<semaphore_mem>> -> memref<!tpu.dma_semaphore, #tpu.memory_space<semaphore_mem>>
    tpu.wait_dma2 semaphore(%693 : memref<!tpu.dma_semaphore, #tpu.memory_space<semaphore_mem>>) src(%689 : memref<128xf32, #tpu.memory_space<any>>) dst(%691 : memref<128xf32, #tpu.memory_space<vmem>>)
    %c0_i32_678 = arith.constant 0 : i32
    %c1_i32_679 = arith.constant 1 : i32
    %c5_i32_680 = arith.constant 5 : i32
    %c5_i32_681 = arith.constant 5 : i32
    %c0_i32_682 = arith.constant 0 : i32
    %694 = tpu.memref_slice %arg2[%c0_i32_678, %c0_i32_682] : memref<10000x128xf32, #tpu.memory_space<any>> -> memref<1x128xf32, #tpu.memory_space<any>>
    %695 = tpu.memref_squeeze %694 : memref<1x128xf32, #tpu.memory_space<any>> -> memref<128xf32, #tpu.memory_space<any>>
    %c0_i32_683 = arith.constant 0 : i32
    %696 = tpu.memref_slice %arg8[%c1_i32_679, %c5_i32_680, %c0_i32_683] : memref<8x8x128xf32, #tpu.memory_space<vmem>> -> memref<1x1x128xf32, #tpu.memory_space<vmem>>
    %697 = tpu.memref_squeeze %696 : memref<1x1x128xf32, #tpu.memory_space<vmem>> -> memref<128xf32, #tpu.memory_space<vmem>>
    %698 = tpu.memref_slice %arg9[%c5_i32_681] : memref<8x!tpu.dma_semaphore, #tpu.memory_space<semaphore_mem>> -> memref<1x!tpu.dma_semaphore, #tpu.memory_space<semaphore_mem>>
    %699 = tpu.memref_squeeze %698 : memref<1x!tpu.dma_semaphore, #tpu.memory_space<semaphore_mem>> -> memref<!tpu.dma_semaphore, #tpu.memory_space<semaphore_mem>>
    tpu.wait_dma2 semaphore(%699 : memref<!tpu.dma_semaphore, #tpu.memory_space<semaphore_mem>>) src(%695 : memref<128xf32, #tpu.memory_space<any>>) dst(%697 : memref<128xf32, #tpu.memory_space<vmem>>)
    %c0_i32_684 = arith.constant 0 : i32
    %c2_i32_685 = arith.constant 2 : i32
    %c5_i32_686 = arith.constant 5 : i32
    %c5_i32_687 = arith.constant 5 : i32
    %c0_i32_688 = arith.constant 0 : i32
    %700 = tpu.memref_slice %arg2[%c0_i32_684, %c0_i32_688] : memref<10000x128xf32, #tpu.memory_space<any>> -> memref<1x128xf32, #tpu.memory_space<any>>
    %701 = tpu.memref_squeeze %700 : memref<1x128xf32, #tpu.memory_space<any>> -> memref<128xf32, #tpu.memory_space<any>>
    %c0_i32_689 = arith.constant 0 : i32
    %702 = tpu.memref_slice %arg8[%c2_i32_685, %c5_i32_686, %c0_i32_689] : memref<8x8x128xf32, #tpu.memory_space<vmem>> -> memref<1x1x128xf32, #tpu.memory_space<vmem>>
    %703 = tpu.memref_squeeze %702 : memref<1x1x128xf32, #tpu.memory_space<vmem>> -> memref<128xf32, #tpu.memory_space<vmem>>
    %704 = tpu.memref_slice %arg9[%c5_i32_687] : memref<8x!tpu.dma_semaphore, #tpu.memory_space<semaphore_mem>> -> memref<1x!tpu.dma_semaphore, #tpu.memory_space<semaphore_mem>>
    %705 = tpu.memref_squeeze %704 : memref<1x!tpu.dma_semaphore, #tpu.memory_space<semaphore_mem>> -> memref<!tpu.dma_semaphore, #tpu.memory_space<semaphore_mem>>
    tpu.wait_dma2 semaphore(%705 : memref<!tpu.dma_semaphore, #tpu.memory_space<semaphore_mem>>) src(%701 : memref<128xf32, #tpu.memory_space<any>>) dst(%703 : memref<128xf32, #tpu.memory_space<vmem>>)
    %c0_i32_690 = arith.constant 0 : i32
    %c3_i32_691 = arith.constant 3 : i32
    %c5_i32_692 = arith.constant 5 : i32
    %c5_i32_693 = arith.constant 5 : i32
    %c0_i32_694 = arith.constant 0 : i32
    %706 = tpu.memref_slice %arg2[%c0_i32_690, %c0_i32_694] : memref<10000x128xf32, #tpu.memory_space<any>> -> memref<1x128xf32, #tpu.memory_space<any>>
    %707 = tpu.memref_squeeze %706 : memref<1x128xf32, #tpu.memory_space<any>> -> memref<128xf32, #tpu.memory_space<any>>
    %c0_i32_695 = arith.constant 0 : i32
    %708 = tpu.memref_slice %arg8[%c3_i32_691, %c5_i32_692, %c0_i32_695] : memref<8x8x128xf32, #tpu.memory_space<vmem>> -> memref<1x1x128xf32, #tpu.memory_space<vmem>>
    %709 = tpu.memref_squeeze %708 : memref<1x1x128xf32, #tpu.memory_space<vmem>> -> memref<128xf32, #tpu.memory_space<vmem>>
    %710 = tpu.memref_slice %arg9[%c5_i32_693] : memref<8x!tpu.dma_semaphore, #tpu.memory_space<semaphore_mem>> -> memref<1x!tpu.dma_semaphore, #tpu.memory_space<semaphore_mem>>
    %711 = tpu.memref_squeeze %710 : memref<1x!tpu.dma_semaphore, #tpu.memory_space<semaphore_mem>> -> memref<!tpu.dma_semaphore, #tpu.memory_space<semaphore_mem>>
    tpu.wait_dma2 semaphore(%711 : memref<!tpu.dma_semaphore, #tpu.memory_space<semaphore_mem>>) src(%707 : memref<128xf32, #tpu.memory_space<any>>) dst(%709 : memref<128xf32, #tpu.memory_space<vmem>>)
    %c0_i32_696 = arith.constant 0 : i32
    %c4_i32_697 = arith.constant 4 : i32
    %c5_i32_698 = arith.constant 5 : i32
    %c5_i32_699 = arith.constant 5 : i32
    %c0_i32_700 = arith.constant 0 : i32
    %712 = tpu.memref_slice %arg2[%c0_i32_696, %c0_i32_700] : memref<10000x128xf32, #tpu.memory_space<any>> -> memref<1x128xf32, #tpu.memory_space<any>>
    %713 = tpu.memref_squeeze %712 : memref<1x128xf32, #tpu.memory_space<any>> -> memref<128xf32, #tpu.memory_space<any>>
    %c0_i32_701 = arith.constant 0 : i32
    %714 = tpu.memref_slice %arg8[%c4_i32_697, %c5_i32_698, %c0_i32_701] : memref<8x8x128xf32, #tpu.memory_space<vmem>> -> memref<1x1x128xf32, #tpu.memory_space<vmem>>
    %715 = tpu.memref_squeeze %714 : memref<1x1x128xf32, #tpu.memory_space<vmem>> -> memref<128xf32, #tpu.memory_space<vmem>>
    %716 = tpu.memref_slice %arg9[%c5_i32_699] : memref<8x!tpu.dma_semaphore, #tpu.memory_space<semaphore_mem>> -> memref<1x!tpu.dma_semaphore, #tpu.memory_space<semaphore_mem>>
    %717 = tpu.memref_squeeze %716 : memref<1x!tpu.dma_semaphore, #tpu.memory_space<semaphore_mem>> -> memref<!tpu.dma_semaphore, #tpu.memory_space<semaphore_mem>>
    tpu.wait_dma2 semaphore(%717 : memref<!tpu.dma_semaphore, #tpu.memory_space<semaphore_mem>>) src(%713 : memref<128xf32, #tpu.memory_space<any>>) dst(%715 : memref<128xf32, #tpu.memory_space<vmem>>)
    %c0_i32_702 = arith.constant 0 : i32
    %c5_i32_703 = arith.constant 5 : i32
    %c5_i32_704 = arith.constant 5 : i32
    %c5_i32_705 = arith.constant 5 : i32
    %c0_i32_706 = arith.constant 0 : i32
    %718 = tpu.memref_slice %arg2[%c0_i32_702, %c0_i32_706] : memref<10000x128xf32, #tpu.memory_space<any>> -> memref<1x128xf32, #tpu.memory_space<any>>
    %719 = tpu.memref_squeeze %718 : memref<1x128xf32, #tpu.memory_space<any>> -> memref<128xf32, #tpu.memory_space<any>>
    %c0_i32_707 = arith.constant 0 : i32
    %720 = tpu.memref_slice %arg8[%c5_i32_703, %c5_i32_704, %c0_i32_707] : memref<8x8x128xf32, #tpu.memory_space<vmem>> -> memref<1x1x128xf32, #tpu.memory_space<vmem>>
    %721 = tpu.memref_squeeze %720 : memref<1x1x128xf32, #tpu.memory_space<vmem>> -> memref<128xf32, #tpu.memory_space<vmem>>
    %722 = tpu.memref_slice %arg9[%c5_i32_705] : memref<8x!tpu.dma_semaphore, #tpu.memory_space<semaphore_mem>> -> memref<1x!tpu.dma_semaphore, #tpu.memory_space<semaphore_mem>>
    %723 = tpu.memref_squeeze %722 : memref<1x!tpu.dma_semaphore, #tpu.memory_space<semaphore_mem>> -> memref<!tpu.dma_semaphore, #tpu.memory_space<semaphore_mem>>
    tpu.wait_dma2 semaphore(%723 : memref<!tpu.dma_semaphore, #tpu.memory_space<semaphore_mem>>) src(%719 : memref<128xf32, #tpu.memory_space<any>>) dst(%721 : memref<128xf32, #tpu.memory_space<vmem>>)
    %c0_i32_708 = arith.constant 0 : i32
    %c6_i32_709 = arith.constant 6 : i32
    %c5_i32_710 = arith.constant 5 : i32
    %c5_i32_711 = arith.constant 5 : i32
    %c0_i32_712 = arith.constant 0 : i32
    %724 = tpu.memref_slice %arg2[%c0_i32_708, %c0_i32_712] : memref<10000x128xf32, #tpu.memory_space<any>> -> memref<1x128xf32, #tpu.memory_space<any>>
    %725 = tpu.memref_squeeze %724 : memref<1x128xf32, #tpu.memory_space<any>> -> memref<128xf32, #tpu.memory_space<any>>
    %c0_i32_713 = arith.constant 0 : i32
    %726 = tpu.memref_slice %arg8[%c6_i32_709, %c5_i32_710, %c0_i32_713] : memref<8x8x128xf32, #tpu.memory_space<vmem>> -> memref<1x1x128xf32, #tpu.memory_space<vmem>>
    %727 = tpu.memref_squeeze %726 : memref<1x1x128xf32, #tpu.memory_space<vmem>> -> memref<128xf32, #tpu.memory_space<vmem>>
    %728 = tpu.memref_slice %arg9[%c5_i32_711] : memref<8x!tpu.dma_semaphore, #tpu.memory_space<semaphore_mem>> -> memref<1x!tpu.dma_semaphore, #tpu.memory_space<semaphore_mem>>
    %729 = tpu.memref_squeeze %728 : memref<1x!tpu.dma_semaphore, #tpu.memory_space<semaphore_mem>> -> memref<!tpu.dma_semaphore, #tpu.memory_space<semaphore_mem>>
    tpu.wait_dma2 semaphore(%729 : memref<!tpu.dma_semaphore, #tpu.memory_space<semaphore_mem>>) src(%725 : memref<128xf32, #tpu.memory_space<any>>) dst(%727 : memref<128xf32, #tpu.memory_space<vmem>>)
    %c0_i32_714 = arith.constant 0 : i32
    %c7_i32_715 = arith.constant 7 : i32
    %c5_i32_716 = arith.constant 5 : i32
    %c5_i32_717 = arith.constant 5 : i32
    %c0_i32_718 = arith.constant 0 : i32
    %730 = tpu.memref_slice %arg2[%c0_i32_714, %c0_i32_718] : memref<10000x128xf32, #tpu.memory_space<any>> -> memref<1x128xf32, #tpu.memory_space<any>>
    %731 = tpu.memref_squeeze %730 : memref<1x128xf32, #tpu.memory_space<any>> -> memref<128xf32, #tpu.memory_space<any>>
    %c0_i32_719 = arith.constant 0 : i32
    %732 = tpu.memref_slice %arg8[%c7_i32_715, %c5_i32_716, %c0_i32_719] : memref<8x8x128xf32, #tpu.memory_space<vmem>> -> memref<1x1x128xf32, #tpu.memory_space<vmem>>
    %733 = tpu.memref_squeeze %732 : memref<1x1x128xf32, #tpu.memory_space<vmem>> -> memref<128xf32, #tpu.memory_space<vmem>>
    %734 = tpu.memref_slice %arg9[%c5_i32_717] : memref<8x!tpu.dma_semaphore, #tpu.memory_space<semaphore_mem>> -> memref<1x!tpu.dma_semaphore, #tpu.memory_space<semaphore_mem>>
    %735 = tpu.memref_squeeze %734 : memref<1x!tpu.dma_semaphore, #tpu.memory_space<semaphore_mem>> -> memref<!tpu.dma_semaphore, #tpu.memory_space<semaphore_mem>>
    tpu.wait_dma2 semaphore(%735 : memref<!tpu.dma_semaphore, #tpu.memory_space<semaphore_mem>>) src(%731 : memref<128xf32, #tpu.memory_space<any>>) dst(%733 : memref<128xf32, #tpu.memory_space<vmem>>)
    %c0_i32_720 = arith.constant 0 : i32
    %c0_i32_721 = arith.constant 0 : i32
    %c6_i32_722 = arith.constant 6 : i32
    %c6_i32_723 = arith.constant 6 : i32
    %c0_i32_724 = arith.constant 0 : i32
    %736 = tpu.memref_slice %arg2[%c0_i32_720, %c0_i32_724] : memref<10000x128xf32, #tpu.memory_space<any>> -> memref<1x128xf32, #tpu.memory_space<any>>
    %737 = tpu.memref_squeeze %736 : memref<1x128xf32, #tpu.memory_space<any>> -> memref<128xf32, #tpu.memory_space<any>>
    %c0_i32_725 = arith.constant 0 : i32
    %738 = tpu.memref_slice %arg8[%c0_i32_721, %c6_i32_722, %c0_i32_725] : memref<8x8x128xf32, #tpu.memory_space<vmem>> -> memref<1x1x128xf32, #tpu.memory_space<vmem>>
    %739 = tpu.memref_squeeze %738 : memref<1x1x128xf32, #tpu.memory_space<vmem>> -> memref<128xf32, #tpu.memory_space<vmem>>
    %740 = tpu.memref_slice %arg9[%c6_i32_723] : memref<8x!tpu.dma_semaphore, #tpu.memory_space<semaphore_mem>> -> memref<1x!tpu.dma_semaphore, #tpu.memory_space<semaphore_mem>>
    %741 = tpu.memref_squeeze %740 : memref<1x!tpu.dma_semaphore, #tpu.memory_space<semaphore_mem>> -> memref<!tpu.dma_semaphore, #tpu.memory_space<semaphore_mem>>
    tpu.wait_dma2 semaphore(%741 : memref<!tpu.dma_semaphore, #tpu.memory_space<semaphore_mem>>) src(%737 : memref<128xf32, #tpu.memory_space<any>>) dst(%739 : memref<128xf32, #tpu.memory_space<vmem>>)
    %c0_i32_726 = arith.constant 0 : i32
    %c1_i32_727 = arith.constant 1 : i32
    %c6_i32_728 = arith.constant 6 : i32
    %c6_i32_729 = arith.constant 6 : i32
    %c0_i32_730 = arith.constant 0 : i32
    %742 = tpu.memref_slice %arg2[%c0_i32_726, %c0_i32_730] : memref<10000x128xf32, #tpu.memory_space<any>> -> memref<1x128xf32, #tpu.memory_space<any>>
    %743 = tpu.memref_squeeze %742 : memref<1x128xf32, #tpu.memory_space<any>> -> memref<128xf32, #tpu.memory_space<any>>
    %c0_i32_731 = arith.constant 0 : i32
    %744 = tpu.memref_slice %arg8[%c1_i32_727, %c6_i32_728, %c0_i32_731] : memref<8x8x128xf32, #tpu.memory_space<vmem>> -> memref<1x1x128xf32, #tpu.memory_space<vmem>>
    %745 = tpu.memref_squeeze %744 : memref<1x1x128xf32, #tpu.memory_space<vmem>> -> memref<128xf32, #tpu.memory_space<vmem>>
    %746 = tpu.memref_slice %arg9[%c6_i32_729] : memref<8x!tpu.dma_semaphore, #tpu.memory_space<semaphore_mem>> -> memref<1x!tpu.dma_semaphore, #tpu.memory_space<semaphore_mem>>
    %747 = tpu.memref_squeeze %746 : memref<1x!tpu.dma_semaphore, #tpu.memory_space<semaphore_mem>> -> memref<!tpu.dma_semaphore, #tpu.memory_space<semaphore_mem>>
    tpu.wait_dma2 semaphore(%747 : memref<!tpu.dma_semaphore, #tpu.memory_space<semaphore_mem>>) src(%743 : memref<128xf32, #tpu.memory_space<any>>) dst(%745 : memref<128xf32, #tpu.memory_space<vmem>>)
    %c0_i32_732 = arith.constant 0 : i32
    %c2_i32_733 = arith.constant 2 : i32
    %c6_i32_734 = arith.constant 6 : i32
    %c6_i32_735 = arith.constant 6 : i32
    %c0_i32_736 = arith.constant 0 : i32
    %748 = tpu.memref_slice %arg2[%c0_i32_732, %c0_i32_736] : memref<10000x128xf32, #tpu.memory_space<any>> -> memref<1x128xf32, #tpu.memory_space<any>>
    %749 = tpu.memref_squeeze %748 : memref<1x128xf32, #tpu.memory_space<any>> -> memref<128xf32, #tpu.memory_space<any>>
    %c0_i32_737 = arith.constant 0 : i32
    %750 = tpu.memref_slice %arg8[%c2_i32_733, %c6_i32_734, %c0_i32_737] : memref<8x8x128xf32, #tpu.memory_space<vmem>> -> memref<1x1x128xf32, #tpu.memory_space<vmem>>
    %751 = tpu.memref_squeeze %750 : memref<1x1x128xf32, #tpu.memory_space<vmem>> -> memref<128xf32, #tpu.memory_space<vmem>>
    %752 = tpu.memref_slice %arg9[%c6_i32_735] : memref<8x!tpu.dma_semaphore, #tpu.memory_space<semaphore_mem>> -> memref<1x!tpu.dma_semaphore, #tpu.memory_space<semaphore_mem>>
    %753 = tpu.memref_squeeze %752 : memref<1x!tpu.dma_semaphore, #tpu.memory_space<semaphore_mem>> -> memref<!tpu.dma_semaphore, #tpu.memory_space<semaphore_mem>>
    tpu.wait_dma2 semaphore(%753 : memref<!tpu.dma_semaphore, #tpu.memory_space<semaphore_mem>>) src(%749 : memref<128xf32, #tpu.memory_space<any>>) dst(%751 : memref<128xf32, #tpu.memory_space<vmem>>)
    %c0_i32_738 = arith.constant 0 : i32
    %c3_i32_739 = arith.constant 3 : i32
    %c6_i32_740 = arith.constant 6 : i32
    %c6_i32_741 = arith.constant 6 : i32
    %c0_i32_742 = arith.constant 0 : i32
    %754 = tpu.memref_slice %arg2[%c0_i32_738, %c0_i32_742] : memref<10000x128xf32, #tpu.memory_space<any>> -> memref<1x128xf32, #tpu.memory_space<any>>
    %755 = tpu.memref_squeeze %754 : memref<1x128xf32, #tpu.memory_space<any>> -> memref<128xf32, #tpu.memory_space<any>>
    %c0_i32_743 = arith.constant 0 : i32
    %756 = tpu.memref_slice %arg8[%c3_i32_739, %c6_i32_740, %c0_i32_743] : memref<8x8x128xf32, #tpu.memory_space<vmem>> -> memref<1x1x128xf32, #tpu.memory_space<vmem>>
    %757 = tpu.memref_squeeze %756 : memref<1x1x128xf32, #tpu.memory_space<vmem>> -> memref<128xf32, #tpu.memory_space<vmem>>
    %758 = tpu.memref_slice %arg9[%c6_i32_741] : memref<8x!tpu.dma_semaphore, #tpu.memory_space<semaphore_mem>> -> memref<1x!tpu.dma_semaphore, #tpu.memory_space<semaphore_mem>>
    %759 = tpu.memref_squeeze %758 : memref<1x!tpu.dma_semaphore, #tpu.memory_space<semaphore_mem>> -> memref<!tpu.dma_semaphore, #tpu.memory_space<semaphore_mem>>
    tpu.wait_dma2 semaphore(%759 : memref<!tpu.dma_semaphore, #tpu.memory_space<semaphore_mem>>) src(%755 : memref<128xf32, #tpu.memory_space<any>>) dst(%757 : memref<128xf32, #tpu.memory_space<vmem>>)
    %c0_i32_744 = arith.constant 0 : i32
    %c4_i32_745 = arith.constant 4 : i32
    %c6_i32_746 = arith.constant 6 : i32
    %c6_i32_747 = arith.constant 6 : i32
    %c0_i32_748 = arith.constant 0 : i32
    %760 = tpu.memref_slice %arg2[%c0_i32_744, %c0_i32_748] : memref<10000x128xf32, #tpu.memory_space<any>> -> memref<1x128xf32, #tpu.memory_space<any>>
    %761 = tpu.memref_squeeze %760 : memref<1x128xf32, #tpu.memory_space<any>> -> memref<128xf32, #tpu.memory_space<any>>
    %c0_i32_749 = arith.constant 0 : i32
    %762 = tpu.memref_slice %arg8[%c4_i32_745, %c6_i32_746, %c0_i32_749] : memref<8x8x128xf32, #tpu.memory_space<vmem>> -> memref<1x1x128xf32, #tpu.memory_space<vmem>>
    %763 = tpu.memref_squeeze %762 : memref<1x1x128xf32, #tpu.memory_space<vmem>> -> memref<128xf32, #tpu.memory_space<vmem>>
    %764 = tpu.memref_slice %arg9[%c6_i32_747] : memref<8x!tpu.dma_semaphore, #tpu.memory_space<semaphore_mem>> -> memref<1x!tpu.dma_semaphore, #tpu.memory_space<semaphore_mem>>
    %765 = tpu.memref_squeeze %764 : memref<1x!tpu.dma_semaphore, #tpu.memory_space<semaphore_mem>> -> memref<!tpu.dma_semaphore, #tpu.memory_space<semaphore_mem>>
    tpu.wait_dma2 semaphore(%765 : memref<!tpu.dma_semaphore, #tpu.memory_space<semaphore_mem>>) src(%761 : memref<128xf32, #tpu.memory_space<any>>) dst(%763 : memref<128xf32, #tpu.memory_space<vmem>>)
    %c0_i32_750 = arith.constant 0 : i32
    %c5_i32_751 = arith.constant 5 : i32
    %c6_i32_752 = arith.constant 6 : i32
    %c6_i32_753 = arith.constant 6 : i32
    %c0_i32_754 = arith.constant 0 : i32
    %766 = tpu.memref_slice %arg2[%c0_i32_750, %c0_i32_754] : memref<10000x128xf32, #tpu.memory_space<any>> -> memref<1x128xf32, #tpu.memory_space<any>>
    %767 = tpu.memref_squeeze %766 : memref<1x128xf32, #tpu.memory_space<any>> -> memref<128xf32, #tpu.memory_space<any>>
    %c0_i32_755 = arith.constant 0 : i32
    %768 = tpu.memref_slice %arg8[%c5_i32_751, %c6_i32_752, %c0_i32_755] : memref<8x8x128xf32, #tpu.memory_space<vmem>> -> memref<1x1x128xf32, #tpu.memory_space<vmem>>
    %769 = tpu.memref_squeeze %768 : memref<1x1x128xf32, #tpu.memory_space<vmem>> -> memref<128xf32, #tpu.memory_space<vmem>>
    %770 = tpu.memref_slice %arg9[%c6_i32_753] : memref<8x!tpu.dma_semaphore, #tpu.memory_space<semaphore_mem>> -> memref<1x!tpu.dma_semaphore, #tpu.memory_space<semaphore_mem>>
    %771 = tpu.memref_squeeze %770 : memref<1x!tpu.dma_semaphore, #tpu.memory_space<semaphore_mem>> -> memref<!tpu.dma_semaphore, #tpu.memory_space<semaphore_mem>>
    tpu.wait_dma2 semaphore(%771 : memref<!tpu.dma_semaphore, #tpu.memory_space<semaphore_mem>>) src(%767 : memref<128xf32, #tpu.memory_space<any>>) dst(%769 : memref<128xf32, #tpu.memory_space<vmem>>)
    %c0_i32_756 = arith.constant 0 : i32
    %c6_i32_757 = arith.constant 6 : i32
    %c6_i32_758 = arith.constant 6 : i32
    %c6_i32_759 = arith.constant 6 : i32
    %c0_i32_760 = arith.constant 0 : i32
    %772 = tpu.memref_slice %arg2[%c0_i32_756, %c0_i32_760] : memref<10000x128xf32, #tpu.memory_space<any>> -> memref<1x128xf32, #tpu.memory_space<any>>
    %773 = tpu.memref_squeeze %772 : memref<1x128xf32, #tpu.memory_space<any>> -> memref<128xf32, #tpu.memory_space<any>>
    %c0_i32_761 = arith.constant 0 : i32
    %774 = tpu.memref_slice %arg8[%c6_i32_757, %c6_i32_758, %c0_i32_761] : memref<8x8x128xf32, #tpu.memory_space<vmem>> -> memref<1x1x128xf32, #tpu.memory_space<vmem>>
    %775 = tpu.memref_squeeze %774 : memref<1x1x128xf32, #tpu.memory_space<vmem>> -> memref<128xf32, #tpu.memory_space<vmem>>
    %776 = tpu.memref_slice %arg9[%c6_i32_759] : memref<8x!tpu.dma_semaphore, #tpu.memory_space<semaphore_mem>> -> memref<1x!tpu.dma_semaphore, #tpu.memory_space<semaphore_mem>>
    %777 = tpu.memref_squeeze %776 : memref<1x!tpu.dma_semaphore, #tpu.memory_space<semaphore_mem>> -> memref<!tpu.dma_semaphore, #tpu.memory_space<semaphore_mem>>
    tpu.wait_dma2 semaphore(%777 : memref<!tpu.dma_semaphore, #tpu.memory_space<semaphore_mem>>) src(%773 : memref<128xf32, #tpu.memory_space<any>>) dst(%775 : memref<128xf32, #tpu.memory_space<vmem>>)
    %c0_i32_762 = arith.constant 0 : i32
    %c7_i32_763 = arith.constant 7 : i32
    %c6_i32_764 = arith.constant 6 : i32
    %c6_i32_765 = arith.constant 6 : i32
    %c0_i32_766 = arith.constant 0 : i32
    %778 = tpu.memref_slice %arg2[%c0_i32_762, %c0_i32_766] : memref<10000x128xf32, #tpu.memory_space<any>> -> memref<1x128xf32, #tpu.memory_space<any>>
    %779 = tpu.memref_squeeze %778 : memref<1x128xf32, #tpu.memory_space<any>> -> memref<128xf32, #tpu.memory_space<any>>
    %c0_i32_767 = arith.constant 0 : i32
    %780 = tpu.memref_slice %arg8[%c7_i32_763, %c6_i32_764, %c0_i32_767] : memref<8x8x128xf32, #tpu.memory_space<vmem>> -> memref<1x1x128xf32, #tpu.memory_space<vmem>>
    %781 = tpu.memref_squeeze %780 : memref<1x1x128xf32, #tpu.memory_space<vmem>> -> memref<128xf32, #tpu.memory_space<vmem>>
    %782 = tpu.memref_slice %arg9[%c6_i32_765] : memref<8x!tpu.dma_semaphore, #tpu.memory_space<semaphore_mem>> -> memref<1x!tpu.dma_semaphore, #tpu.memory_space<semaphore_mem>>
    %783 = tpu.memref_squeeze %782 : memref<1x!tpu.dma_semaphore, #tpu.memory_space<semaphore_mem>> -> memref<!tpu.dma_semaphore, #tpu.memory_space<semaphore_mem>>
    tpu.wait_dma2 semaphore(%783 : memref<!tpu.dma_semaphore, #tpu.memory_space<semaphore_mem>>) src(%779 : memref<128xf32, #tpu.memory_space<any>>) dst(%781 : memref<128xf32, #tpu.memory_space<vmem>>)
    %c0_i32_768 = arith.constant 0 : i32
    %c0_i32_769 = arith.constant 0 : i32
    %c7_i32_770 = arith.constant 7 : i32
    %c7_i32_771 = arith.constant 7 : i32
    %c0_i32_772 = arith.constant 0 : i32
    %784 = tpu.memref_slice %arg2[%c0_i32_768, %c0_i32_772] : memref<10000x128xf32, #tpu.memory_space<any>> -> memref<1x128xf32, #tpu.memory_space<any>>
    %785 = tpu.memref_squeeze %784 : memref<1x128xf32, #tpu.memory_space<any>> -> memref<128xf32, #tpu.memory_space<any>>
    %c0_i32_773 = arith.constant 0 : i32
    %786 = tpu.memref_slice %arg8[%c0_i32_769, %c7_i32_770, %c0_i32_773] : memref<8x8x128xf32, #tpu.memory_space<vmem>> -> memref<1x1x128xf32, #tpu.memory_space<vmem>>
    %787 = tpu.memref_squeeze %786 : memref<1x1x128xf32, #tpu.memory_space<vmem>> -> memref<128xf32, #tpu.memory_space<vmem>>
    %788 = tpu.memref_slice %arg9[%c7_i32_771] : memref<8x!tpu.dma_semaphore, #tpu.memory_space<semaphore_mem>> -> memref<1x!tpu.dma_semaphore, #tpu.memory_space<semaphore_mem>>
    %789 = tpu.memref_squeeze %788 : memref<1x!tpu.dma_semaphore, #tpu.memory_space<semaphore_mem>> -> memref<!tpu.dma_semaphore, #tpu.memory_space<semaphore_mem>>
    tpu.wait_dma2 semaphore(%789 : memref<!tpu.dma_semaphore, #tpu.memory_space<semaphore_mem>>) src(%785 : memref<128xf32, #tpu.memory_space<any>>) dst(%787 : memref<128xf32, #tpu.memory_space<vmem>>)
    %c0_i32_774 = arith.constant 0 : i32
    %c1_i32_775 = arith.constant 1 : i32
    %c7_i32_776 = arith.constant 7 : i32
    %c7_i32_777 = arith.constant 7 : i32
    %c0_i32_778 = arith.constant 0 : i32
    %790 = tpu.memref_slice %arg2[%c0_i32_774, %c0_i32_778] : memref<10000x128xf32, #tpu.memory_space<any>> -> memref<1x128xf32, #tpu.memory_space<any>>
    %791 = tpu.memref_squeeze %790 : memref<1x128xf32, #tpu.memory_space<any>> -> memref<128xf32, #tpu.memory_space<any>>
    %c0_i32_779 = arith.constant 0 : i32
    %792 = tpu.memref_slice %arg8[%c1_i32_775, %c7_i32_776, %c0_i32_779] : memref<8x8x128xf32, #tpu.memory_space<vmem>> -> memref<1x1x128xf32, #tpu.memory_space<vmem>>
    %793 = tpu.memref_squeeze %792 : memref<1x1x128xf32, #tpu.memory_space<vmem>> -> memref<128xf32, #tpu.memory_space<vmem>>
    %794 = tpu.memref_slice %arg9[%c7_i32_777] : memref<8x!tpu.dma_semaphore, #tpu.memory_space<semaphore_mem>> -> memref<1x!tpu.dma_semaphore, #tpu.memory_space<semaphore_mem>>
    %795 = tpu.memref_squeeze %794 : memref<1x!tpu.dma_semaphore, #tpu.memory_space<semaphore_mem>> -> memref<!tpu.dma_semaphore, #tpu.memory_space<semaphore_mem>>
    tpu.wait_dma2 semaphore(%795 : memref<!tpu.dma_semaphore, #tpu.memory_space<semaphore_mem>>) src(%791 : memref<128xf32, #tpu.memory_space<any>>) dst(%793 : memref<128xf32, #tpu.memory_space<vmem>>)
    %c0_i32_780 = arith.constant 0 : i32
    %c2_i32_781 = arith.constant 2 : i32
    %c7_i32_782 = arith.constant 7 : i32
    %c7_i32_783 = arith.constant 7 : i32
    %c0_i32_784 = arith.constant 0 : i32
    %796 = tpu.memref_slice %arg2[%c0_i32_780, %c0_i32_784] : memref<10000x128xf32, #tpu.memory_space<any>> -> memref<1x128xf32, #tpu.memory_space<any>>
    %797 = tpu.memref_squeeze %796 : memref<1x128xf32, #tpu.memory_space<any>> -> memref<128xf32, #tpu.memory_space<any>>
    %c0_i32_785 = arith.constant 0 : i32
    %798 = tpu.memref_slice %arg8[%c2_i32_781, %c7_i32_782, %c0_i32_785] : memref<8x8x128xf32, #tpu.memory_space<vmem>> -> memref<1x1x128xf32, #tpu.memory_space<vmem>>
    %799 = tpu.memref_squeeze %798 : memref<1x1x128xf32, #tpu.memory_space<vmem>> -> memref<128xf32, #tpu.memory_space<vmem>>
    %800 = tpu.memref_slice %arg9[%c7_i32_783] : memref<8x!tpu.dma_semaphore, #tpu.memory_space<semaphore_mem>> -> memref<1x!tpu.dma_semaphore, #tpu.memory_space<semaphore_mem>>
    %801 = tpu.memref_squeeze %800 : memref<1x!tpu.dma_semaphore, #tpu.memory_space<semaphore_mem>> -> memref<!tpu.dma_semaphore, #tpu.memory_space<semaphore_mem>>
    tpu.wait_dma2 semaphore(%801 : memref<!tpu.dma_semaphore, #tpu.memory_space<semaphore_mem>>) src(%797 : memref<128xf32, #tpu.memory_space<any>>) dst(%799 : memref<128xf32, #tpu.memory_space<vmem>>)
    %c0_i32_786 = arith.constant 0 : i32
    %c3_i32_787 = arith.constant 3 : i32
    %c7_i32_788 = arith.constant 7 : i32
    %c7_i32_789 = arith.constant 7 : i32
    %c0_i32_790 = arith.constant 0 : i32
    %802 = tpu.memref_slice %arg2[%c0_i32_786, %c0_i32_790] : memref<10000x128xf32, #tpu.memory_space<any>> -> memref<1x128xf32, #tpu.memory_space<any>>
    %803 = tpu.memref_squeeze %802 : memref<1x128xf32, #tpu.memory_space<any>> -> memref<128xf32, #tpu.memory_space<any>>
    %c0_i32_791 = arith.constant 0 : i32
    %804 = tpu.memref_slice %arg8[%c3_i32_787, %c7_i32_788, %c0_i32_791] : memref<8x8x128xf32, #tpu.memory_space<vmem>> -> memref<1x1x128xf32, #tpu.memory_space<vmem>>
    %805 = tpu.memref_squeeze %804 : memref<1x1x128xf32, #tpu.memory_space<vmem>> -> memref<128xf32, #tpu.memory_space<vmem>>
    %806 = tpu.memref_slice %arg9[%c7_i32_789] : memref<8x!tpu.dma_semaphore, #tpu.memory_space<semaphore_mem>> -> memref<1x!tpu.dma_semaphore, #tpu.memory_space<semaphore_mem>>
    %807 = tpu.memref_squeeze %806 : memref<1x!tpu.dma_semaphore, #tpu.memory_space<semaphore_mem>> -> memref<!tpu.dma_semaphore, #tpu.memory_space<semaphore_mem>>
    tpu.wait_dma2 semaphore(%807 : memref<!tpu.dma_semaphore, #tpu.memory_space<semaphore_mem>>) src(%803 : memref<128xf32, #tpu.memory_space<any>>) dst(%805 : memref<128xf32, #tpu.memory_space<vmem>>)
    %c0_i32_792 = arith.constant 0 : i32
    %c4_i32_793 = arith.constant 4 : i32
    %c7_i32_794 = arith.constant 7 : i32
    %c7_i32_795 = arith.constant 7 : i32
    %c0_i32_796 = arith.constant 0 : i32
    %808 = tpu.memref_slice %arg2[%c0_i32_792, %c0_i32_796] : memref<10000x128xf32, #tpu.memory_space<any>> -> memref<1x128xf32, #tpu.memory_space<any>>
    %809 = tpu.memref_squeeze %808 : memref<1x128xf32, #tpu.memory_space<any>> -> memref<128xf32, #tpu.memory_space<any>>
    %c0_i32_797 = arith.constant 0 : i32
    %810 = tpu.memref_slice %arg8[%c4_i32_793, %c7_i32_794, %c0_i32_797] : memref<8x8x128xf32, #tpu.memory_space<vmem>> -> memref<1x1x128xf32, #tpu.memory_space<vmem>>
    %811 = tpu.memref_squeeze %810 : memref<1x1x128xf32, #tpu.memory_space<vmem>> -> memref<128xf32, #tpu.memory_space<vmem>>
    %812 = tpu.memref_slice %arg9[%c7_i32_795] : memref<8x!tpu.dma_semaphore, #tpu.memory_space<semaphore_mem>> -> memref<1x!tpu.dma_semaphore, #tpu.memory_space<semaphore_mem>>
    %813 = tpu.memref_squeeze %812 : memref<1x!tpu.dma_semaphore, #tpu.memory_space<semaphore_mem>> -> memref<!tpu.dma_semaphore, #tpu.memory_space<semaphore_mem>>
    tpu.wait_dma2 semaphore(%813 : memref<!tpu.dma_semaphore, #tpu.memory_space<semaphore_mem>>) src(%809 : memref<128xf32, #tpu.memory_space<any>>) dst(%811 : memref<128xf32, #tpu.memory_space<vmem>>)
    %c0_i32_798 = arith.constant 0 : i32
    %c5_i32_799 = arith.constant 5 : i32
    %c7_i32_800 = arith.constant 7 : i32
    %c7_i32_801 = arith.constant 7 : i32
    %c0_i32_802 = arith.constant 0 : i32
    %814 = tpu.memref_slice %arg2[%c0_i32_798, %c0_i32_802] : memref<10000x128xf32, #tpu.memory_space<any>> -> memref<1x128xf32, #tpu.memory_space<any>>
    %815 = tpu.memref_squeeze %814 : memref<1x128xf32, #tpu.memory_space<any>> -> memref<128xf32, #tpu.memory_space<any>>
    %c0_i32_803 = arith.constant 0 : i32
    %816 = tpu.memref_slice %arg8[%c5_i32_799, %c7_i32_800, %c0_i32_803] : memref<8x8x128xf32, #tpu.memory_space<vmem>> -> memref<1x1x128xf32, #tpu.memory_space<vmem>>
    %817 = tpu.memref_squeeze %816 : memref<1x1x128xf32, #tpu.memory_space<vmem>> -> memref<128xf32, #tpu.memory_space<vmem>>
    %818 = tpu.memref_slice %arg9[%c7_i32_801] : memref<8x!tpu.dma_semaphore, #tpu.memory_space<semaphore_mem>> -> memref<1x!tpu.dma_semaphore, #tpu.memory_space<semaphore_mem>>
    %819 = tpu.memref_squeeze %818 : memref<1x!tpu.dma_semaphore, #tpu.memory_space<semaphore_mem>> -> memref<!tpu.dma_semaphore, #tpu.memory_space<semaphore_mem>>
    tpu.wait_dma2 semaphore(%819 : memref<!tpu.dma_semaphore, #tpu.memory_space<semaphore_mem>>) src(%815 : memref<128xf32, #tpu.memory_space<any>>) dst(%817 : memref<128xf32, #tpu.memory_space<vmem>>)
    %c0_i32_804 = arith.constant 0 : i32
    %c6_i32_805 = arith.constant 6 : i32
    %c7_i32_806 = arith.constant 7 : i32
    %c7_i32_807 = arith.constant 7 : i32
    %c0_i32_808 = arith.constant 0 : i32
    %820 = tpu.memref_slice %arg2[%c0_i32_804, %c0_i32_808] : memref<10000x128xf32, #tpu.memory_space<any>> -> memref<1x128xf32, #tpu.memory_space<any>>
    %821 = tpu.memref_squeeze %820 : memref<1x128xf32, #tpu.memory_space<any>> -> memref<128xf32, #tpu.memory_space<any>>
    %c0_i32_809 = arith.constant 0 : i32
    %822 = tpu.memref_slice %arg8[%c6_i32_805, %c7_i32_806, %c0_i32_809] : memref<8x8x128xf32, #tpu.memory_space<vmem>> -> memref<1x1x128xf32, #tpu.memory_space<vmem>>
    %823 = tpu.memref_squeeze %822 : memref<1x1x128xf32, #tpu.memory_space<vmem>> -> memref<128xf32, #tpu.memory_space<vmem>>
    %824 = tpu.memref_slice %arg9[%c7_i32_807] : memref<8x!tpu.dma_semaphore, #tpu.memory_space<semaphore_mem>> -> memref<1x!tpu.dma_semaphore, #tpu.memory_space<semaphore_mem>>
    %825 = tpu.memref_squeeze %824 : memref<1x!tpu.dma_semaphore, #tpu.memory_space<semaphore_mem>> -> memref<!tpu.dma_semaphore, #tpu.memory_space<semaphore_mem>>
    tpu.wait_dma2 semaphore(%825 : memref<!tpu.dma_semaphore, #tpu.memory_space<semaphore_mem>>) src(%821 : memref<128xf32, #tpu.memory_space<any>>) dst(%823 : memref<128xf32, #tpu.memory_space<vmem>>)
    %c0_i32_810 = arith.constant 0 : i32
    %c7_i32_811 = arith.constant 7 : i32
    %c7_i32_812 = arith.constant 7 : i32
    %c7_i32_813 = arith.constant 7 : i32
    %c0_i32_814 = arith.constant 0 : i32
    %826 = tpu.memref_slice %arg2[%c0_i32_810, %c0_i32_814] : memref<10000x128xf32, #tpu.memory_space<any>> -> memref<1x128xf32, #tpu.memory_space<any>>
    %827 = tpu.memref_squeeze %826 : memref<1x128xf32, #tpu.memory_space<any>> -> memref<128xf32, #tpu.memory_space<any>>
    %c0_i32_815 = arith.constant 0 : i32
    %828 = tpu.memref_slice %arg8[%c7_i32_811, %c7_i32_812, %c0_i32_815] : memref<8x8x128xf32, #tpu.memory_space<vmem>> -> memref<1x1x128xf32, #tpu.memory_space<vmem>>
    %829 = tpu.memref_squeeze %828 : memref<1x1x128xf32, #tpu.memory_space<vmem>> -> memref<128xf32, #tpu.memory_space<vmem>>
    %830 = tpu.memref_slice %arg9[%c7_i32_813] : memref<8x!tpu.dma_semaphore, #tpu.memory_space<semaphore_mem>> -> memref<1x!tpu.dma_semaphore, #tpu.memory_space<semaphore_mem>>
    %831 = tpu.memref_squeeze %830 : memref<1x!tpu.dma_semaphore, #tpu.memory_space<semaphore_mem>> -> memref<!tpu.dma_semaphore, #tpu.memory_space<semaphore_mem>>
    tpu.wait_dma2 semaphore(%831 : memref<!tpu.dma_semaphore, #tpu.memory_space<semaphore_mem>>) src(%827 : memref<128xf32, #tpu.memory_space<any>>) dst(%829 : memref<128xf32, #tpu.memory_space<vmem>>)
    %c0_816 = arith.constant 0 : index
    %c0_817 = arith.constant 0 : index
    %c0_818 = arith.constant 0 : index
    %832 = vector.load %arg8[%c0_816, %c0_817, %c0_818] : memref<8x8x128xf32, #tpu.memory_space<vmem>>, vector<8x8x128xf32>
    %cst = arith.constant dense<0.000000e+00> : vector<8x128xf32>
    %833 = vector.multi_reduction <add>, %832, %cst [0] : vector<8x8x128xf32> to vector<8x128xf32>
    %cst_819 = arith.constant 1.250000e-01 : f32
    %834 = vector.broadcast %cst_819 : f32 to vector<8x128xf32>
    %835 = arith.mulf %833, %834 : vector<8x128xf32>
    %c0_820 = arith.constant 0 : index
    %c0_821 = arith.constant 0 : index
    %836 = vector.load %arg3[%c0_820, %c0_821] : memref<64x128xf32, #tpu.memory_space<vmem>>, vector<64x128xf32>
    %cst_822 = arith.constant dense<0.000000e+00> : vector<64x8xf32>
    %837 = tpu.matmul %836, %835, %cst_822 {dimension_numbers = #tpu.dot_dimension_numbers<[1], [1], [0], [0], [0, 0, 1, 0], [], []>} : vector<64x128xf32>, vector<8x128xf32>, vector<64x8xf32> -> vector<64x8xf32>
    %c0_823 = arith.constant 0 : index
    %c0_824 = arith.constant 0 : index
    %838 = vector.load %arg4[%c0_823, %c0_824] : memref<64x1xf32, #tpu.memory_space<vmem>>, vector<64x1xf32>
    %839 = vector.broadcast %838 : vector<64x1xf32> to vector<64x8xf32>
    %840 = arith.addf %837, %839 : vector<64x8xf32>
    %c0_825 = arith.constant 0 : index
    %c0_826 = arith.constant 0 : index
    %841 = vector.load %arg5[%c0_825, %c0_826] : memref<64x1xf32, #tpu.memory_space<vmem>>, vector<64x1xf32>
    %842 = vector.broadcast %841 : vector<64x1xf32> to vector<64x8xf32>
    %843 = arith.mulf %840, %842 : vector<64x8xf32>
    %cst_827 = arith.constant dense<0.000000e+00> : vector<8xf32>
    %844 = vector.multi_reduction <add>, %843, %cst_827 [0] : vector<64x8xf32> to vector<8xf32>
    %845 = vector.shape_cast %844 : vector<8xf32> to vector<1x8xf32>
    %c0_828 = arith.constant 0 : index
    %c0_829 = arith.constant 0 : index
    %846 = vector.load %arg6[%c0_828, %c0_829] : memref<1x1xf32, #tpu.memory_space<vmem>>, vector<1x1xf32>
    %847 = vector.broadcast %846 : vector<1x1xf32> to vector<1x8xf32>
    %848 = arith.addf %845, %847 : vector<1x8xf32>
    %c0_830 = arith.constant 0 : index
    %c0_831 = arith.constant 0 : index
    %849 = vector.load %arg7[%c0_830, %c0_831] : memref<1x8xf32, #tpu.memory_space<vmem>>, vector<1x8xf32>
    tpu.vector_store %arg7[%c0_830, %c0_831], %848 {strides = array<i32>} : memref<1x8xf32, #tpu.memory_space<vmem>>, vector<1x8xf32>,
    return
  }
  func.func @transform_1(%arg0: i32, %arg1: memref<8x8xi32, #tpu.memory_space<smem>>) -> (i32, i32) {
    %c0_i32 = arith.constant 0 : i32
    %c0_i32_0 = arith.constant 0 : i32
    %c0_i32_1 = arith.constant 0 : i32
    return %c0_i32, %c0_i32_0 : i32, i32
  }
  func.func @transform_2(%arg0: i32, %arg1: memref<8x8xi32, #tpu.memory_space<smem>>) -> (i32, i32) {
    %c0_i32 = arith.constant 0 : i32
    %c0_i32_0 = arith.constant 0 : i32
    %c0_i32_1 = arith.constant 0 : i32
    return %c0_i32, %c0_i32_0 : i32, i32
  }
  func.func @transform_3(%arg0: i32, %arg1: memref<8x8xi32, #tpu.memory_space<smem>>) -> (i32, i32) {
    %c0_i32 = arith.constant 0 : i32
    %c0_i32_0 = arith.constant 0 : i32
    %c0_i32_1 = arith.constant 0 : i32
    return %c0_i32, %c0_i32_0 : i32, i32
  }
  func.func @transform_4(%arg0: i32, %arg1: memref<8x8xi32, #tpu.memory_space<smem>>) -> (i32, i32) {
    %c0_i32 = arith.constant 0 : i32
    %c0_i32_0 = arith.constant 0 : i32
    %c0_i32_1 = arith.constant 0 : i32
    return %c0_i32, %c0_i32_0 : i32, i32
  }
  func.func @transform_5(%arg0: i32, %arg1: memref<8x8xi32, #tpu.memory_space<smem>>) -> (i32, i32) {
    %c0_i32 = arith.constant 0 : i32
    %c0_i32_0 = arith.constant 0 : i32
    %c0_i32_1 = arith.constant 0 : i32
    return %c0_i32, %c0_i32_0 : i32, i32
  }
}

</mosaic_0001>

<llo_original>
// kernel: tpu_custom_call.1
$region0: #{tpu_custom_call.1}
  #allocation0 [shape = 'u32[]', space=smem, size = 0x4, offset = 0x4, fixed_abs, tag = 'smem constant byte address 0x4 - core index']
  #allocation1 [shape = 'u32[72,128]{1,0:T(1,128)}', space=vmem, size = 0x9000, scoped, tag = 'internal scratch']
  #allocation2 [shape = 'f32[8,8,128]{2,1,0:T(8,128)}', space=vmem, size = 0x8000, scoped, tag = 'scratch operand']
  #allocation3 [shape = 's32[8]{0}', space=sflag, size = 0x20, scoped, tag = 'scratch operand']
  #allocation4 [shape = 's32[1]{0}', space=sflag, size = 0x4, scoped, tag = 'scoped memory for tpu_custom_call.1']
  #allocation5 [shape = 'u8[4096]{0}', space=smem, size = 0x1000, scoped, tag = 'prefetched SMEM operand 0']
  #allocation6 [shape = 'f32[1,1]{1,0:T(1,128)S(1)}', space=vmem, size = 0x200, scoped, tag = 'scoped memory for tpu_custom_call.1']
  #allocation11 [shape = 's32[]', space=sflag, size = 0x4, offset = 0, fixed_abs, tag = 'sflag constant byte address 0x0 - dummy sync flag']
  #allocation12 [shape = 's32[]', space=sflag, size = 0x4, offset = 0, fixed_abs, tag = 'sflag constant byte address 0x0 - dummy sync flag']
  #allocation13 [shape = 'u32[]', space=smem, size = 0x4, offset = 0x44, fixed_abs, tag = 'smem constant byte address 0x44 - assertion arg 0']
  #allocation14 [shape = 'u32[]', space=smem, size = 0x4, offset = 0x48, fixed_abs, tag = 'smem constant byte address 0x48 - assertion arg 1']
  #allocation15 [shape = 's32[]', space=sflag, size = 0x4, offset = 0, fixed_abs, tag = 'sflag constant byte address 0x0 - dummy sync flag']
  #allocation16 [shape = 's32[]', space=sflag, size = 0x4, offset = 0, fixed_abs, tag = 'sflag constant byte address 0x0 - dummy sync flag']
  #allocation17 [shape = 's32[]', space=sflag, size = 0x4, offset = 0, fixed_abs, tag = 'sflag constant byte address 0x0 - dummy sync flag']
  #allocation18 [shape = 's32[]', space=sflag, size = 0x4, offset = 0, fixed_abs, tag = 'sflag constant byte address 0x0 - dummy sync flag']
  #allocation19 [shape = 's32[]', space=sflag, size = 0x4, offset = 0, fixed_abs, tag = 'sflag constant byte address 0x0 - dummy sync flag']
  #allocation20 [shape = 's32[]', space=sflag, size = 0x4, offset = 0, fixed_abs, tag = 'sflag constant byte address 0x0 - dummy sync flag']
  #allocation21 [shape = 's32[]', space=sflag, size = 0x4, offset = 0, fixed_abs, tag = 'sflag constant byte address 0x0 - dummy sync flag']
  #allocation22 [shape = 's32[]', space=sflag, size = 0x4, offset = 0, fixed_abs, tag = 'sflag constant byte address 0x0 - dummy sync flag']
  #allocation23 [shape = 's32[]', space=sflag, size = 0x4, offset = 0, fixed_abs, tag = 'sflag constant byte address 0x0 - dummy sync flag']
  #allocation24 [shape = 's32[]', space=sflag, size = 0x4, offset = 0, fixed_abs, tag = 'sflag constant byte address 0x0 - dummy sync flag']
  #allocation25 [shape = 's32[]', space=sflag, size = 0x4, offset = 0, fixed_abs, tag = 'sflag constant byte address 0x0 - dummy sync flag']
  #allocation26 [shape = 's32[]', space=sflag, size = 0x4, offset = 0, fixed_abs, tag = 'sflag constant byte address 0x0 - dummy sync flag']
  #allocation27 [shape = 's32[]', space=sflag, size = 0x4, offset = 0, fixed_abs, tag = 'sflag constant byte address 0x0 - dummy sync flag']
  #allocation28 [shape = 's32[]', space=sflag, size = 0x4, offset = 0, fixed_abs, tag = 'sflag constant byte address 0x0 - dummy sync flag']
  #allocation29 [shape = 's32[]', space=sflag, size = 0x4, offset = 0, fixed_abs, tag = 'sflag constant byte address 0x0 - dummy sync flag']
  #allocation30 [shape = 's32[]', space=sflag, size = 0x4, offset = 0, fixed_abs, tag = 'sflag constant byte address 0x0 - dummy sync flag']
  #allocation31 [shape = 's32[]', space=sflag, size = 0x4, offset = 0, fixed_abs, tag = 'sflag constant byte address 0x0 - dummy sync flag']
  #allocation32 [shape = 's32[]', space=sflag, size = 0x4, offset = 0, fixed_abs, tag = 'sflag constant byte address 0x0 - dummy sync flag']
  #allocation33 [shape = 's32[]', space=sflag, size = 0x4, offset = 0, fixed_abs, tag = 'sflag constant byte address 0x0 - dummy sync flag']
  #allocation34 [shape = 's32[]', space=sflag, size = 0x4, offset = 0, fixed_abs, tag = 'sflag constant byte address 0x0 - dummy sync flag']
  #allocation35 [shape = 's32[]', space=sflag, size = 0x4, offset = 0, fixed_abs, tag = 'sflag constant byte address 0x0 - dummy sync flag']
  #allocation36 [shape = 's32[]', space=sflag, size = 0x4, offset = 0, fixed_abs, tag = 'sflag constant byte address 0x0 - dummy sync flag']
  #allocation37 [shape = 's32[]', space=sflag, size = 0x4, offset = 0, fixed_abs, tag = 'sflag constant byte address 0x0 - dummy sync flag']
  #allocation38 [shape = 's32[]', space=sflag, size = 0x4, offset = 0, fixed_abs, tag = 'sflag constant byte address 0x0 - dummy sync flag']
  #allocation39 [shape = 's32[]', space=sflag, size = 0x4, offset = 0, fixed_abs, tag = 'sflag constant byte address 0x0 - dummy sync flag']
  #allocation40 [shape = 's32[]', space=sflag, size = 0x4, offset = 0, fixed_abs, tag = 'sflag constant byte address 0x0 - dummy sync flag']
  #allocation41 [shape = 's32[]', space=sflag, size = 0x4, offset = 0, fixed_abs, tag = 'sflag constant byte address 0x0 - dummy sync flag']
  #allocation42 [shape = 's32[]', space=sflag, size = 0x4, offset = 0, fixed_abs, tag = 'sflag constant byte address 0x0 - dummy sync flag']
  #allocation43 [shape = 's32[]', space=sflag, size = 0x4, offset = 0, fixed_abs, tag = 'sflag constant byte address 0x0 - dummy sync flag']
  #allocation44 [shape = 's32[]', space=sflag, size = 0x4, offset = 0, fixed_abs, tag = 'sflag constant byte address 0x0 - dummy sync flag']
  #allocation45 [shape = 's32[]', space=sflag, size = 0x4, offset = 0, fixed_abs, tag = 'sflag constant byte address 0x0 - dummy sync flag']
  #allocation46 [shape = 's32[]', space=sflag, size = 0x4, offset = 0, fixed_abs, tag = 'sflag constant byte address 0x0 - dummy sync flag']
  #allocation47 [shape = 's32[]', space=sflag, size = 0x4, offset = 0, fixed_abs, tag = 'sflag constant byte address 0x0 - dummy sync flag']
  #allocation48 [shape = 's32[]', space=sflag, size = 0x4, offset = 0, fixed_abs, tag = 'sflag constant byte address 0x0 - dummy sync flag']
  #allocation49 [shape = 's32[]', space=sflag, size = 0x4, offset = 0, fixed_abs, tag = 'sflag constant byte address 0x0 - dummy sync flag']
  #allocation50 [shape = 's32[]', space=sflag, size = 0x4, offset = 0, fixed_abs, tag = 'sflag constant byte address 0x0 - dummy sync flag']
  #allocation51 [shape = 's32[]', space=sflag, size = 0x4, offset = 0, fixed_abs, tag = 'sflag constant byte address 0x0 - dummy sync flag']
  #allocation52 [shape = 's32[]', space=sflag, size = 0x4, offset = 0, fixed_abs, tag = 'sflag constant byte address 0x0 - dummy sync flag']
  #allocation53 [shape = 's32[]', space=sflag, size = 0x4, offset = 0, fixed_abs, tag = 'sflag constant byte address 0x0 - dummy sync flag']
  #allocation54 [shape = 's32[]', space=sflag, size = 0x4, offset = 0, fixed_abs, tag = 'sflag constant byte address 0x0 - dummy sync flag']
  #allocation55 [shape = 's32[]', space=sflag, size = 0x4, offset = 0, fixed_abs, tag = 'sflag constant byte address 0x0 - dummy sync flag']
  #allocation56 [shape = 's32[]', space=sflag, size = 0x4, offset = 0, fixed_abs, tag = 'sflag constant byte address 0x0 - dummy sync flag']
  #allocation57 [shape = 's32[]', space=sflag, size = 0x4, offset = 0, fixed_abs, tag = 'sflag constant byte address 0x0 - dummy sync flag']
  #allocation58 [shape = 's32[]', space=sflag, size = 0x4, offset = 0, fixed_abs, tag = 'sflag constant byte address 0x0 - dummy sync flag']
  #allocation59 [shape = 's32[]', space=sflag, size = 0x4, offset = 0, fixed_abs, tag = 'sflag constant byte address 0x0 - dummy sync flag']
  #allocation60 [shape = 's32[]', space=sflag, size = 0x4, offset = 0, fixed_abs, tag = 'sflag constant byte address 0x0 - dummy sync flag']
  #allocation61 [shape = 's32[]', space=sflag, size = 0x4, offset = 0, fixed_abs, tag = 'sflag constant byte address 0x0 - dummy sync flag']
  #allocation62 [shape = 's32[]', space=sflag, size = 0x4, offset = 0, fixed_abs, tag = 'sflag constant byte address 0x0 - dummy sync flag']
  #allocation63 [shape = 's32[]', space=sflag, size = 0x4, offset = 0, fixed_abs, tag = 'sflag constant byte address 0x0 - dummy sync flag']
  #allocation64 [shape = 's32[]', space=sflag, size = 0x4, offset = 0, fixed_abs, tag = 'sflag constant byte address 0x0 - dummy sync flag']
  #allocation65 [shape = 's32[]', space=sflag, size = 0x4, offset = 0, fixed_abs, tag = 'sflag constant byte address 0x0 - dummy sync flag']
  #allocation66 [shape = 's32[]', space=sflag, size = 0x4, offset = 0, fixed_abs, tag = 'sflag constant byte address 0x0 - dummy sync flag']
  #allocation67 [shape = 's32[]', space=sflag, size = 0x4, offset = 0, fixed_abs, tag = 'sflag constant byte address 0x0 - dummy sync flag']
  #allocation68 [shape = 's32[]', space=sflag, size = 0x4, offset = 0, fixed_abs, tag = 'sflag constant byte address 0x0 - dummy sync flag']
  #allocation69 [shape = 's32[]', space=sflag, size = 0x4, offset = 0, fixed_abs, tag = 'sflag constant byte address 0x0 - dummy sync flag']
  #allocation70 [shape = 's32[]', space=sflag, size = 0x4, offset = 0, fixed_abs, tag = 'sflag constant byte address 0x0 - dummy sync flag']
  #allocation71 [shape = 's32[]', space=sflag, size = 0x4, offset = 0, fixed_abs, tag = 'sflag constant byte address 0x0 - dummy sync flag']
  #allocation72 [shape = 's32[]', space=sflag, size = 0x4, offset = 0, fixed_abs, tag = 'sflag constant byte address 0x0 - dummy sync flag']
  #allocation73 [shape = 's32[]', space=sflag, size = 0x4, offset = 0, fixed_abs, tag = 'sflag constant byte address 0x0 - dummy sync flag']
  #allocation74 [shape = 's32[]', space=sflag, size = 0x4, offset = 0, fixed_abs, tag = 'sflag constant byte address 0x0 - dummy sync flag']
  #allocation75 [shape = 's32[]', space=sflag, size = 0x4, offset = 0, fixed_abs, tag = 'sflag constant byte address 0x0 - dummy sync flag']
  #allocation76 [shape = 's32[]', space=sflag, size = 0x4, offset = 0, fixed_abs, tag = 'sflag constant byte address 0x0 - dummy sync flag']
  #allocation77 [shape = 's32[]', space=sflag, size = 0x4, offset = 0, fixed_abs, tag = 'sflag constant byte address 0x0 - dummy sync flag']
  #allocation78 [shape = 's32[]', space=sflag, size = 0x4, offset = 0, fixed_abs, tag = 'sflag constant byte address 0x0 - dummy sync flag']
  #allocation79 [shape = 's32[]', space=sflag, size = 0x4, offset = 0, fixed_abs, tag = 'sflag constant byte address 0x0 - dummy sync flag']
  #allocation80 [shape = 's32[]', space=sflag, size = 0x4, offset = 0, fixed_abs, tag = 'sflag constant byte address 0x0 - dummy sync flag']
  #allocation81 [shape = 's32[]', space=sflag, size = 0x4, offset = 0, fixed_abs, tag = 'sflag constant byte address 0x0 - dummy sync flag']
  #allocation82 [shape = 's32[]', space=sflag, size = 0x4, offset = 0, fixed_abs, tag = 'sflag constant byte address 0x0 - dummy sync flag']
  #allocation83 [shape = 's32[]', space=sflag, size = 0x4, offset = 0, fixed_abs, tag = 'sflag constant byte address 0x0 - dummy sync flag']
  #allocation84 [shape = 's32[]', space=sflag, size = 0x4, offset = 0, fixed_abs, tag = 'sflag constant byte address 0x0 - dummy sync flag']
  #allocation85 [shape = 's32[]', space=sflag, size = 0x4, offset = 0, fixed_abs, tag = 'sflag constant byte address 0x0 - dummy sync flag']
  #allocation86 [shape = 's32[]', space=sflag, size = 0x4, offset = 0, fixed_abs, tag = 'sflag constant byte address 0x0 - dummy sync flag']
  #allocation87 [shape = 's32[]', space=sflag, size = 0x4, offset = 0, fixed_abs, tag = 'sflag constant byte address 0x0 - dummy sync flag']
  #allocation88 [shape = 's32[]', space=sflag, size = 0x4, offset = 0, fixed_abs, tag = 'sflag constant byte address 0x0 - dummy sync flag']
  #allocation89 [shape = 's32[]', space=sflag, size = 0x4, offset = 0, fixed_abs, tag = 'sflag constant byte address 0x0 - dummy sync flag']
  #allocation90 [shape = 's32[]', space=sflag, size = 0x4, offset = 0, fixed_abs, tag = 'sflag constant byte address 0x0 - dummy sync flag']
  #allocation91 [shape = 's32[]', space=sflag, size = 0x4, offset = 0, fixed_abs, tag = 'sflag constant byte address 0x0 - dummy sync flag']
  #allocation92 [shape = 's32[]', space=sflag, size = 0x4, offset = 0, fixed_abs, tag = 'sflag constant byte address 0x0 - dummy sync flag']
  #allocation93 [shape = 's32[]', space=sflag, size = 0x4, offset = 0, fixed_abs, tag = 'sflag constant byte address 0x0 - dummy sync flag']
  #allocation94 [shape = 's32[]', space=sflag, size = 0x4, offset = 0, fixed_abs, tag = 'sflag constant byte address 0x0 - dummy sync flag']
  #allocation95 [shape = 's32[]', space=sflag, size = 0x4, offset = 0, fixed_abs, tag = 'sflag constant byte address 0x0 - dummy sync flag']
  #allocation96 [shape = 's32[]', space=sflag, size = 0x4, offset = 0, fixed_abs, tag = 'sflag constant byte address 0x0 - dummy sync flag']
  #allocation97 [shape = 's32[]', space=sflag, size = 0x4, offset = 0, fixed_abs, tag = 'sflag constant byte address 0x0 - dummy sync flag']
  #allocation98 [shape = 's32[]', space=sflag, size = 0x4, offset = 0, fixed_abs, tag = 'sflag constant byte address 0x0 - dummy sync flag']
  #allocation99 [shape = 's32[]', space=sflag, size = 0x4, offset = 0, fixed_abs, tag = 'sflag constant byte address 0x0 - dummy sync flag']
  #allocation100 [shape = 's32[]', space=sflag, size = 0x4, offset = 0, fixed_abs, tag = 'sflag constant byte address 0x0 - dummy sync flag']
  #allocation101 [shape = 's32[]', space=sflag, size = 0x4, offset = 0, fixed_abs, tag = 'sflag constant byte address 0x0 - dummy sync flag']
  #allocation102 [shape = 's32[]', space=sflag, size = 0x4, offset = 0, fixed_abs, tag = 'sflag constant byte address 0x0 - dummy sync flag']
  #allocation103 [shape = 's32[]', space=sflag, size = 0x4, offset = 0, fixed_abs, tag = 'sflag constant byte address 0x0 - dummy sync flag']
  #allocation104 [shape = 's32[]', space=sflag, size = 0x4, offset = 0, fixed_abs, tag = 'sflag constant byte address 0x0 - dummy sync flag']
  #allocation105 [shape = 's32[]', space=sflag, size = 0x4, offset = 0, fixed_abs, tag = 'sflag constant byte address 0x0 - dummy sync flag']
  #allocation106 [shape = 's32[]', space=sflag, size = 0x4, offset = 0, fixed_abs, tag = 'sflag constant byte address 0x0 - dummy sync flag']
  #allocation107 [shape = 's32[]', space=sflag, size = 0x4, offset = 0, fixed_abs, tag = 'sflag constant byte address 0x0 - dummy sync flag']
  #allocation108 [shape = 's32[]', space=sflag, size = 0x4, offset = 0, fixed_abs, tag = 'sflag constant byte address 0x0 - dummy sync flag']
  #allocation109 [shape = 's32[]', space=sflag, size = 0x4, offset = 0, fixed_abs, tag = 'sflag constant byte address 0x0 - dummy sync flag']
  #allocation110 [shape = 's32[]', space=sflag, size = 0x4, offset = 0, fixed_abs, tag = 'sflag constant byte address 0x0 - dummy sync flag']
  #allocation111 [shape = 's32[]', space=sflag, size = 0x4, offset = 0, fixed_abs, tag = 'sflag constant byte address 0x0 - dummy sync flag']
  #allocation112 [shape = 's32[]', space=sflag, size = 0x4, offset = 0, fixed_abs, tag = 'sflag constant byte address 0x0 - dummy sync flag']
  #allocation113 [shape = 's32[]', space=sflag, size = 0x4, offset = 0, fixed_abs, tag = 'sflag constant byte address 0x0 - dummy sync flag']
  #allocation114 [shape = 's32[]', space=sflag, size = 0x4, offset = 0, fixed_abs, tag = 'sflag constant byte address 0x0 - dummy sync flag']
  #allocation115 [shape = 's32[]', space=sflag, size = 0x4, offset = 0, fixed_abs, tag = 'sflag constant byte address 0x0 - dummy sync flag']
  #allocation116 [shape = 's32[]', space=sflag, size = 0x4, offset = 0, fixed_abs, tag = 'sflag constant byte address 0x0 - dummy sync flag']
  #allocation117 [shape = 's32[]', space=sflag, size = 0x4, offset = 0, fixed_abs, tag = 'sflag constant byte address 0x0 - dummy sync flag']
  #allocation118 [shape = 's32[]', space=sflag, size = 0x4, offset = 0, fixed_abs, tag = 'sflag constant byte address 0x0 - dummy sync flag']
  #allocation119 [shape = 's32[]', space=sflag, size = 0x4, offset = 0, fixed_abs, tag = 'sflag constant byte address 0x0 - dummy sync flag']
  #allocation120 [shape = 's32[]', space=sflag, size = 0x4, offset = 0, fixed_abs, tag = 'sflag constant byte address 0x0 - dummy sync flag']
  #allocation121 [shape = 's32[]', space=sflag, size = 0x4, offset = 0, fixed_abs, tag = 'sflag constant byte address 0x0 - dummy sync flag']
  #allocation122 [shape = 's32[]', space=sflag, size = 0x4, offset = 0, fixed_abs, tag = 'sflag constant byte address 0x0 - dummy sync flag']
  #allocation123 [shape = 's32[]', space=sflag, size = 0x4, offset = 0, fixed_abs, tag = 'sflag constant byte address 0x0 - dummy sync flag']
  #allocation124 [shape = 's32[]', space=sflag, size = 0x4, offset = 0, fixed_abs, tag = 'sflag constant byte address 0x0 - dummy sync flag']
  #allocation125 [shape = 's32[]', space=sflag, size = 0x4, offset = 0, fixed_abs, tag = 'sflag constant byte address 0x0 - dummy sync flag']
  #allocation126 [shape = 's32[]', space=sflag, size = 0x4, offset = 0, fixed_abs, tag = 'sflag constant byte address 0x0 - dummy sync flag']
  #allocation127 [shape = 's32[]', space=sflag, size = 0x4, offset = 0, fixed_abs, tag = 'sflag constant byte address 0x0 - dummy sync flag']
  #allocation128 [shape = 's32[]', space=sflag, size = 0x4, offset = 0, fixed_abs, tag = 'sflag constant byte address 0x0 - dummy sync flag']
  #allocation129 [shape = 's32[]', space=sflag, size = 0x4, offset = 0, fixed_abs, tag = 'sflag constant byte address 0x0 - dummy sync flag']
  #allocation130 [shape = 's32[]', space=sflag, size = 0x4, offset = 0, fixed_abs, tag = 'sflag constant byte address 0x0 - dummy sync flag']
  #allocation131 [shape = 's32[]', space=sflag, size = 0x4, offset = 0, fixed_abs, tag = 'sflag constant byte address 0x0 - dummy sync flag']
  #allocation132 [shape = 's32[]', space=sflag, size = 0x4, offset = 0, fixed_abs, tag = 'sflag constant byte address 0x0 - dummy sync flag']
  #allocation133 [shape = 's32[]', space=sflag, size = 0x4, offset = 0, fixed_abs, tag = 'sflag constant byte address 0x0 - dummy sync flag']
  #allocation134 [shape = 's32[]', space=sflag, size = 0x4, offset = 0, fixed_abs, tag = 'sflag constant byte address 0x0 - dummy sync flag']
  #allocation135 [shape = 's32[]', space=sflag, size = 0x4, offset = 0, fixed_abs, tag = 'sflag constant byte address 0x0 - dummy sync flag']
  #allocation136 [shape = 's32[]', space=sflag, size = 0x4, offset = 0, fixed_abs, tag = 'sflag constant byte address 0x0 - dummy sync flag']
  #allocation137 [shape = 's32[]', space=sflag, size = 0x4, offset = 0, fixed_abs, tag = 'sflag constant byte address 0x0 - dummy sync flag']
  #allocation138 [shape = 's32[]', space=sflag, size = 0x4, offset = 0, fixed_abs, tag = 'sflag constant byte address 0x0 - dummy sync flag']
  #allocation139 [shape = 's32[]', space=sflag, size = 0x4, offset = 0, fixed_abs, tag = 'sflag constant byte address 0x0 - dummy sync flag']
  #allocation140 [shape = 's32[]', space=sflag, size = 0x4, offset = 0, fixed_abs, tag = 'sflag constant byte address 0x0 - dummy sync flag']
  %s0 = inlined_call_operand.hbm [shape: s32[8,8], index: 0, kind: input, shape index: {}]
  %s1 = inlined_call_operand.hbm [shape: f32[10000,128], index: 1, kind: input, shape index: {}]
  %s2 = inlined_call_operand.hbm [shape: f32[64,128], index: 2, kind: input, shape index: {}]
  %s3 = inlined_call_operand.vmem [shape: f32[64,1], index: 3, kind: input, shape index: {}]
  %s4 = inlined_call_operand.vmem [shape: f32[64,1], index: 4, kind: input, shape index: {}]
  %s5 = inlined_call_operand.<no memory space> [shape: f32[1,1], index: 5, kind: input, shape index: {}]
  %s6 = inlined_call_operand.hbm [shape: f32[1,8], index: 6, kind: output, shape index: {}]
  %s7 = sld [smem:[#allocation0]]
  $region286: #{tpu_custom_call.1} parent=0
    _
  %s9 = ssub.s32 1, %s7
  %s10 = scalar_select 0, %s9, %s7
  %s12 = sshll.u32 %s0, 4
  %s13 = int_to_ptr.hbm [resolvable:$true] %s12
  %15 = dma.hbm_to_smem %s13, 128, [#allocation5], [#allocation4]
  %v16 = vstv %s5
  %17 = vst [vmem:[#allocation6] sm:$0x1] %v16
  %19 = dma.done [#allocation4], 128
  %20 = sfence
  $region1: #{tpu_custom_call.1} parent=0
    #allocation7 [shape = 'u8[32768]{0}', space=vmem, size = 0x8000, scoped, tag = 'input window, operand 2, single buffered']
    #allocation8 [shape = 's32[1]{0}', space=sflag, size = 0x4, scoped, tag = 'scoped memory for tpu_custom_call.1']
    #allocation9 [shape = 's32[1]{0}', space=sflag, size = 0x4, scoped, tag = 'scoped memory for tpu_custom_call.1']
    #allocation10 [shape = 'u8[512]{0}', space=vmem, size = 0x400, scoped, tag = 'output window, operand 0, single buffered']
    %21 = vsyncpa [#allocation8], 0
    %22 = vsyncpa [#allocation9], 0
    // Predicated region
    $region2: #{tpu_custom_call.1} parent=1 // pred_check
      _
    $region3: #{tpu_custom_call.1} parent=1 // pred_check_branch
      %24 = sbr.rel (0) target = $region5
    $region4: #{tpu_custom_call.1} parent=1 // pred_region
      %26 = vsyncadd [#allocation8], 0
      %s27 = sshll.u32 %s2, 4
      %s28 = int_to_ptr.hbm [resolvable:$true] %s27
      %s29 = sshll.u32 [#allocation7], 4
      %s30 = int_to_ptr.vmem [resolvable:$true] %s29
      %35 = dma.hbm_to_vmem [thread:$0]  %s28, 1024, %s30, [#allocation8], 128, 128, 8
    $region5: #{tpu_custom_call.1} parent=1 // pred_fallthru
      _
    // Predicated region
    $region6: #{tpu_custom_call.1} parent=1 // pred_check
      _
    $region7: #{tpu_custom_call.1} parent=1 // pred_check_branch
      %37 = sbr.rel (0) target = $region9
    $region8: #{tpu_custom_call.1} parent=1 // pred_region
      _
    $region9: #{tpu_custom_call.1} parent=1 // pred_fallthru
      _
    // Predicated region
    $region10: #{tpu_custom_call.1} parent=1 // pred_check
      _
    $region11: #{tpu_custom_call.1} parent=1 // pred_check_branch
      %39 = sbr.rel (0) target = $region13
    $region12: #{tpu_custom_call.1} parent=1 // pred_region
      _
    $region13: #{tpu_custom_call.1} parent=1 // pred_fallthru
      _
    // Predicated region
    $region14: #{tpu_custom_call.1} parent=1 // pred_check
      _
    $region15: #{tpu_custom_call.1} parent=1 // pred_check_branch
      %41 = sbr.rel (0) target = $region17
    $region16: #{tpu_custom_call.1} parent=1 // pred_region
      _
    $region17: #{tpu_custom_call.1} parent=1 // pred_fallthru
      _
    // Predicated region
    $region18: #{tpu_custom_call.1} parent=1 // pred_check
      _
    $region19: #{tpu_custom_call.1} parent=1 // pred_check_branch
      %43 = sbr.rel (0) target = $region21
    $region20: #{tpu_custom_call.1} parent=1 // pred_region
      %45 = dma.done [#allocation8], 1024
    $region21: #{tpu_custom_call.1} parent=1 // pred_fallthru
      _
    %s46 = sld [smem:[#allocation5]]
    %s47 = scalar_lea.hbm %s1, %s46
    // Predicated region
    $region22: #{tpu_custom_call.1} parent=1 // pred_check
      _
    $region23: #{tpu_custom_call.1} parent=1 // pred_check_branch
      %49 = sbr.rel target = $region25
    $region24: #{tpu_custom_call.1} parent=1 // pred_region
      %50 = sst [smem:[#allocation13]] [#allocation12]
      %51 = sst [smem:[#allocation14]] [#allocation11]
    $region25: #{tpu_custom_call.1} parent=1 // pred_fallthru
      _
    %53 = shalt.err (0)
    %s55 = sshll.u32 %s47, 4
    %s56 = int_to_ptr.hbm [resolvable:$true] %s55
    %s57 = sshll.u32 [#allocation2], 4
    %s58 = int_to_ptr.vmem [resolvable:$true] %s57
    %60 = dma.hbm_to_vmem [thread:$0]  %s56, 16, %s58, [#allocation3]
    %s61 = sld [smem:[#allocation5 + $0x1]]
    %s62 = scalar_lea.hbm %s1, %s61
    %s63 = scalar_lea.vmem [#allocation2], 8
    // Predicated region
    $region26: #{tpu_custom_call.1} parent=1 // pred_check
      _
    $region27: #{tpu_custom_call.1} parent=1 // pred_check_branch
      %65 = sbr.rel target = $region29
    $region28: #{tpu_custom_call.1} parent=1 // pred_region
      %66 = sst [smem:[#allocation13]] [#allocation16]
      %67 = sst [smem:[#allocation14]] [#allocation15]
    $region29: #{tpu_custom_call.1} parent=1 // pred_fallthru
      _
    %69 = shalt.err (0)
    %s71 = sshll.u32 %s62, 4
    %s72 = int_to_ptr.hbm [resolvable:$true] %s71
    %s73 = sshll.u32 %s63, 4
    %s74 = int_to_ptr.vmem [resolvable:$true] %s73
    %76 = dma.hbm_to_vmem [thread:$0]  %s72, 16, %s74, [#allocation3]
    %s77 = sld [smem:[#allocation5 + $0x2]]
    %s78 = scalar_lea.hbm %s1, %s77
    %s79 = scalar_lea.vmem [#allocation2], 16
    // Predicated region
    $region30: #{tpu_custom_call.1} parent=1 // pred_check
      _
    $region31: #{tpu_custom_call.1} parent=1 // pred_check_branch
      %81 = sbr.rel target = $region33
    $region32: #{tpu_custom_call.1} parent=1 // pred_region
      %82 = sst [smem:[#allocation13]] [#allocation18]
      %83 = sst [smem:[#allocation14]] [#allocation17]
    $region33: #{tpu_custom_call.1} parent=1 // pred_fallthru
      _
    %85 = shalt.err (0)
    %s87 = sshll.u32 %s78, 4
    %s88 = int_to_ptr.hbm [resolvable:$true] %s87
    %s89 = sshll.u32 %s79, 4
    %s90 = int_to_ptr.vmem [resolvable:$true] %s89
    %92 = dma.hbm_to_vmem [thread:$0]  %s88, 16, %s90, [#allocation3]
    %s93 = sld [smem:[#allocation5 + $0x3]]
    %s94 = scalar_lea.hbm %s1, %s93
    %s95 = scalar_lea.vmem [#allocation2], 24
    // Predicated region
    $region34: #{tpu_custom_call.1} parent=1 // pred_check
      _
    $region35: #{tpu_custom_call.1} parent=1 // pred_check_branch
      %97 = sbr.rel target = $region37
    $region36: #{tpu_custom_call.1} parent=1 // pred_region
      %98 = sst [smem:[#allocation13]] [#allocation20]
      %99 = sst [smem:[#allocation14]] [#allocation19]
    $region37: #{tpu_custom_call.1} parent=1 // pred_fallthru
      _
    %101 = shalt.err (0)
    %s103 = sshll.u32 %s94, 4
    %s104 = int_to_ptr.hbm [resolvable:$true] %s103
    %s105 = sshll.u32 %s95, 4
    %s106 = int_to_ptr.vmem [resolvable:$true] %s105
    %108 = dma.hbm_to_vmem [thread:$0]  %s104, 16, %s106, [#allocation3]
    %s109 = sld [smem:[#allocation5 + $0x4]]
    %s110 = scalar_lea.hbm %s1, %s109
    %s111 = scalar_lea.vmem [#allocation2], 32
    // Predicated region
    $region38: #{tpu_custom_call.1} parent=1 // pred_check
      _
    $region39: #{tpu_custom_call.1} parent=1 // pred_check_branch
      %113 = sbr.rel target = $region41
    $region40: #{tpu_custom_call.1} parent=1 // pred_region
      %114 = sst [smem:[#allocation13]] [#allocation22]
      %115 = sst [smem:[#allocation14]] [#allocation21]
    $region41: #{tpu_custom_call.1} parent=1 // pred_fallthru
      _
    %117 = shalt.err (0)
    %s119 = sshll.u32 %s110, 4
    %s120 = int_to_ptr.hbm [resolvable:$true] %s119
    %s121 = sshll.u32 %s111, 4
    %s122 = int_to_ptr.vmem [resolvable:$true] %s121
    %124 = dma.hbm_to_vmem [thread:$0]  %s120, 16, %s122, [#allocation3]
    %s125 = sld [smem:[#allocation5 + $0x5]]
    %s126 = scalar_lea.hbm %s1, %s125
    %s127 = scalar_lea.vmem [#allocation2], 40
    // Predicated region
    $region42: #{tpu_custom_call.1} parent=1 // pred_check
      _
    $region43: #{tpu_custom_call.1} parent=1 // pred_check_branch
      %129 = sbr.rel target = $region45
    $region44: #{tpu_custom_call.1} parent=1 // pred_region
      %130 = sst [smem:[#allocation13]] [#allocation24]
      %131 = sst [smem:[#allocation14]] [#allocation23]
    $region45: #{tpu_custom_call.1} parent=1 // pred_fallthru
      _
    %133 = shalt.err (0)
    %s135 = sshll.u32 %s126, 4
    %s136 = int_to_ptr.hbm [resolvable:$true] %s135
    %s137 = sshll.u32 %s127, 4
    %s138 = int_to_ptr.vmem [resolvable:$true] %s137
    %140 = dma.hbm_to_vmem [thread:$0]  %s136, 16, %s138, [#allocation3]
    %s141 = sld [smem:[#allocation5 + $0x6]]
    %s142 = scalar_lea.hbm %s1, %s141
    %s143 = scalar_lea.vmem [#allocation2], 48
    // Predicated region
    $region46: #{tpu_custom_call.1} parent=1 // pred_check
      _
    $region47: #{tpu_custom_call.1} parent=1 // pred_check_branch
      %145 = sbr.rel target = $region49
    $region48: #{tpu_custom_call.1} parent=1 // pred_region
      %146 = sst [smem:[#allocation13]] [#allocation26]
      %147 = sst [smem:[#allocation14]] [#allocation25]
    $region49: #{tpu_custom_call.1} parent=1 // pred_fallthru
      _
    %149 = shalt.err (0)
    %s151 = sshll.u32 %s142, 4
    %s152 = int_to_ptr.hbm [resolvable:$true] %s151
    %s153 = sshll.u32 %s143, 4
    %s154 = int_to_ptr.vmem [resolvable:$true] %s153
    %156 = dma.hbm_to_vmem [thread:$0]  %s152, 16, %s154, [#allocation3]
    %s157 = sld [smem:[#allocation5 + $0x7]]
    %s158 = scalar_lea.hbm %s1, %s157
    %s159 = scalar_lea.vmem [#allocation2], 56
    // Predicated region
    $region50: #{tpu_custom_call.1} parent=1 // pred_check
      _
    $region51: #{tpu_custom_call.1} parent=1 // pred_check_branch
      %161 = sbr.rel target = $region53
    $region52: #{tpu_custom_call.1} parent=1 // pred_region
      %162 = sst [smem:[#allocation13]] [#allocation28]
      %163 = sst [smem:[#allocation14]] [#allocation27]
    $region53: #{tpu_custom_call.1} parent=1 // pred_fallthru
      _
    %165 = shalt.err (0)
    %s167 = sshll.u32 %s158, 4
    %s168 = int_to_ptr.hbm [resolvable:$true] %s167
    %s169 = sshll.u32 %s159, 4
    %s170 = int_to_ptr.vmem [resolvable:$true] %s169
    %172 = dma.hbm_to_vmem [thread:$0]  %s168, 16, %s170, [#allocation3]
    %s173 = sld [smem:[#allocation5 + $0x80]]
    %s174 = scalar_lea.hbm %s1, %s173
    %s175 = scalar_lea.vmem [#allocation2], 1
    %s176 = scalar_lea.sflag [#allocation3], 1
    // Predicated region
    $region54: #{tpu_custom_call.1} parent=1 // pred_check
      _
    $region55: #{tpu_custom_call.1} parent=1 // pred_check_branch
      %178 = sbr.rel target = $region57
    $region56: #{tpu_custom_call.1} parent=1 // pred_region
      %179 = sst [smem:[#allocation13]] [#allocation30]
      %180 = sst [smem:[#allocation14]] [#allocation29]
    $region57: #{tpu_custom_call.1} parent=1 // pred_fallthru
      _
    %182 = shalt.err (0)
    %s184 = sshll.u32 %s174, 4
    %s185 = int_to_ptr.hbm [resolvable:$true] %s184
    %s186 = sshll.u32 %s175, 4
    %s187 = int_to_ptr.vmem [resolvable:$true] %s186
    %189 = dma.hbm_to_vmem [thread:$0]  %s185, 16, %s187, %s176
    %s190 = sld [smem:[#allocation5 + $0x81]]
    %s191 = scalar_lea.hbm %s1, %s190
    %s192 = scalar_lea.vmem [#allocation2], 9
    // Predicated region
    $region58: #{tpu_custom_call.1} parent=1 // pred_check
      _
    $region59: #{tpu_custom_call.1} parent=1 // pred_check_branch
      %194 = sbr.rel target = $region61
    $region60: #{tpu_custom_call.1} parent=1 // pred_region
      %195 = sst [smem:[#allocation13]] [#allocation32]
      %196 = sst [smem:[#allocation14]] [#allocation31]
    $region61: #{tpu_custom_call.1} parent=1 // pred_fallthru
      _
    %198 = shalt.err (0)
    %s200 = sshll.u32 %s191, 4
    %s201 = int_to_ptr.hbm [resolvable:$true] %s200
    %s202 = sshll.u32 %s192, 4
    %s203 = int_to_ptr.vmem [resolvable:$true] %s202
    %205 = dma.hbm_to_vmem [thread:$0]  %s201, 16, %s203, %s176
    %s206 = sld [smem:[#allocation5 + $0x82]]
    %s207 = scalar_lea.hbm %s1, %s206
    %s208 = scalar_lea.vmem [#allocation2], 17
    // Predicated region
    $region62: #{tpu_custom_call.1} parent=1 // pred_check
      _
    $region63: #{tpu_custom_call.1} parent=1 // pred_check_branch
      %210 = sbr.rel target = $region65
    $region64: #{tpu_custom_call.1} parent=1 // pred_region
      %211 = sst [smem:[#allocation13]] [#allocation34]
      %212 = sst [smem:[#allocation14]] [#allocation33]
    $region65: #{tpu_custom_call.1} parent=1 // pred_fallthru
      _
    %214 = shalt.err (0)
    %s216 = sshll.u32 %s207, 4
    %s217 = int_to_ptr.hbm [resolvable:$true] %s216
    %s218 = sshll.u32 %s208, 4
    %s219 = int_to_ptr.vmem [resolvable:$true] %s218
    %221 = dma.hbm_to_vmem [thread:$0]  %s217, 16, %s219, %s176
    %s222 = sld [smem:[#allocation5 + $0x83]]
    %s223 = scalar_lea.hbm %s1, %s222
    %s224 = scalar_lea.vmem [#allocation2], 25
    // Predicated region
    $region66: #{tpu_custom_call.1} parent=1 // pred_check
      _
    $region67: #{tpu_custom_call.1} parent=1 // pred_check_branch
      %226 = sbr.rel target = $region69
    $region68: #{tpu_custom_call.1} parent=1 // pred_region
      %227 = sst [smem:[#allocation13]] [#allocation36]
      %228 = sst [smem:[#allocation14]] [#allocation35]
    $region69: #{tpu_custom_call.1} parent=1 // pred_fallthru
      _
    %230 = shalt.err (0)
    %s232 = sshll.u32 %s223, 4
    %s233 = int_to_ptr.hbm [resolvable:$true] %s232
    %s234 = sshll.u32 %s224, 4
    %s235 = int_to_ptr.vmem [resolvable:$true] %s234
    %237 = dma.hbm_to_vmem [thread:$0]  %s233, 16, %s235, %s176
    %s238 = sld [smem:[#allocation5 + $0x84]]
    %s239 = scalar_lea.hbm %s1, %s238
    %s240 = scalar_lea.vmem [#allocation2], 33
    // Predicated region
    $region70: #{tpu_custom_call.1} parent=1 // pred_check
      _
    $region71: #{tpu_custom_call.1} parent=1 // pred_check_branch
      %242 = sbr.rel target = $region73
    $region72: #{tpu_custom_call.1} parent=1 // pred_region
      %243 = sst [smem:[#allocation13]] [#allocation38]
      %244 = sst [smem:[#allocation14]] [#allocation37]
    $region73: #{tpu_custom_call.1} parent=1 // pred_fallthru
      _
    %246 = shalt.err (0)
    %s248 = sshll.u32 %s239, 4
    %s249 = int_to_ptr.hbm [resolvable:$true] %s248
    %s250 = sshll.u32 %s240, 4
    %s251 = int_to_ptr.vmem [resolvable:$true] %s250
    %253 = dma.hbm_to_vmem [thread:$0]  %s249, 16, %s251, %s176
    %s254 = sld [smem:[#allocation5 + $0x85]]
    %s255 = scalar_lea.hbm %s1, %s254
    %s256 = scalar_lea.vmem [#allocation2], 41
    // Predicated region
    $region74: #{tpu_custom_call.1} parent=1 // pred_check
      _
    $region75: #{tpu_custom_call.1} parent=1 // pred_check_branch
      %258 = sbr.rel target = $region77
    $region76: #{tpu_custom_call.1} parent=1 // pred_region
      %259 = sst [smem:[#allocation13]] [#allocation40]
      %260 = sst [smem:[#allocation14]] [#allocation39]
    $region77: #{tpu_custom_call.1} parent=1 // pred_fallthru
      _
    %262 = shalt.err (0)
    %s264 = sshll.u32 %s255, 4
    %s265 = int_to_ptr.hbm [resolvable:$true] %s264
    %s266 = sshll.u32 %s256, 4
    %s267 = int_to_ptr.vmem [resolvable:$true] %s266
    %269 = dma.hbm_to_vmem [thread:$0]  %s265, 16, %s267, %s176
    %s270 = sld [smem:[#allocation5 + $0x86]]
    %s271 = scalar_lea.hbm %s1, %s270
    %s272 = scalar_lea.vmem [#allocation2], 49
    // Predicated region
    $region78: #{tpu_custom_call.1} parent=1 // pred_check
      _
    $region79: #{tpu_custom_call.1} parent=1 // pred_check_branch
      %274 = sbr.rel target = $region81
    $region80: #{tpu_custom_call.1} parent=1 // pred_region
      %275 = sst [smem:[#allocation13]] [#allocation42]
      %276 = sst [smem:[#allocation14]] [#allocation41]
    $region81: #{tpu_custom_call.1} parent=1 // pred_fallthru
      _
    %278 = shalt.err (0)
    %s280 = sshll.u32 %s271, 4
    %s281 = int_to_ptr.hbm [resolvable:$true] %s280
    %s282 = sshll.u32 %s272, 4
    %s283 = int_to_ptr.vmem [resolvable:$true] %s282
    %285 = dma.hbm_to_vmem [thread:$0]  %s281, 16, %s283, %s176
    %s286 = sld [smem:[#allocation5 + $0x87]]
    %s287 = scalar_lea.hbm %s1, %s286
    %s288 = scalar_lea.vmem [#allocation2], 57
    // Predicated region
    $region82: #{tpu_custom_call.1} parent=1 // pred_check
      _
    $region83: #{tpu_custom_call.1} parent=1 // pred_check_branch
      %290 = sbr.rel target = $region85
    $region84: #{tpu_custom_call.1} parent=1 // pred_region
      %291 = sst [smem:[#allocation13]] [#allocation44]
      %292 = sst [smem:[#allocation14]] [#allocation43]
    $region85: #{tpu_custom_call.1} parent=1 // pred_fallthru
      _
    %294 = shalt.err (0)
    %s296 = sshll.u32 %s287, 4
    %s297 = int_to_ptr.hbm [resolvable:$true] %s296
    %s298 = sshll.u32 %s288, 4
    %s299 = int_to_ptr.vmem [resolvable:$true] %s298
    %301 = dma.hbm_to_vmem [thread:$0]  %s297, 16, %s299, %s176
    %s302 = sld [smem:[#allocation5 + $0x100]]
    %s303 = scalar_lea.hbm %s1, %s302
    %s304 = scalar_lea.vmem [#allocation2], 2
    %s305 = scalar_lea.sflag [#allocation3], 2
    // Predicated region
    $region86: #{tpu_custom_call.1} parent=1 // pred_check
      _
    $region87: #{tpu_custom_call.1} parent=1 // pred_check_branch
      %307 = sbr.rel target = $region89
    $region88: #{tpu_custom_call.1} parent=1 // pred_region
      %308 = sst [smem:[#allocation13]] [#allocation46]
      %309 = sst [smem:[#allocation14]] [#allocation45]
    $region89: #{tpu_custom_call.1} parent=1 // pred_fallthru
      _
    %311 = shalt.err (0)
    %s313 = sshll.u32 %s303, 4
    %s314 = int_to_ptr.hbm [resolvable:$true] %s313
    %s315 = sshll.u32 %s304, 4
    %s316 = int_to_ptr.vmem [resolvable:$true] %s315
    %318 = dma.hbm_to_vmem [thread:$0]  %s314, 16, %s316, %s305
    %s319 = sld [smem:[#allocation5 + $0x101]]
    %s320 = scalar_lea.hbm %s1, %s319
    %s321 = scalar_lea.vmem [#allocation2], 10
    // Predicated region
    $region90: #{tpu_custom_call.1} parent=1 // pred_check
      _
    $region91: #{tpu_custom_call.1} parent=1 // pred_check_branch
      %323 = sbr.rel target = $region93
    $region92: #{tpu_custom_call.1} parent=1 // pred_region
      %324 = sst [smem:[#allocation13]] [#allocation48]
      %325 = sst [smem:[#allocation14]] [#allocation47]
    $region93: #{tpu_custom_call.1} parent=1 // pred_fallthru
      _
    %327 = shalt.err (0)
    %s329 = sshll.u32 %s320, 4
    %s330 = int_to_ptr.hbm [resolvable:$true] %s329
    %s331 = sshll.u32 %s321, 4
    %s332 = int_to_ptr.vmem [resolvable:$true] %s331
    %334 = dma.hbm_to_vmem [thread:$0]  %s330, 16, %s332, %s305
    %s335 = sld [smem:[#allocation5 + $0x102]]
    %s336 = scalar_lea.hbm %s1, %s335
    %s337 = scalar_lea.vmem [#allocation2], 18
    // Predicated region
    $region94: #{tpu_custom_call.1} parent=1 // pred_check
      _
    $region95: #{tpu_custom_call.1} parent=1 // pred_check_branch
      %339 = sbr.rel target = $region97
    $region96: #{tpu_custom_call.1} parent=1 // pred_region
      %340 = sst [smem:[#allocation13]] [#allocation50]
      %341 = sst [smem:[#allocation14]] [#allocation49]
    $region97: #{tpu_custom_call.1} parent=1 // pred_fallthru
      _
    %343 = shalt.err (0)
    %s345 = sshll.u32 %s336, 4
    %s346 = int_to_ptr.hbm [resolvable:$true] %s345
    %s347 = sshll.u32 %s337, 4
    %s348 = int_to_ptr.vmem [resolvable:$true] %s347
    %350 = dma.hbm_to_vmem [thread:$0]  %s346, 16, %s348, %s305
    %s351 = sld [smem:[#allocation5 + $0x103]]
    %s352 = scalar_lea.hbm %s1, %s351
    %s353 = scalar_lea.vmem [#allocation2], 26
    // Predicated region
    $region98: #{tpu_custom_call.1} parent=1 // pred_check
      _
    $region99: #{tpu_custom_call.1} parent=1 // pred_check_branch
      %355 = sbr.rel target = $region101
    $region100: #{tpu_custom_call.1} parent=1 // pred_region
      %356 = sst [smem:[#allocation13]] [#allocation52]
      %357 = sst [smem:[#allocation14]] [#allocation51]
    $region101: #{tpu_custom_call.1} parent=1 // pred_fallthru
      _
    %359 = shalt.err (0)
    %s361 = sshll.u32 %s352, 4
    %s362 = int_to_ptr.hbm [resolvable:$true] %s361
    %s363 = sshll.u32 %s353, 4
    %s364 = int_to_ptr.vmem [resolvable:$true] %s363
    %366 = dma.hbm_to_vmem [thread:$0]  %s362, 16, %s364, %s305
    %s367 = sld [smem:[#allocation5 + $0x104]]
    %s368 = scalar_lea.hbm %s1, %s367
    %s369 = scalar_lea.vmem [#allocation2], 34
    // Predicated region
    $region102: #{tpu_custom_call.1} parent=1 // pred_check
      _
    $region103: #{tpu_custom_call.1} parent=1 // pred_check_branch
      %371 = sbr.rel target = $region105
    $region104: #{tpu_custom_call.1} parent=1 // pred_region
      %372 = sst [smem:[#allocation13]] [#allocation54]
      %373 = sst [smem:[#allocation14]] [#allocation53]
    $region105: #{tpu_custom_call.1} parent=1 // pred_fallthru
      _
    %375 = shalt.err (0)
    %s377 = sshll.u32 %s368, 4
    %s378 = int_to_ptr.hbm [resolvable:$true] %s377
    %s379 = sshll.u32 %s369, 4
    %s380 = int_to_ptr.vmem [resolvable:$true] %s379
    %382 = dma.hbm_to_vmem [thread:$0]  %s378, 16, %s380, %s305
    %s383 = sld [smem:[#allocation5 + $0x105]]
    %s384 = scalar_lea.hbm %s1, %s383
    %s385 = scalar_lea.vmem [#allocation2], 42
    // Predicated region
    $region106: #{tpu_custom_call.1} parent=1 // pred_check
      _
    $region107: #{tpu_custom_call.1} parent=1 // pred_check_branch
      %387 = sbr.rel target = $region109
    $region108: #{tpu_custom_call.1} parent=1 // pred_region
      %388 = sst [smem:[#allocation13]] [#allocation56]
      %389 = sst [smem:[#allocation14]] [#allocation55]
    $region109: #{tpu_custom_call.1} parent=1 // pred_fallthru
      _
    %391 = shalt.err (0)
    %s393 = sshll.u32 %s384, 4
    %s394 = int_to_ptr.hbm [resolvable:$true] %s393
    %s395 = sshll.u32 %s385, 4
    %s396 = int_to_ptr.vmem [resolvable:$true] %s395
    %398 = dma.hbm_to_vmem [thread:$0]  %s394, 16, %s396, %s305
    %s399 = sld [smem:[#allocation5 + $0x106]]
    %s400 = scalar_lea.hbm %s1, %s399
    %s401 = scalar_lea.vmem [#allocation2], 50
    // Predicated region
    $region110: #{tpu_custom_call.1} parent=1 // pred_check
      _
    $region111: #{tpu_custom_call.1} parent=1 // pred_check_branch
      %403 = sbr.rel target = $region113
    $region112: #{tpu_custom_call.1} parent=1 // pred_region
      %404 = sst [smem:[#allocation13]] [#allocation58]
      %405 = sst [smem:[#allocation14]] [#allocation57]
    $region113: #{tpu_custom_call.1} parent=1 // pred_fallthru
      _
    %407 = shalt.err (0)
    %s409 = sshll.u32 %s400, 4
    %s410 = int_to_ptr.hbm [resolvable:$true] %s409
    %s411 = sshll.u32 %s401, 4
    %s412 = int_to_ptr.vmem [resolvable:$true] %s411
    %414 = dma.hbm_to_vmem [thread:$0]  %s410, 16, %s412, %s305
    %s415 = sld [smem:[#allocation5 + $0x107]]
    %s416 = scalar_lea.hbm %s1, %s415
    %s417 = scalar_lea.vmem [#allocation2], 58
    // Predicated region
    $region114: #{tpu_custom_call.1} parent=1 // pred_check
      _
    $region115: #{tpu_custom_call.1} parent=1 // pred_check_branch
      %419 = sbr.rel target = $region117
    $region116: #{tpu_custom_call.1} parent=1 // pred_region
      %420 = sst [smem:[#allocation13]] [#allocation60]
      %421 = sst [smem:[#allocation14]] [#allocation59]
    $region117: #{tpu_custom_call.1} parent=1 // pred_fallthru
      _
    %423 = shalt.err (0)
    %s425 = sshll.u32 %s416, 4
    %s426 = int_to_ptr.hbm [resolvable:$true] %s425
    %s427 = sshll.u32 %s417, 4
    %s428 = int_to_ptr.vmem [resolvable:$true] %s427
    %430 = dma.hbm_to_vmem [thread:$0]  %s426, 16, %s428, %s305
    %s431 = sld [smem:[#allocation5 + $0x180]]
    %s432 = scalar_lea.hbm %s1, %s431
    %s433 = scalar_lea.vmem [#allocation2], 3
    %s434 = scalar_lea.sflag [#allocation3], 3
    // Predicated region
    $region118: #{tpu_custom_call.1} parent=1 // pred_check
      _
    $region119: #{tpu_custom_call.1} parent=1 // pred_check_branch
      %436 = sbr.rel target = $region121
    $region120: #{tpu_custom_call.1} parent=1 // pred_region
      %437 = sst [smem:[#allocation13]] [#allocation62]
      %438 = sst [smem:[#allocation14]] [#allocation61]
    $region121: #{tpu_custom_call.1} parent=1 // pred_fallthru
      _
    %440 = shalt.err (0)
    %s442 = sshll.u32 %s432, 4
    %s443 = int_to_ptr.hbm [resolvable:$true] %s442
    %s444 = sshll.u32 %s433, 4
    %s445 = int_to_ptr.vmem [resolvable:$true] %s444
    %447 = dma.hbm_to_vmem [thread:$0]  %s443, 16, %s445, %s434
    %s448 = sld [smem:[#allocation5 + $0x181]]
    %s449 = scalar_lea.hbm %s1, %s448
    %s450 = scalar_lea.vmem [#allocation2], 11
    // Predicated region
    $region122: #{tpu_custom_call.1} parent=1 // pred_check
      _
    $region123: #{tpu_custom_call.1} parent=1 // pred_check_branch
      %452 = sbr.rel target = $region125
    $region124: #{tpu_custom_call.1} parent=1 // pred_region
      %453 = sst [smem:[#allocation13]] [#allocation64]
      %454 = sst [smem:[#allocation14]] [#allocation63]
    $region125: #{tpu_custom_call.1} parent=1 // pred_fallthru
      _
    %456 = shalt.err (0)
    %s458 = sshll.u32 %s449, 4
    %s459 = int_to_ptr.hbm [resolvable:$true] %s458
    %s460 = sshll.u32 %s450, 4
    %s461 = int_to_ptr.vmem [resolvable:$true] %s460
    %463 = dma.hbm_to_vmem [thread:$0]  %s459, 16, %s461, %s434
    %s464 = sld [smem:[#allocation5 + $0x182]]
    %s465 = scalar_lea.hbm %s1, %s464
    %s466 = scalar_lea.vmem [#allocation2], 19
    // Predicated region
    $region126: #{tpu_custom_call.1} parent=1 // pred_check
      _
    $region127: #{tpu_custom_call.1} parent=1 // pred_check_branch
      %468 = sbr.rel target = $region129
    $region128: #{tpu_custom_call.1} parent=1 // pred_region
      %469 = sst [smem:[#allocation13]] [#allocation66]
      %470 = sst [smem:[#allocation14]] [#allocation65]
    $region129: #{tpu_custom_call.1} parent=1 // pred_fallthru
      _
    %472 = shalt.err (0)
    %s474 = sshll.u32 %s465, 4
    %s475 = int_to_ptr.hbm [resolvable:$true] %s474
    %s476 = sshll.u32 %s466, 4
    %s477 = int_to_ptr.vmem [resolvable:$true] %s476
    %479 = dma.hbm_to_vmem [thread:$0]  %s475, 16, %s477, %s434
    %s480 = sld [smem:[#allocation5 + $0x183]]
    %s481 = scalar_lea.hbm %s1, %s480
    %s482 = scalar_lea.vmem [#allocation2], 27
    // Predicated region
    $region130: #{tpu_custom_call.1} parent=1 // pred_check
      _
    $region131: #{tpu_custom_call.1} parent=1 // pred_check_branch
      %484 = sbr.rel target = $region133
    $region132: #{tpu_custom_call.1} parent=1 // pred_region
      %485 = sst [smem:[#allocation13]] [#allocation68]
      %486 = sst [smem:[#allocation14]] [#allocation67]
    $region133: #{tpu_custom_call.1} parent=1 // pred_fallthru
      _
    %488 = shalt.err (0)
    %s490 = sshll.u32 %s481, 4
    %s491 = int_to_ptr.hbm [resolvable:$true] %s490
    %s492 = sshll.u32 %s482, 4
    %s493 = int_to_ptr.vmem [resolvable:$true] %s492
    %495 = dma.hbm_to_vmem [thread:$0]  %s491, 16, %s493, %s434
    %s496 = sld [smem:[#allocation5 + $0x184]]
    %s497 = scalar_lea.hbm %s1, %s496
    %s498 = scalar_lea.vmem [#allocation2], 35
    // Predicated region
    $region134: #{tpu_custom_call.1} parent=1 // pred_check
      _
    $region135: #{tpu_custom_call.1} parent=1 // pred_check_branch
      %500 = sbr.rel target = $region137
    $region136: #{tpu_custom_call.1} parent=1 // pred_region
      %501 = sst [smem:[#allocation13]] [#allocation70]
      %502 = sst [smem:[#allocation14]] [#allocation69]
    $region137: #{tpu_custom_call.1} parent=1 // pred_fallthru
      _
    %504 = shalt.err (0)
    %s506 = sshll.u32 %s497, 4
    %s507 = int_to_ptr.hbm [resolvable:$true] %s506
    %s508 = sshll.u32 %s498, 4
    %s509 = int_to_ptr.vmem [resolvable:$true] %s508
    %511 = dma.hbm_to_vmem [thread:$0]  %s507, 16, %s509, %s434
    %s512 = sld [smem:[#allocation5 + $0x185]]
    %s513 = scalar_lea.hbm %s1, %s512
    %s514 = scalar_lea.vmem [#allocation2], 43
    // Predicated region
    $region138: #{tpu_custom_call.1} parent=1 // pred_check
      _
    $region139: #{tpu_custom_call.1} parent=1 // pred_check_branch
      %516 = sbr.rel target = $region141
    $region140: #{tpu_custom_call.1} parent=1 // pred_region
      %517 = sst [smem:[#allocation13]] [#allocation72]
      %518 = sst [smem:[#allocation14]] [#allocation71]
    $region141: #{tpu_custom_call.1} parent=1 // pred_fallthru
      _
    %520 = shalt.err (0)
    %s522 = sshll.u32 %s513, 4
    %s523 = int_to_ptr.hbm [resolvable:$true] %s522
    %s524 = sshll.u32 %s514, 4
    %s525 = int_to_ptr.vmem [resolvable:$true] %s524
    %527 = dma.hbm_to_vmem [thread:$0]  %s523, 16, %s525, %s434
    %s528 = sld [smem:[#allocation5 + $0x186]]
    %s529 = scalar_lea.hbm %s1, %s528
    %s530 = scalar_lea.vmem [#allocation2], 51
    // Predicated region
    $region142: #{tpu_custom_call.1} parent=1 // pred_check
      _
    $region143: #{tpu_custom_call.1} parent=1 // pred_check_branch
      %532 = sbr.rel target = $region145
    $region144: #{tpu_custom_call.1} parent=1 // pred_region
      %533 = sst [smem:[#allocation13]] [#allocation74]
      %534 = sst [smem:[#allocation14]] [#allocation73]
    $region145: #{tpu_custom_call.1} parent=1 // pred_fallthru
      _
    %536 = shalt.err (0)
    %s538 = sshll.u32 %s529, 4
    %s539 = int_to_ptr.hbm [resolvable:$true] %s538
    %s540 = sshll.u32 %s530, 4
    %s541 = int_to_ptr.vmem [resolvable:$true] %s540
    %543 = dma.hbm_to_vmem [thread:$0]  %s539, 16, %s541, %s434
    %s544 = sld [smem:[#allocation5 + $0x187]]
    %s545 = scalar_lea.hbm %s1, %s544
    %s546 = scalar_lea.vmem [#allocation2], 59
    // Predicated region
    $region146: #{tpu_custom_call.1} parent=1 // pred_check
      _
    $region147: #{tpu_custom_call.1} parent=1 // pred_check_branch
      %548 = sbr.rel target = $region149
    $region148: #{tpu_custom_call.1} parent=1 // pred_region
      %549 = sst [smem:[#allocation13]] [#allocation76]
      %550 = sst [smem:[#allocation14]] [#allocation75]
    $region149: #{tpu_custom_call.1} parent=1 // pred_fallthru
      _
    %552 = shalt.err (0)
    %s554 = sshll.u32 %s545, 4
    %s555 = int_to_ptr.hbm [resolvable:$true] %s554
    %s556 = sshll.u32 %s546, 4
    %s557 = int_to_ptr.vmem [resolvable:$true] %s556
    %559 = dma.hbm_to_vmem [thread:$0]  %s555, 16, %s557, %s434
    %s560 = sld [smem:[#allocation5 + $0x200]]
    %s561 = scalar_lea.hbm %s1, %s560
    %s562 = scalar_lea.vmem [#allocation2], 4
    %s563 = scalar_lea.sflag [#allocation3], 4
    // Predicated region
    $region150: #{tpu_custom_call.1} parent=1 // pred_check
      _
    $region151: #{tpu_custom_call.1} parent=1 // pred_check_branch
      %565 = sbr.rel target = $region153
    $region152: #{tpu_custom_call.1} parent=1 // pred_region
      %566 = sst [smem:[#allocation13]] [#allocation78]
      %567 = sst [smem:[#allocation14]] [#allocation77]
    $region153: #{tpu_custom_call.1} parent=1 // pred_fallthru
      _
    %569 = shalt.err (0)
    %s571 = sshll.u32 %s561, 4
    %s572 = int_to_ptr.hbm [resolvable:$true] %s571
    %s573 = sshll.u32 %s562, 4
    %s574 = int_to_ptr.vmem [resolvable:$true] %s573
    %576 = dma.hbm_to_vmem [thread:$0]  %s572, 16, %s574, %s563
    %s577 = sld [smem:[#allocation5 + $0x201]]
    %s578 = scalar_lea.hbm %s1, %s577
    %s579 = scalar_lea.vmem [#allocation2], 12
    // Predicated region
    $region154: #{tpu_custom_call.1} parent=1 // pred_check
      _
    $region155: #{tpu_custom_call.1} parent=1 // pred_check_branch
      %581 = sbr.rel target = $region157
    $region156: #{tpu_custom_call.1} parent=1 // pred_region
      %582 = sst [smem:[#allocation13]] [#allocation80]
      %583 = sst [smem:[#allocation14]] [#allocation79]
    $region157: #{tpu_custom_call.1} parent=1 // pred_fallthru
      _
    %585 = shalt.err (0)
    %s587 = sshll.u32 %s578, 4
    %s588 = int_to_ptr.hbm [resolvable:$true] %s587
    %s589 = sshll.u32 %s579, 4
    %s590 = int_to_ptr.vmem [resolvable:$true] %s589
    %592 = dma.hbm_to_vmem [thread:$0]  %s588, 16, %s590, %s563
    %s593 = sld [smem:[#allocation5 + $0x202]]
    %s594 = scalar_lea.hbm %s1, %s593
    %s595 = scalar_lea.vmem [#allocation2], 20
    // Predicated region
    $region158: #{tpu_custom_call.1} parent=1 // pred_check
      _
    $region159: #{tpu_custom_call.1} parent=1 // pred_check_branch
      %597 = sbr.rel target = $region161
    $region160: #{tpu_custom_call.1} parent=1 // pred_region
      %598 = sst [smem:[#allocation13]] [#allocation82]
      %599 = sst [smem:[#allocation14]] [#allocation81]
    $region161: #{tpu_custom_call.1} parent=1 // pred_fallthru
      _
    %601 = shalt.err (0)
    %s603 = sshll.u32 %s594, 4
    %s604 = int_to_ptr.hbm [resolvable:$true] %s603
    %s605 = sshll.u32 %s595, 4
    %s606 = int_to_ptr.vmem [resolvable:$true] %s605
    %608 = dma.hbm_to_vmem [thread:$0]  %s604, 16, %s606, %s563
    %s609 = sld [smem:[#allocation5 + $0x203]]
    %s610 = scalar_lea.hbm %s1, %s609
    %s611 = scalar_lea.vmem [#allocation2], 28
    // Predicated region
    $region162: #{tpu_custom_call.1} parent=1 // pred_check
      _
    $region163: #{tpu_custom_call.1} parent=1 // pred_check_branch
      %613 = sbr.rel target = $region165
    $region164: #{tpu_custom_call.1} parent=1 // pred_region
      %614 = sst [smem:[#allocation13]] [#allocation84]
      %615 = sst [smem:[#allocation14]] [#allocation83]
    $region165: #{tpu_custom_call.1} parent=1 // pred_fallthru
      _
    %617 = shalt.err (0)
    %s619 = sshll.u32 %s610, 4
    %s620 = int_to_ptr.hbm [resolvable:$true] %s619
    %s621 = sshll.u32 %s611, 4
    %s622 = int_to_ptr.vmem [resolvable:$true] %s621
    %624 = dma.hbm_to_vmem [thread:$0]  %s620, 16, %s622, %s563
    %s625 = sld [smem:[#allocation5 + $0x204]]
    %s626 = scalar_lea.hbm %s1, %s625
    %s627 = scalar_lea.vmem [#allocation2], 36
    // Predicated region
    $region166: #{tpu_custom_call.1} parent=1 // pred_check
      _
    $region167: #{tpu_custom_call.1} parent=1 // pred_check_branch
      %629 = sbr.rel target = $region169
    $region168: #{tpu_custom_call.1} parent=1 // pred_region
      %630 = sst [smem:[#allocation13]] [#allocation86]
      %631 = sst [smem:[#allocation14]] [#allocation85]
    $region169: #{tpu_custom_call.1} parent=1 // pred_fallthru
      _
    %633 = shalt.err (0)
    %s635 = sshll.u32 %s626, 4
    %s636 = int_to_ptr.hbm [resolvable:$true] %s635
    %s637 = sshll.u32 %s627, 4
    %s638 = int_to_ptr.vmem [resolvable:$true] %s637
    %640 = dma.hbm_to_vmem [thread:$0]  %s636, 16, %s638, %s563
    %s641 = sld [smem:[#allocation5 + $0x205]]
    %s642 = scalar_lea.hbm %s1, %s641
    %s643 = scalar_lea.vmem [#allocation2], 44
    // Predicated region
    $region170: #{tpu_custom_call.1} parent=1 // pred_check
      _
    $region171: #{tpu_custom_call.1} parent=1 // pred_check_branch
      %645 = sbr.rel target = $region173
    $region172: #{tpu_custom_call.1} parent=1 // pred_region
      %646 = sst [smem:[#allocation13]] [#allocation88]
      %647 = sst [smem:[#allocation14]] [#allocation87]
    $region173: #{tpu_custom_call.1} parent=1 // pred_fallthru
      _
    %649 = shalt.err (0)
    %s651 = sshll.u32 %s642, 4
    %s652 = int_to_ptr.hbm [resolvable:$true] %s651
    %s653 = sshll.u32 %s643, 4
    %s654 = int_to_ptr.vmem [resolvable:$true] %s653
    %656 = dma.hbm_to_vmem [thread:$0]  %s652, 16, %s654, %s563
    %s657 = sld [smem:[#allocation5 + $0x206]]
    %s658 = scalar_lea.hbm %s1, %s657
    %s659 = scalar_lea.vmem [#allocation2], 52
    // Predicated region
    $region174: #{tpu_custom_call.1} parent=1 // pred_check
      _
    $region175: #{tpu_custom_call.1} parent=1 // pred_check_branch
      %661 = sbr.rel target = $region177
    $region176: #{tpu_custom_call.1} parent=1 // pred_region
      %662 = sst [smem:[#allocation13]] [#allocation90]
      %663 = sst [smem:[#allocation14]] [#allocation89]
    $region177: #{tpu_custom_call.1} parent=1 // pred_fallthru
      _
    %665 = shalt.err (0)
    %s667 = sshll.u32 %s658, 4
    %s668 = int_to_ptr.hbm [resolvable:$true] %s667
    %s669 = sshll.u32 %s659, 4
    %s670 = int_to_ptr.vmem [resolvable:$true] %s669
    %672 = dma.hbm_to_vmem [thread:$0]  %s668, 16, %s670, %s563
    %s673 = sld [smem:[#allocation5 + $0x207]]
    %s674 = scalar_lea.hbm %s1, %s673
    %s675 = scalar_lea.vmem [#allocation2], 60
    // Predicated region
    $region178: #{tpu_custom_call.1} parent=1 // pred_check
      _
    $region179: #{tpu_custom_call.1} parent=1 // pred_check_branch
      %677 = sbr.rel target = $region181
    $region180: #{tpu_custom_call.1} parent=1 // pred_region
      %678 = sst [smem:[#allocation13]] [#allocation92]
      %679 = sst [smem:[#allocation14]] [#allocation91]
    $region181: #{tpu_custom_call.1} parent=1 // pred_fallthru
      _
    %681 = shalt.err (0)
    %s683 = sshll.u32 %s674, 4
    %s684 = int_to_ptr.hbm [resolvable:$true] %s683
    %s685 = sshll.u32 %s675, 4
    %s686 = int_to_ptr.vmem [resolvable:$true] %s685
    %688 = dma.hbm_to_vmem [thread:$0]  %s684, 16, %s686, %s563
    %s689 = sld [smem:[#allocation5 + $0x280]]
    %s690 = scalar_lea.hbm %s1, %s689
    %s691 = scalar_lea.vmem [#allocation2], 5
    %s692 = scalar_lea.sflag [#allocation3], 5
    // Predicated region
    $region182: #{tpu_custom_call.1} parent=1 // pred_check
      _
    $region183: #{tpu_custom_call.1} parent=1 // pred_check_branch
      %694 = sbr.rel target = $region185
    $region184: #{tpu_custom_call.1} parent=1 // pred_region
      %695 = sst [smem:[#allocation13]] [#allocation94]
      %696 = sst [smem:[#allocation14]] [#allocation93]
    $region185: #{tpu_custom_call.1} parent=1 // pred_fallthru
      _
    %698 = shalt.err (0)
    %s700 = sshll.u32 %s690, 4
    %s701 = int_to_ptr.hbm [resolvable:$true] %s700
    %s702 = sshll.u32 %s691, 4
    %s703 = int_to_ptr.vmem [resolvable:$true] %s702
    %705 = dma.hbm_to_vmem [thread:$0]  %s701, 16, %s703, %s692
    %s706 = sld [smem:[#allocation5 + $0x281]]
    %s707 = scalar_lea.hbm %s1, %s706
    %s708 = scalar_lea.vmem [#allocation2], 13
    // Predicated region
    $region186: #{tpu_custom_call.1} parent=1 // pred_check
      _
    $region187: #{tpu_custom_call.1} parent=1 // pred_check_branch
      %710 = sbr.rel target = $region189
    $region188: #{tpu_custom_call.1} parent=1 // pred_region
      %711 = sst [smem:[#allocation13]] [#allocation96]
      %712 = sst [smem:[#allocation14]] [#allocation95]
    $region189: #{tpu_custom_call.1} parent=1 // pred_fallthru
      _
    %714 = shalt.err (0)
    %s716 = sshll.u32 %s707, 4
    %s717 = int_to_ptr.hbm [resolvable:$true] %s716
    %s718 = sshll.u32 %s708, 4
    %s719 = int_to_ptr.vmem [resolvable:$true] %s718
    %721 = dma.hbm_to_vmem [thread:$0]  %s717, 16, %s719, %s692
    %s722 = sld [smem:[#allocation5 + $0x282]]
    %s723 = scalar_lea.hbm %s1, %s722
    %s724 = scalar_lea.vmem [#allocation2], 21
    // Predicated region
    $region190: #{tpu_custom_call.1} parent=1 // pred_check
      _
    $region191: #{tpu_custom_call.1} parent=1 // pred_check_branch
      %726 = sbr.rel target = $region193
    $region192: #{tpu_custom_call.1} parent=1 // pred_region
      %727 = sst [smem:[#allocation13]] [#allocation98]
      %728 = sst [smem:[#allocation14]] [#allocation97]
    $region193: #{tpu_custom_call.1} parent=1 // pred_fallthru
      _
    %730 = shalt.err (0)
    %s732 = sshll.u32 %s723, 4
    %s733 = int_to_ptr.hbm [resolvable:$true] %s732
    %s734 = sshll.u32 %s724, 4
    %s735 = int_to_ptr.vmem [resolvable:$true] %s734
    %737 = dma.hbm_to_vmem [thread:$0]  %s733, 16, %s735, %s692
    %s738 = sld [smem:[#allocation5 + $0x283]]
    %s739 = scalar_lea.hbm %s1, %s738
    %s740 = scalar_lea.vmem [#allocation2], 29
    // Predicated region
    $region194: #{tpu_custom_call.1} parent=1 // pred_check
      _
    $region195: #{tpu_custom_call.1} parent=1 // pred_check_branch
      %742 = sbr.rel target = $region197
    $region196: #{tpu_custom_call.1} parent=1 // pred_region
      %743 = sst [smem:[#allocation13]] [#allocation100]
      %744 = sst [smem:[#allocation14]] [#allocation99]
    $region197: #{tpu_custom_call.1} parent=1 // pred_fallthru
      _
    %746 = shalt.err (0)
    %s748 = sshll.u32 %s739, 4
    %s749 = int_to_ptr.hbm [resolvable:$true] %s748
    %s750 = sshll.u32 %s740, 4
    %s751 = int_to_ptr.vmem [resolvable:$true] %s750
    %753 = dma.hbm_to_vmem [thread:$0]  %s749, 16, %s751, %s692
    %s754 = sld [smem:[#allocation5 + $0x284]]
    %s755 = scalar_lea.hbm %s1, %s754
    %s756 = scalar_lea.vmem [#allocation2], 37
    // Predicated region
    $region198: #{tpu_custom_call.1} parent=1 // pred_check
      _
    $region199: #{tpu_custom_call.1} parent=1 // pred_check_branch
      %758 = sbr.rel target = $region201
    $region200: #{tpu_custom_call.1} parent=1 // pred_region
      %759 = sst [smem:[#allocation13]] [#allocation102]
      %760 = sst [smem:[#allocation14]] [#allocation101]
    $region201: #{tpu_custom_call.1} parent=1 // pred_fallthru
      _
    %762 = shalt.err (0)
    %s764 = sshll.u32 %s755, 4
    %s765 = int_to_ptr.hbm [resolvable:$true] %s764
    %s766 = sshll.u32 %s756, 4
    %s767 = int_to_ptr.vmem [resolvable:$true] %s766
    %769 = dma.hbm_to_vmem [thread:$0]  %s765, 16, %s767, %s692
    %s770 = sld [smem:[#allocation5 + $0x285]]
    %s771 = scalar_lea.hbm %s1, %s770
    %s772 = scalar_lea.vmem [#allocation2], 45
    // Predicated region
    $region202: #{tpu_custom_call.1} parent=1 // pred_check
      _
    $region203: #{tpu_custom_call.1} parent=1 // pred_check_branch
      %774 = sbr.rel target = $region205
    $region204: #{tpu_custom_call.1} parent=1 // pred_region
      %775 = sst [smem:[#allocation13]] [#allocation104]
      %776 = sst [smem:[#allocation14]] [#allocation103]
    $region205: #{tpu_custom_call.1} parent=1 // pred_fallthru
      _
    %778 = shalt.err (0)
    %s780 = sshll.u32 %s771, 4
    %s781 = int_to_ptr.hbm [resolvable:$true] %s780
    %s782 = sshll.u32 %s772, 4
    %s783 = int_to_ptr.vmem [resolvable:$true] %s782
    %785 = dma.hbm_to_vmem [thread:$0]  %s781, 16, %s783, %s692
    %s786 = sld [smem:[#allocation5 + $0x286]]
    %s787 = scalar_lea.hbm %s1, %s786
    %s788 = scalar_lea.vmem [#allocation2], 53
    // Predicated region
    $region206: #{tpu_custom_call.1} parent=1 // pred_check
      _
    $region207: #{tpu_custom_call.1} parent=1 // pred_check_branch
      %790 = sbr.rel target = $region209
    $region208: #{tpu_custom_call.1} parent=1 // pred_region
      %791 = sst [smem:[#allocation13]] [#allocation106]
      %792 = sst [smem:[#allocation14]] [#allocation105]
    $region209: #{tpu_custom_call.1} parent=1 // pred_fallthru
      _
    %794 = shalt.err (0)
    %s796 = sshll.u32 %s787, 4
    %s797 = int_to_ptr.hbm [resolvable:$true] %s796
    %s798 = sshll.u32 %s788, 4
    %s799 = int_to_ptr.vmem [resolvable:$true] %s798
    %801 = dma.hbm_to_vmem [thread:$0]  %s797, 16, %s799, %s692
    %s802 = sld [smem:[#allocation5 + $0x287]]
    %s803 = scalar_lea.hbm %s1, %s802
    %s804 = scalar_lea.vmem [#allocation2], 61
    // Predicated region
    $region210: #{tpu_custom_call.1} parent=1 // pred_check
      _
    $region211: #{tpu_custom_call.1} parent=1 // pred_check_branch
      %806 = sbr.rel target = $region213
    $region212: #{tpu_custom_call.1} parent=1 // pred_region
      %807 = sst [smem:[#allocation13]] [#allocation108]
      %808 = sst [smem:[#allocation14]] [#allocation107]
    $region213: #{tpu_custom_call.1} parent=1 // pred_fallthru
      _
    %810 = shalt.err (0)
    %s812 = sshll.u32 %s803, 4
    %s813 = int_to_ptr.hbm [resolvable:$true] %s812
    %s814 = sshll.u32 %s804, 4
    %s815 = int_to_ptr.vmem [resolvable:$true] %s814
    %817 = dma.hbm_to_vmem [thread:$0]  %s813, 16, %s815, %s692
    %s818 = sld [smem:[#allocation5 + $0x300]]
    %s819 = scalar_lea.hbm %s1, %s818
    %s820 = scalar_lea.vmem [#allocation2], 6
    %s821 = scalar_lea.sflag [#allocation3], 6
    // Predicated region
    $region214: #{tpu_custom_call.1} parent=1 // pred_check
      _
    $region215: #{tpu_custom_call.1} parent=1 // pred_check_branch
      %823 = sbr.rel target = $region217
    $region216: #{tpu_custom_call.1} parent=1 // pred_region
      %824 = sst [smem:[#allocation13]] [#allocation110]
      %825 = sst [smem:[#allocation14]] [#allocation109]
    $region217: #{tpu_custom_call.1} parent=1 // pred_fallthru
      _
    %827 = shalt.err (0)
    %s829 = sshll.u32 %s819, 4
    %s830 = int_to_ptr.hbm [resolvable:$true] %s829
    %s831 = sshll.u32 %s820, 4
    %s832 = int_to_ptr.vmem [resolvable:$true] %s831
    %834 = dma.hbm_to_vmem [thread:$0]  %s830, 16, %s832, %s821
    %s835 = sld [smem:[#allocation5 + $0x301]]
    %s836 = scalar_lea.hbm %s1, %s835
    %s837 = scalar_lea.vmem [#allocation2], 14
    // Predicated region
    $region218: #{tpu_custom_call.1} parent=1 // pred_check
      _
    $region219: #{tpu_custom_call.1} parent=1 // pred_check_branch
      %839 = sbr.rel target = $region221
    $region220: #{tpu_custom_call.1} parent=1 // pred_region
      %840 = sst [smem:[#allocation13]] [#allocation112]
      %841 = sst [smem:[#allocation14]] [#allocation111]
    $region221: #{tpu_custom_call.1} parent=1 // pred_fallthru
      _
    %843 = shalt.err (0)
    %s845 = sshll.u32 %s836, 4
    %s846 = int_to_ptr.hbm [resolvable:$true] %s845
    %s847 = sshll.u32 %s837, 4
    %s848 = int_to_ptr.vmem [resolvable:$true] %s847
    %850 = dma.hbm_to_vmem [thread:$0]  %s846, 16, %s848, %s821
    %s851 = sld [smem:[#allocation5 + $0x302]]
    %s852 = scalar_lea.hbm %s1, %s851
    %s853 = scalar_lea.vmem [#allocation2], 22
    // Predicated region
    $region222: #{tpu_custom_call.1} parent=1 // pred_check
      _
    $region223: #{tpu_custom_call.1} parent=1 // pred_check_branch
      %855 = sbr.rel target = $region225
    $region224: #{tpu_custom_call.1} parent=1 // pred_region
      %856 = sst [smem:[#allocation13]] [#allocation114]
      %857 = sst [smem:[#allocation14]] [#allocation113]
    $region225: #{tpu_custom_call.1} parent=1 // pred_fallthru
      _
    %859 = shalt.err (0)
    %s861 = sshll.u32 %s852, 4
    %s862 = int_to_ptr.hbm [resolvable:$true] %s861
    %s863 = sshll.u32 %s853, 4
    %s864 = int_to_ptr.vmem [resolvable:$true] %s863
    %866 = dma.hbm_to_vmem [thread:$0]  %s862, 16, %s864, %s821
    %s867 = sld [smem:[#allocation5 + $0x303]]
    %s868 = scalar_lea.hbm %s1, %s867
    %s869 = scalar_lea.vmem [#allocation2], 30
    // Predicated region
    $region226: #{tpu_custom_call.1} parent=1 // pred_check
      _
    $region227: #{tpu_custom_call.1} parent=1 // pred_check_branch
      %871 = sbr.rel target = $region229
    $region228: #{tpu_custom_call.1} parent=1 // pred_region
      %872 = sst [smem:[#allocation13]] [#allocation116]
      %873 = sst [smem:[#allocation14]] [#allocation115]
    $region229: #{tpu_custom_call.1} parent=1 // pred_fallthru
      _
    %875 = shalt.err (0)
    %s877 = sshll.u32 %s868, 4
    %s878 = int_to_ptr.hbm [resolvable:$true] %s877
    %s879 = sshll.u32 %s869, 4
    %s880 = int_to_ptr.vmem [resolvable:$true] %s879
    %882 = dma.hbm_to_vmem [thread:$0]  %s878, 16, %s880, %s821
    %s883 = sld [smem:[#allocation5 + $0x304]]
    %s884 = scalar_lea.hbm %s1, %s883
    %s885 = scalar_lea.vmem [#allocation2], 38
    // Predicated region
    $region230: #{tpu_custom_call.1} parent=1 // pred_check
      _
    $region231: #{tpu_custom_call.1} parent=1 // pred_check_branch
      %887 = sbr.rel target = $region233
    $region232: #{tpu_custom_call.1} parent=1 // pred_region
      %888 = sst [smem:[#allocation13]] [#allocation118]
      %889 = sst [smem:[#allocation14]] [#allocation117]
    $region233: #{tpu_custom_call.1} parent=1 // pred_fallthru
      _
    %891 = shalt.err (0)
    %s893 = sshll.u32 %s884, 4
    %s894 = int_to_ptr.hbm [resolvable:$true] %s893
    %s895 = sshll.u32 %s885, 4
    %s896 = int_to_ptr.vmem [resolvable:$true] %s895
    %898 = dma.hbm_to_vmem [thread:$0]  %s894, 16, %s896, %s821
    %s899 = sld [smem:[#allocation5 + $0x305]]
    %s900 = scalar_lea.hbm %s1, %s899
    %s901 = scalar_lea.vmem [#allocation2], 46
    // Predicated region
    $region234: #{tpu_custom_call.1} parent=1 // pred_check
      _
    $region235: #{tpu_custom_call.1} parent=1 // pred_check_branch
      %903 = sbr.rel target = $region237
    $region236: #{tpu_custom_call.1} parent=1 // pred_region
      %904 = sst [smem:[#allocation13]] [#allocation120]
      %905 = sst [smem:[#allocation14]] [#allocation119]
    $region237: #{tpu_custom_call.1} parent=1 // pred_fallthru
      _
    %907 = shalt.err (0)
    %s909 = sshll.u32 %s900, 4
    %s910 = int_to_ptr.hbm [resolvable:$true] %s909
    %s911 = sshll.u32 %s901, 4
    %s912 = int_to_ptr.vmem [resolvable:$true] %s911
    %914 = dma.hbm_to_vmem [thread:$0]  %s910, 16, %s912, %s821
    %s915 = sld [smem:[#allocation5 + $0x306]]
    %s916 = scalar_lea.hbm %s1, %s915
    %s917 = scalar_lea.vmem [#allocation2], 54
    // Predicated region
    $region238: #{tpu_custom_call.1} parent=1 // pred_check
      _
    $region239: #{tpu_custom_call.1} parent=1 // pred_check_branch
      %919 = sbr.rel target = $region241
    $region240: #{tpu_custom_call.1} parent=1 // pred_region
      %920 = sst [smem:[#allocation13]] [#allocation122]
      %921 = sst [smem:[#allocation14]] [#allocation121]
    $region241: #{tpu_custom_call.1} parent=1 // pred_fallthru
      _
    %923 = shalt.err (0)
    %s925 = sshll.u32 %s916, 4
    %s926 = int_to_ptr.hbm [resolvable:$true] %s925
    %s927 = sshll.u32 %s917, 4
    %s928 = int_to_ptr.vmem [resolvable:$true] %s927
    %930 = dma.hbm_to_vmem [thread:$0]  %s926, 16, %s928, %s821
    %s931 = sld [smem:[#allocation5 + $0x307]]
    %s932 = scalar_lea.hbm %s1, %s931
    %s933 = scalar_lea.vmem [#allocation2], 62
    // Predicated region
    $region242: #{tpu_custom_call.1} parent=1 // pred_check
      _
    $region243: #{tpu_custom_call.1} parent=1 // pred_check_branch
      %935 = sbr.rel target = $region245
    $region244: #{tpu_custom_call.1} parent=1 // pred_region
      %936 = sst [smem:[#allocation13]] [#allocation124]
      %937 = sst [smem:[#allocation14]] [#allocation123]
    $region245: #{tpu_custom_call.1} parent=1 // pred_fallthru
      _
    %939 = shalt.err (0)
    %s941 = sshll.u32 %s932, 4
    %s942 = int_to_ptr.hbm [resolvable:$true] %s941
    %s943 = sshll.u32 %s933, 4
    %s944 = int_to_ptr.vmem [resolvable:$true] %s943
    %946 = dma.hbm_to_vmem [thread:$0]  %s942, 16, %s944, %s821
    %s947 = sld [smem:[#allocation5 + $0x380]]
    %s948 = scalar_lea.hbm %s1, %s947
    %s949 = scalar_lea.vmem [#allocation2], 7
    %s950 = scalar_lea.sflag [#allocation3], 7
    // Predicated region
    $region246: #{tpu_custom_call.1} parent=1 // pred_check
      _
    $region247: #{tpu_custom_call.1} parent=1 // pred_check_branch
      %952 = sbr.rel target = $region249
    $region248: #{tpu_custom_call.1} parent=1 // pred_region
      %953 = sst [smem:[#allocation13]] [#allocation126]
      %954 = sst [smem:[#allocation14]] [#allocation125]
    $region249: #{tpu_custom_call.1} parent=1 // pred_fallthru
      _
    %956 = shalt.err (0)
    %s958 = sshll.u32 %s948, 4
    %s959 = int_to_ptr.hbm [resolvable:$true] %s958
    %s960 = sshll.u32 %s949, 4
    %s961 = int_to_ptr.vmem [resolvable:$true] %s960
    %963 = dma.hbm_to_vmem [thread:$0]  %s959, 16, %s961, %s950
    %s964 = sld [smem:[#allocation5 + $0x381]]
    %s965 = scalar_lea.hbm %s1, %s964
    %s966 = scalar_lea.vmem [#allocation2], 15
    // Predicated region
    $region250: #{tpu_custom_call.1} parent=1 // pred_check
      _
    $region251: #{tpu_custom_call.1} parent=1 // pred_check_branch
      %968 = sbr.rel target = $region253
    $region252: #{tpu_custom_call.1} parent=1 // pred_region
      %969 = sst [smem:[#allocation13]] [#allocation128]
      %970 = sst [smem:[#allocation14]] [#allocation127]
    $region253: #{tpu_custom_call.1} parent=1 // pred_fallthru
      _
    %972 = shalt.err (0)
    %s974 = sshll.u32 %s965, 4
    %s975 = int_to_ptr.hbm [resolvable:$true] %s974
    %s976 = sshll.u32 %s966, 4
    %s977 = int_to_ptr.vmem [resolvable:$true] %s976
    %979 = dma.hbm_to_vmem [thread:$0]  %s975, 16, %s977, %s950
    %s980 = sld [smem:[#allocation5 + $0x382]]
    %s981 = scalar_lea.hbm %s1, %s980
    %s982 = scalar_lea.vmem [#allocation2], 23
    // Predicated region
    $region254: #{tpu_custom_call.1} parent=1 // pred_check
      _
    $region255: #{tpu_custom_call.1} parent=1 // pred_check_branch
      %984 = sbr.rel target = $region257
    $region256: #{tpu_custom_call.1} parent=1 // pred_region
      %985 = sst [smem:[#allocation13]] [#allocation130]
      %986 = sst [smem:[#allocation14]] [#allocation129]
    $region257: #{tpu_custom_call.1} parent=1 // pred_fallthru
      _
    %988 = shalt.err (0)
    %s990 = sshll.u32 %s981, 4
    %s991 = int_to_ptr.hbm [resolvable:$true] %s990
    %s992 = sshll.u32 %s982, 4
    %s993 = int_to_ptr.vmem [resolvable:$true] %s992
    %995 = dma.hbm_to_vmem [thread:$0]  %s991, 16, %s993, %s950
    %s996 = sld [smem:[#allocation5 + $0x383]]
    %s997 = scalar_lea.hbm %s1, %s996
    %s998 = scalar_lea.vmem [#allocation2], 31
    // Predicated region
    $region258: #{tpu_custom_call.1} parent=1 // pred_check
      _
    $region259: #{tpu_custom_call.1} parent=1 // pred_check_branch
      %1000 = sbr.rel target = $region261
    $region260: #{tpu_custom_call.1} parent=1 // pred_region
      %1001 = sst [smem:[#allocation13]] [#allocation132]
      %1002 = sst [smem:[#allocation14]] [#allocation131]
    $region261: #{tpu_custom_call.1} parent=1 // pred_fallthru
      _
    %1004 = shalt.err (0)
    %s1006 = sshll.u32 %s997, 4
    %s1007 = int_to_ptr.hbm [resolvable:$true] %s1006
    %s1008 = sshll.u32 %s998, 4
    %s1009 = int_to_ptr.vmem [resolvable:$true] %s1008
    %1011 = dma.hbm_to_vmem [thread:$0]  %s1007, 16, %s1009, %s950
    %s1012 = sld [smem:[#allocation5 + $0x384]]
    %s1013 = scalar_lea.hbm %s1, %s1012
    %s1014 = scalar_lea.vmem [#allocation2], 39
    // Predicated region
    $region262: #{tpu_custom_call.1} parent=1 // pred_check
      _
    $region263: #{tpu_custom_call.1} parent=1 // pred_check_branch
      %1016 = sbr.rel target = $region265
    $region264: #{tpu_custom_call.1} parent=1 // pred_region
      %1017 = sst [smem:[#allocation13]] [#allocation134]
      %1018 = sst [smem:[#allocation14]] [#allocation133]
    $region265: #{tpu_custom_call.1} parent=1 // pred_fallthru
      _
    %1020 = shalt.err (0)
    %s1022 = sshll.u32 %s1013, 4
    %s1023 = int_to_ptr.hbm [resolvable:$true] %s1022
    %s1024 = sshll.u32 %s1014, 4
    %s1025 = int_to_ptr.vmem [resolvable:$true] %s1024
    %1027 = dma.hbm_to_vmem [thread:$0]  %s1023, 16, %s1025, %s950
    %s1028 = sld [smem:[#allocation5 + $0x385]]
    %s1029 = scalar_lea.hbm %s1, %s1028
    %s1030 = scalar_lea.vmem [#allocation2], 47
    // Predicated region
    $region266: #{tpu_custom_call.1} parent=1 // pred_check
      _
    $region267: #{tpu_custom_call.1} parent=1 // pred_check_branch
      %1032 = sbr.rel target = $region269
    $region268: #{tpu_custom_call.1} parent=1 // pred_region
      %1033 = sst [smem:[#allocation13]] [#allocation136]
      %1034 = sst [smem:[#allocation14]] [#allocation135]
    $region269: #{tpu_custom_call.1} parent=1 // pred_fallthru
      _
    %1036 = shalt.err (0)
    %s1038 = sshll.u32 %s1029, 4
    %s1039 = int_to_ptr.hbm [resolvable:$true] %s1038
    %s1040 = sshll.u32 %s1030, 4
    %s1041 = int_to_ptr.vmem [resolvable:$true] %s1040
    %1043 = dma.hbm_to_vmem [thread:$0]  %s1039, 16, %s1041, %s950
    %s1044 = sld [smem:[#allocation5 + $0x386]]
    %s1045 = scalar_lea.hbm %s1, %s1044
    %s1046 = scalar_lea.vmem [#allocation2], 55
    // Predicated region
    $region270: #{tpu_custom_call.1} parent=1 // pred_check
      _
    $region271: #{tpu_custom_call.1} parent=1 // pred_check_branch
      %1048 = sbr.rel target = $region273
    $region272: #{tpu_custom_call.1} parent=1 // pred_region
      %1049 = sst [smem:[#allocation13]] [#allocation138]
      %1050 = sst [smem:[#allocation14]] [#allocation137]
    $region273: #{tpu_custom_call.1} parent=1 // pred_fallthru
      _
    %1052 = shalt.err (0)
    %s1054 = sshll.u32 %s1045, 4
    %s1055 = int_to_ptr.hbm [resolvable:$true] %s1054
    %s1056 = sshll.u32 %s1046, 4
    %s1057 = int_to_ptr.vmem [resolvable:$true] %s1056
    %1059 = dma.hbm_to_vmem [thread:$0]  %s1055, 16, %s1057, %s950
    %s1060 = sld [smem:[#allocation5 + $0x387]]
    %s1061 = scalar_lea.hbm %s1, %s1060
    %s1062 = scalar_lea.vmem [#allocation2], 63
    // Predicated region
    $region274: #{tpu_custom_call.1} parent=1 // pred_check
      _
    $region275: #{tpu_custom_call.1} parent=1 // pred_check_branch
      %1064 = sbr.rel target = $region277
    $region276: #{tpu_custom_call.1} parent=1 // pred_region
      %1065 = sst [smem:[#allocation13]] [#allocation140]
      %1066 = sst [smem:[#allocation14]] [#allocation139]
    $region277: #{tpu_custom_call.1} parent=1 // pred_fallthru
      _
    %1068 = shalt.err (0)
    %s1070 = sshll.u32 %s1061, 4
    %s1071 = int_to_ptr.hbm [resolvable:$true] %s1070
    %s1072 = sshll.u32 %s1062, 4
    %s1073 = int_to_ptr.vmem [resolvable:$true] %s1072
    %1075 = dma.hbm_to_vmem [thread:$0]  %s1071, 16, %s1073, %s950
    %1077 = dma.done [#allocation3], 16
    %1079 = dma.done [#allocation3], 16
    %1081 = dma.done [#allocation3], 16
    %1083 = dma.done [#allocation3], 16
    %1085 = dma.done [#allocation3], 16
    %1087 = dma.done [#allocation3], 16
    %1089 = dma.done [#allocation3], 16
    %1091 = dma.done [#allocation3], 16
    %1093 = dma.done %s176, 16
    %1095 = dma.done %s176, 16
    %1097 = dma.done %s176, 16
    %1099 = dma.done %s176, 16
    %1101 = dma.done %s176, 16
    %1103 = dma.done %s176, 16
    %1105 = dma.done %s176, 16
    %1107 = dma.done %s176, 16
    %1109 = dma.done %s305, 16
    %1111 = dma.done %s305, 16
    %1113 = dma.done %s305, 16
    %1115 = dma.done %s305, 16
    %1117 = dma.done %s305, 16
    %1119 = dma.done %s305, 16
    %1121 = dma.done %s305, 16
    %1123 = dma.done %s305, 16
    %1125 = dma.done %s434, 16
    %1127 = dma.done %s434, 16
    %1129 = dma.done %s434, 16
    %1131 = dma.done %s434, 16
    %1133 = dma.done %s434, 16
    %1135 = dma.done %s434, 16
    %1137 = dma.done %s434, 16
    %1139 = dma.done %s434, 16
    %1141 = dma.done %s563, 16
    %1143 = dma.done %s563, 16
    %1145 = dma.done %s563, 16
    %1147 = dma.done %s563, 16
    %1149 = dma.done %s563, 16
    %1151 = dma.done %s563, 16
    %1153 = dma.done %s563, 16
    %1155 = dma.done %s563, 16
    %1157 = dma.done %s692, 16
    %1159 = dma.done %s692, 16
    %1161 = dma.done %s692, 16
    %1163 = dma.done %s692, 16
    %1165 = dma.done %s692, 16
    %1167 = dma.done %s692, 16
    %1169 = dma.done %s692, 16
    %1171 = dma.done %s692, 16
    %1173 = dma.done %s821, 16
    %1175 = dma.done %s821, 16
    %1177 = dma.done %s821, 16
    %1179 = dma.done %s821, 16
    %1181 = dma.done %s821, 16
    %1183 = dma.done %s821, 16
    %1185 = dma.done %s821, 16
    %1187 = dma.done %s821, 16
    %1189 = dma.done %s950, 16
    %1191 = dma.done %s950, 16
    %1193 = dma.done %s950, 16
    %1195 = dma.done %s950, 16
    %1197 = dma.done %s950, 16
    %1199 = dma.done %s950, 16
    %1201 = dma.done %s950, 16
    %1203 = dma.done %s950, 16
    %v1204 = vld [vmem:[#allocation2] sm:$0xff]
    %v1205 = vld [vmem:[#allocation2 + $0x8] sm:$0xff]
    %v1206 = vld [vmem:[#allocation2 + $0x10] sm:$0xff]
    %v1207 = vld [vmem:[#allocation2 + $0x18] sm:$0xff]
    %v1208 = vld [vmem:[#allocation2 + $0x20] sm:$0xff]
    %v1209 = vld [vmem:[#allocation2 + $0x28] sm:$0xff]
    %v1210 = vld [vmem:[#allocation2 + $0x30] sm:$0xff]
    %v1211 = vld [vmem:[#allocation2 + $0x38] sm:$0xff]
    %v1212 = vadd.f32 %v1204, %v1205
    %v1213 = vadd.f32 %v1212, %v1206
    %v1214 = vadd.f32 %v1213, %v1207
    %v1215 = vadd.f32 %v1214, %v1208
    %v1216 = vadd.f32 %v1215, %v1209
    %v1217 = vadd.f32 %v1216, %v1210
    %v1218 = vadd.f32 %v1217, %v1211
    %v1219 = vmul.f32 %v1218, 0.125
    %v1220 = vld [vmem:[#allocation7] sm:$0xff]
    %v1221 = vld [vmem:[#allocation7 + $0x8] sm:$0xff]
    %v1222 = vld [vmem:[#allocation7 + $0x10] sm:$0xff]
    %v1223 = vld [vmem:[#allocation7 + $0x18] sm:$0xff]
    %v1224 = vld [vmem:[#allocation7 + $0x20] sm:$0xff]
    %v1225 = vld [vmem:[#allocation7 + $0x28] sm:$0xff]
    %v1226 = vld [vmem:[#allocation7 + $0x30] sm:$0xff]
    %v1227 = vld [vmem:[#allocation7 + $0x38] sm:$0xff]
    %v1228 = vld [vmem:[%s3] sm:$0xff]
    %v1229 = vld [vmem:[%s3 + $0x8] sm:$0xff]
    %v1230 = vld [vmem:[%s3 + $0x10] sm:$0xff]
    %v1231 = vld [vmem:[%s3 + $0x18] sm:$0xff]
    %v1232 = vld [vmem:[%s3 + $0x20] sm:$0xff]
    %v1233 = vld [vmem:[%s3 + $0x28] sm:$0xff]
    %v1234 = vld [vmem:[%s3 + $0x30] sm:$0xff]
    %v1235 = vld [vmem:[%s3 + $0x38] sm:$0xff]
    %1237 = vset.pattern.permute.xlu0 0
    %1238 = vperm.xlu0 %1237, %v1228
    %v1239 = vpop.permute.xlu0 %1238
    %1242 = vset.pattern.permute.xlu0 0
    %1243 = vperm.xlu0 %1242, %v1229
    %v1244 = vpop.permute.xlu0 %1243
    %1247 = vset.pattern.permute.xlu0 0
    %1248 = vperm.xlu0 %1247, %v1230
    %v1249 = vpop.permute.xlu0 %1248
    %1252 = vset.pattern.permute.xlu0 0
    %1253 = vperm.xlu0 %1252, %v1231
    %v1254 = vpop.permute.xlu0 %1253
    %1257 = vset.pattern.permute.xlu0 0
    %1258 = vperm.xlu0 %1257, %v1232
    %v1259 = vpop.permute.xlu0 %1258
    %1262 = vset.pattern.permute.xlu0 0
    %1263 = vperm.xlu0 %1262, %v1233
    %v1264 = vpop.permute.xlu0 %1263
    %1267 = vset.pattern.permute.xlu0 0
    %1268 = vperm.xlu0 %1267, %v1234
    %v1269 = vpop.permute.xlu0 %1268
    %1272 = vset.pattern.permute.xlu0 0
    %1273 = vperm.xlu0 %1272, %v1235
    %v1274 = vpop.permute.xlu0 %1273
    %1276 = vmatpush.xpose.msra.mxu0 0.0
    %1277 = vmatpush.xpose.msra.mxu0 0.0
    %1278 = vmatpush.xpose.msra.mxu0 0.0
    %1279 = vmatpush.xpose.msra.mxu0 0.0
    %1280 = vmatpush.xpose.msra.mxu0 0.0
    %1281 = vmatpush.xpose.msra.mxu0 0.0
    %1282 = vmatpush.xpose.msra.mxu0 0.0
    %1283 = vmatpush.xpose.msra.mxu0 0.0
    %1284 = vmatpush.xpose.msra.mxu0 0.0
    %1285 = vmatpush.xpose.msra.mxu0 0.0
    %1286 = vmatpush.xpose.msra.mxu0 0.0
    %1287 = vmatpush.xpose.msra.mxu0 0.0
    %1288 = vmatpush.xpose.msra.mxu0 0.0
    %1289 = vmatpush.xpose.msra.mxu0 0.0
    %1290 = vmatpush.xpose.msra.mxu0 0.0
    %1291 = vmatpush.xpose.msra.mxu0 %v1219
    %1292 = vmatmul.f32.gmra.mxu0 %v1220
    %v1293 = vpop.f32.mrf.mxu0
    %v1294 = vadd.f32 %v1239, %v1293
    %1295 = vmatmul.f32.gmra.mxu0 %v1221
    %v1296 = vpop.f32.mrf.mxu0
    %v1297 = vadd.f32 %v1244, %v1296
    %1298 = vmatmul.f32.gmra.mxu0 %v1222
    %v1299 = vpop.f32.mrf.mxu0
    %v1300 = vadd.f32 %v1249, %v1299
    %1301 = vmatmul.f32.gmra.mxu0 %v1223
    %v1302 = vpop.f32.mrf.mxu0
    %v1303 = vadd.f32 %v1254, %v1302
    %1304 = vmatmul.f32.gmra.mxu0 %v1224
    %v1305 = vpop.f32.mrf.mxu0
    %v1306 = vadd.f32 %v1259, %v1305
    %1307 = vmatmul.f32.gmra.mxu0 %v1225
    %v1308 = vpop.f32.mrf.mxu0
    %v1309 = vadd.f32 %v1264, %v1308
    %1310 = vmatmul.f32.gmra.mxu0 %v1226
    %v1311 = vpop.f32.mrf.mxu0
    %v1312 = vadd.f32 %v1269, %v1311
    %1313 = vmatmul.f32.gmra.mxu0 %v1227
    %v1314 = vpop.f32.mrf.mxu0
    %v1315 = vadd.f32 %v1274, %v1314
    %1316 = vdwg.mxu0
    %v1317 = vld [vmem:[%s4] sm:$0xff]
    %v1318 = vld [vmem:[%s4 + $0x8] sm:$0xff]
    %v1319 = vld [vmem:[%s4 + $0x10] sm:$0xff]
    %v1320 = vld [vmem:[%s4 + $0x18] sm:$0xff]
    %v1321 = vld [vmem:[%s4 + $0x20] sm:$0xff]
    %v1322 = vld [vmem:[%s4 + $0x28] sm:$0xff]
    %v1323 = vld [vmem:[%s4 + $0x30] sm:$0xff]
    %v1324 = vld [vmem:[%s4 + $0x38] sm:$0xff]
    %1326 = vset.pattern.permute.xlu0 0
    %1327 = vperm.xlu0 %1326, %v1317
    %v1328 = vpop.permute.xlu0 %1327
    %1331 = vset.pattern.permute.xlu0 0
    %1332 = vperm.xlu0 %1331, %v1318
    %v1333 = vpop.permute.xlu0 %1332
    %1336 = vset.pattern.permute.xlu0 0
    %1337 = vperm.xlu0 %1336, %v1319
    %v1338 = vpop.permute.xlu0 %1337
    %1341 = vset.pattern.permute.xlu0 0
    %1342 = vperm.xlu0 %1341, %v1320
    %v1343 = vpop.permute.xlu0 %1342
    %1346 = vset.pattern.permute.xlu0 0
    %1347 = vperm.xlu0 %1346, %v1321
    %v1348 = vpop.permute.xlu0 %1347
    %1351 = vset.pattern.permute.xlu0 0
    %1352 = vperm.xlu0 %1351, %v1322
    %v1353 = vpop.permute.xlu0 %1352
    %1356 = vset.pattern.permute.xlu0 0
    %1357 = vperm.xlu0 %1356, %v1323
    %v1358 = vpop.permute.xlu0 %1357
    %1361 = vset.pattern.permute.xlu0 0
    %1362 = vperm.xlu0 %1361, %v1324
    %v1363 = vpop.permute.xlu0 %1362
    %v1365 = vmul.f32 %v1294, %v1328
    %v1366 = vmul.f32 %v1297, %v1333
    %v1367 = vmul.f32 %v1300, %v1338
    %v1368 = vmul.f32 %v1303, %v1343
    %v1369 = vmul.f32 %v1306, %v1348
    %v1370 = vmul.f32 %v1309, %v1353
    %v1371 = vmul.f32 %v1312, %v1358
    %v1372 = vmul.f32 %v1315, %v1363
    %vm1373 = vcmask 64512
    %v1374 = vsel %vm1373, %v1365, 0.0
    %v1375 = vsel %vm1373, %v1366, 0.0
    %v1376 = vadd.f32 %v1374, %v1375
    %v1377 = vsel %vm1373, %v1367, 0.0
    %v1378 = vadd.f32 %v1376, %v1377
    %v1379 = vsel %vm1373, %v1368, 0.0
    %v1380 = vadd.f32 %v1378, %v1379
    %v1381 = vsel %vm1373, %v1369, 0.0
    %v1382 = vadd.f32 %v1380, %v1381
    %v1383 = vsel %vm1373, %v1370, 0.0
    %v1384 = vadd.f32 %v1382, %v1383
    %v1385 = vsel %vm1373, %v1371, 0.0
    %v1386 = vadd.f32 %v1384, %v1385
    %v1387 = vsel %vm1373, %v1372, 0.0
    %v1388 = vadd.f32 %v1386, %v1387
    %v1389 = vrot.slane %v1388, 4
    %v1390 = vadd.f32 %v1388, %v1389
    %v1391 = vrot.slane %v1390, 2
    %v1392 = vadd.f32 %v1390, %v1391
    %v1393 = vrot.slane %v1392, 1
    %v1394 = vadd.f32 %v1392, %v1393
    %v1395 = vld [vmem:[#allocation6] sm:$0x1]
    %1397 = vset.pattern.permute.xlu0 0
    %1398 = vperm.xlu0 %1397, %v1395
    %v1399 = vpop.permute.xlu0 %1398
    %v1401 = vperm.slane %v1399, 0
    %v1402 = vadd.f32 %v1394, %v1401
    %vm1403 = vcmask 57344
    %1404 = vst.msk [vmem:[#allocation10] sm:$0x1] %vm1403, %v1402
    // Predicated region
    $region278: #{tpu_custom_call.1} parent=1 // pred_check
      _
    $region279: #{tpu_custom_call.1} parent=1 // pred_check_branch
      %1406 = sbr.rel (0) target = $region281
    $region280: #{tpu_custom_call.1} parent=1 // pred_region
      %1408 = vsyncadd [#allocation9], 0
      %s1410 = sshll.u32 [#allocation10], 4
      %s1411 = int_to_ptr.vmem [resolvable:$true] %s1410
      %s1412 = sshll.u32 %s6, 4
      %s1413 = int_to_ptr.hbm [resolvable:$true] %s1412
      %1415 = dma.vmem_to_hbm [thread:$0]  %s1411, 16, %s1413, [#allocation9]
    $region281: #{tpu_custom_call.1} parent=1 // pred_fallthru
      _
    // Predicated region
    $region282: #{tpu_custom_call.1} parent=1 // pred_check
      _
    $region283: #{tpu_custom_call.1} parent=1 // pred_check_branch
      %1417 = sbr.rel (0) target = $region285
    $region284: #{tpu_custom_call.1} parent=1 // pred_region
      %1419 = dma.done [#allocation9], 16
    $region285: #{tpu_custom_call.1} parent=1 // pred_fallthru
      _
    %1420 = vsyncpa [#allocation8], 1
    %1421 = vsyncpa [#allocation9], 1
  %1422 = vsyncmov [#allocation3]
  %s1423 = vpop.sfrf %1422
  %p1424 = scmp.eq.s32.totalorder %s1423, 0
  %p1425 = pneg %p1424
  %1427 = shalt.err (%p1425)
  %s1428 = scalar_lea.sflag [#allocation3], 1
  %1429 = vsyncmov %s1428
  %s1430 = vpop.sfrf %1429
  %p1431 = scmp.eq.s32.totalorder %s1430, 0
  %p1432 = pneg %p1431
  %1434 = shalt.err (%p1432)
  %s1435 = scalar_lea.sflag [#allocation3], 2
  %1436 = vsyncmov %s1435
  %s1437 = vpop.sfrf %1436
  %p1438 = scmp.eq.s32.totalorder %s1437, 0
  %p1439 = pneg %p1438
  %1441 = shalt.err (%p1439)
  %s1442 = scalar_lea.sflag [#allocation3], 3
  %1443 = vsyncmov %s1442
  %s1444 = vpop.sfrf %1443
  %p1445 = scmp.eq.s32.totalorder %s1444, 0
  %p1446 = pneg %p1445
  %1448 = shalt.err (%p1446)
  %s1449 = scalar_lea.sflag [#allocation3], 4
  %1450 = vsyncmov %s1449
  %s1451 = vpop.sfrf %1450
  %p1452 = scmp.eq.s32.totalorder %s1451, 0
  %p1453 = pneg %p1452
  %1455 = shalt.err (%p1453)
  %s1456 = scalar_lea.sflag [#allocation3], 5
  %1457 = vsyncmov %s1456
  %s1458 = vpop.sfrf %1457
  %p1459 = scmp.eq.s32.totalorder %s1458, 0
  %p1460 = pneg %p1459
  %1462 = shalt.err (%p1460)
  %s1463 = scalar_lea.sflag [#allocation3], 6
  %1464 = vsyncmov %s1463
  %s1465 = vpop.sfrf %1464
  %p1466 = scmp.eq.s32.totalorder %s1465, 0
  %p1467 = pneg %p1466
  %1469 = shalt.err (%p1467)
  %s1470 = scalar_lea.sflag [#allocation3], 7
  %1471 = vsyncmov %s1470
  %s1472 = vpop.sfrf %1471
  %p1473 = scmp.eq.s32.totalorder %s1472, 0
  %p1474 = pneg %p1473
  %1476 = shalt.err (%p1474)

</llo_original>
